<compile_context>
chip_gen: v7x
topology: tpu7x:2x2x1
jax: 0.10.0
libtpu: 0.0.40
codegen_flags: <defaults>
</compile_context>

<pallas_src>
import jax
import jax.numpy as jnp
from jax.experimental import pallas as pl
from jax.experimental.pallas import tpu as pltpu

# Model dimensions (fixed by the PyTorch module: fc1 expects 25*25*20 inputs).
H, W = 28, 28
KH, KW = 3, 3
C_OUT = 20
CONV_H, CONV_W = H - KH + 1, W - KW + 1          # 26, 26
POOL_H, POOL_W = CONV_H - 1, CONV_W - 1          # 25, 25  (MaxPool2d(2, stride=1))
FLAT = POOL_H * POOL_W * C_OUT                   # 12500
HID = 128
NCLASS = 10
PAD_CLS = 128                                    # lane-padded fc2 output width

IMG_FLAT = H * W                                 # 784
CONV_FLAT = (CONV_H - 1) * W + CONV_W            # 726 (flat conv output, row stride W)
POOL_FLAT = (POOL_H - 1) * W + POOL_W            # 697 (flat pooled output, row stride W)

CPG = 5                                          # conv channels per grid step
NGROUPS = C_OUT // CPG                           # 4
assert C_OUT % CPG == 0


def cnn_fused_kernel(x_ref, cw_ref, cb_ref, w1_ref, b1_ref, w2_ref, b2_ref,
                     out_ref, h_acc):
    """One grid step = CPG conv channels (conv+pool+relu) and their fc1
    contribution; the last step applies fc1 bias/ReLU, fc2 and log_softmax.

    x_ref : (N, 784)          f32  flattened 28x28 image (row stride 28), resident
    cw_ref: (180,)            f32  SMEM conv weights, index c*9 + ki*3 + kj
    cb_ref: (20,)             f32  SMEM conv bias
    w1_ref: (CPG, 697, 128)   bf16 fc1 weight block for this channel group
    b1_ref: (1, 128)          f32
    w2_ref: (128, 128)        f32  fc2 weight, zero-padded to 128 output lanes
    b2_ref: (1, 128)          f32  fc2 bias, -1e30 in the 118 padded lanes
    out_ref: (N, 128)         f32  lane-dense padded log-probs (slice to 10 outside)
    h_acc : (N, 128)          f32  VMEM scratch fc1 accumulator (persists)
    """
    g = pl.program_id(0)

    @pl.when(g == 0)
    def _init():
        h_acc[...] = jnp.zeros_like(h_acc)

    x = x_ref[...]                                                # (N, 784) f32
    # Hoist the 9 shifted views once per step; shared by all CPG channels.
    shifts = [x[:, ki * W + kj: ki * W + kj + CONV_FLAT]          # each (N, 726)
              for ki in range(KH) for kj in range(KW)]

    grp = None
    for cl in range(CPG):
        c = g * CPG + cl                                          # dynamic channel id
        wb = c * (KH * KW)
        # Conv2d(1->20, k=3, s=1) in flat-spatial form (scalar-broadcast FMAs).
        acc = shifts[0] * cw_ref[wb]
        for t in range(1, KH * KW):
            acc = acc + shifts[t] * cw_ref[wb + t]
        acc = acc + cb_ref[c]                                     # (N, 726)
        # MaxPool2d(2, stride=1) + ReLU, still in flat-spatial form.
        pooled = jnp.maximum(
            jnp.maximum(acc[:, 0:POOL_FLAT], acc[:, 1:POOL_FLAT + 1]),
            jnp.maximum(acc[:, W:POOL_FLAT + W], acc[:, W + 1:POOL_FLAT + W + 1]),
        )
        pooled = jnp.maximum(pooled, 0.0)                         # (N, 697) f32
        # fc1 contribution of this channel: one bf16 MXU dot, f32 accumulation.
        # (weight rows at the 3 flat-padding columns per pooled row are zero.)
        contrib = jnp.dot(pooled.astype(jnp.bfloat16), w1_ref[cl],
                          preferred_element_type=jnp.float32)     # (N, 128)
        grp = contrib if grp is None else grp + contrib

    h_acc[...] += grp

    @pl.when(g == pl.num_programs(0) - 1)
    def _finish():
        h = jnp.maximum(h_acc[...] + b1_ref[...], 0.0)            # fc1 bias + ReLU
        logits = jnp.dot(h, w2_ref[...],
                         preferred_element_type=jnp.float32) + b2_ref[...]  # (N, 128)
        m = jnp.max(logits, axis=1, keepdims=True)
        z = logits - m
        lse = jnp.log(jnp.sum(jnp.exp(z), axis=1, keepdims=True))
        out_ref[...] = z - lse                                    # lane-dense store


def init_params(key):
    """Parameters in the PyTorch layouts (Conv2d: (out,in,kh,kw); Linear: (out,in))."""
    ks = jax.random.split(key, 6)
    rnd = lambda k, shape, scale: jax.random.normal(k, shape, jnp.float32) * scale
    return {
        "conv_w": rnd(ks[0], (C_OUT, 1, KH, KW), 0.1),
        "conv_b": rnd(ks[1], (C_OUT,), 0.1),
        "fc1_w": rnd(ks[2], (HID, FLAT), 0.02),
        "fc1_b": rnd(ks[3], (HID,), 0.02),
        "fc2_w": rnd(ks[4], (NCLASS, HID), 0.05),
        "fc2_b": rnd(ks[5], (NCLASS,), 0.05),
    }


def prepare_params(params):
    """One-time, out-of-hot-path weight preparation (permute / pad / cast)."""
    # fc1: (128, 12500) with column f = c*625 + p*25 + q  (PyTorch C-order flatten)
    #   -> (20, 697, 128) bf16 in the kernel's flat-spatial layout (row stride 28,
    #      zero rows for the 3 padding columns of every pooled row).
    w1 = params["fc1_w"].reshape(HID, C_OUT, POOL_H, POOL_W)
    w1 = jnp.pad(w1, ((0, 0), (0, 0), (0, 0), (0, W - POOL_W)))   # q: 25 -> 28
    w1 = w1.reshape(HID, C_OUT, POOL_H * W)[:, :, :POOL_FLAT]     # (128, 20, 697)
    w1 = jnp.transpose(w1, (1, 2, 0)).astype(jnp.bfloat16)        # (20, 697, 128)

    # fc2: pad output lanes 10 -> 128 (zero weights, -1e30 bias) so the
    # log-softmax reductions and the final store operate on a full 128-lane tile.
    w2 = jnp.zeros((HID, PAD_CLS), jnp.float32).at[:, :NCLASS].set(params["fc2_w"].T)
    b2 = jnp.full((1, PAD_CLS), -1e30, jnp.float32).at[0, :NCLASS].set(params["fc2_b"])

    return {
        "conv_w_flat": params["conv_w"].reshape(-1),              # (180,)
        "conv_b": params["conv_b"],                               # (20,)
        "w1": w1,                                                 # (20, 697, 128) bf16
        "b1": params["fc1_b"].reshape(1, HID),                    # (1, 128)
        "w2": w2,                                                 # (128, 128)
        "b2": b2,                                                 # (1, 128)
    }


def cnn_forward(x_nchw, prepped):
    n = x_nchw.shape[0]
    x_flat = x_nchw.reshape(n, IMG_FLAT)                          # (N, 784), C=1

    grid_spec = pltpu.PrefetchScalarGridSpec(
        num_scalar_prefetch=0,
        grid=(NGROUPS,),
        in_specs=[
            pl.BlockSpec((n, IMG_FLAT), lambda g: (0, 0)),                # x (resident)
            pl.BlockSpec(memory_space=pltpu.MemorySpace.SMEM),            # conv weights
            pl.BlockSpec(memory_space=pltpu.MemorySpace.SMEM),            # conv bias
            pl.BlockSpec((CPG, POOL_FLAT, HID), lambda g: (g, 0, 0)),     # fc1 w (pipelined)
            pl.BlockSpec((1, HID), lambda g: (0, 0)),                     # fc1 b
            pl.BlockSpec((HID, PAD_CLS), lambda g: (0, 0)),               # fc2 w
            pl.BlockSpec((1, PAD_CLS), lambda g: (0, 0)),                 # fc2 b
        ],
        out_specs=pl.BlockSpec((n, PAD_CLS), lambda g: (0, 0)),           # lane-dense out
        scratch_shapes=[pltpu.VMEM((n, HID), jnp.float32)],
    )
    out_pad = pl.pallas_call(
        cnn_fused_kernel,
        out_shape=jax.ShapeDtypeStruct((n, PAD_CLS), jnp.float32),
        grid_spec=grid_spec,
        compiler_params=pltpu.CompilerParams(
            dimension_semantics=("arbitrary",)),  # channel-group axis is a reduction
    )(x_flat, prepped["conv_w_flat"], prepped["conv_b"],
      prepped["w1"], prepped["b1"], prepped["w2"], prepped["b2"])
    return out_pad[:, :NCLASS]                                    # real classes only


def cnn_reference(x_nchw, params):
    """Pure-JAX reference matching the PyTorch module (f32 end-to-end)."""
    conv = jax.lax.conv_general_dilated(
        x_nchw, params["conv_w"], window_strides=(1, 1), padding="VALID",
        dimension_numbers=("NCHW", "OIHW", "NCHW"))
    conv = conv + params["conv_b"][None, :, None, None]
    pooled = jax.lax.reduce_window(conv, -jnp.inf, jax.lax.max,
                                   (1, 1, 2, 2), (1, 1, 1, 1), "VALID")
    act = jnp.maximum(pooled, 0.0)
    flat = act.reshape(act.shape[0], -1)                          # C-order, == torch .view
    h = jnp.maximum(flat @ params["fc1_w"].T + params["fc1_b"], 0.0)
    logits = h @ params["fc2_w"].T + params["fc2_b"]
    return jax.nn.log_softmax(logits, axis=1)


if __name__ == "__main__":
    key = jax.random.PRNGKey(0)
    kx, kp = jax.random.split(key)
    x = jax.random.normal(kx, (2, 1, H, W), jnp.float32)          # MNIST-shaped input
    params = init_params(kp)
    prepped = prepare_params(params)                              # one-time prep

    out = jax.jit(cnn_forward)(x, prepped)
    out = jax.block_until_ready(out)

    assert out.shape == (2, NCLASS)
    assert bool(jnp.all(jnp.isfinite(out)))
    # log_softmax sanity: probabilities sum to 1 per row
    row_sums = jnp.sum(jnp.exp(out), axis=1)
    assert bool(jnp.all(jnp.abs(row_sums - 1.0) < 1e-3))
    # Correctness vs pure-JAX reference (bf16 fc1 weights -> small tolerance).
    ref = cnn_reference(x, params)
    max_diff = float(jnp.max(jnp.abs(out - ref)))
    assert max_diff < 0.1, f"mismatch vs reference: {max_diff}"
    print("KERNEL_OK")
</pallas_src>

<mosaic_0001>
module attributes {stable_mosaic.version = 11 : i64} {
  func.func @cnn_fused_kernel(%arg0: i32, %arg1: memref<2x784xf32, #tpu.memory_space<vmem>>, %arg2: memref<180xf32, #tpu.memory_space<smem>>, %arg3: memref<20xf32, #tpu.memory_space<smem>>, %arg4: memref<5x697x128xbf16, #tpu.memory_space<vmem>>, %arg5: memref<1x128xf32, #tpu.memory_space<vmem>>, %arg6: memref<128x128xf32, #tpu.memory_space<vmem>>, %arg7: memref<1x128xf32, #tpu.memory_space<vmem>>, %arg8: memref<2x128xf32, #tpu.memory_space<vmem>>, %arg9: memref<2x128xf32, #tpu.memory_space<vmem>>) attributes {dimension_semantics = [#tpu.dimension_semantics<arbitrary>], iteration_bounds = array<i64: 4>, scalar_prefetch = 0 : i64, scratch_operands = 1 : i64, tpu.core_type = #tpu.core_type<tc>, window_params = [{pipeline_mode = #tpu.pipeline_mode<synchronous>, transform_indices = @transform_0, window_bounds = array<i64: 2, 784>}, {transform_indices = @transform_1, window_bounds = array<i64: 180>}, {transform_indices = @transform_2, window_bounds = array<i64: 20>}, {transform_indices = @transform_3, window_bounds = array<i64: 5, 697, 128>}, {pipeline_mode = #tpu.pipeline_mode<synchronous>, transform_indices = @transform_4, window_bounds = array<i64: 1, 128>}, {pipeline_mode = #tpu.pipeline_mode<synchronous>, transform_indices = @transform_5, window_bounds = array<i64: 128, 128>}, {pipeline_mode = #tpu.pipeline_mode<synchronous>, transform_indices = @transform_6, window_bounds = array<i64: 1, 128>}, {pipeline_mode = #tpu.pipeline_mode<synchronous>, transform_indices = @transform_7, window_bounds = array<i64: 2, 128>}]} {
    %c0_i32 = arith.constant 0 : i32
    %0 = arith.cmpi eq, %arg0, %c0_i32 : i32
    %1 = arith.extui %0 : i1 to i32
    %c0_i32_0 = arith.constant 0 : i32
    %2 = arith.cmpi ne, %1, %c0_i32_0 : i32
    scf.if %2 {
      %cst_74 = arith.constant 0.000000e+00 : f32
      %383 = vector.broadcast %cst_74 : f32 to vector<2x128xf32>
      %c0_75 = arith.constant 0 : index
      %c0_76 = arith.constant 0 : index
      %384 = vector.load %arg9[%c0_75, %c0_76] : memref<2x128xf32, #tpu.memory_space<vmem>>, vector<2x128xf32>
      tpu.vector_store %arg9[%c0_75, %c0_76], %383 {strides = array<i32>} : memref<2x128xf32, #tpu.memory_space<vmem>>, vector<2x128xf32>,
    } else {
    }
    %c0 = arith.constant 0 : index
    %c0_1 = arith.constant 0 : index
    %3 = vector.load %arg1[%c0, %c0_1] : memref<2x784xf32, #tpu.memory_space<vmem>>, vector<2x784xf32>
    %4 = vector.extract_strided_slice %3 {offsets = [0, 0], sizes = [2, 726], strides = [1, 1]} : vector<2x784xf32> to vector<2x726xf32>
    %5 = vector.extract_strided_slice %3 {offsets = [0, 1], sizes = [2, 726], strides = [1, 1]} : vector<2x784xf32> to vector<2x726xf32>
    %6 = vector.extract_strided_slice %3 {offsets = [0, 2], sizes = [2, 726], strides = [1, 1]} : vector<2x784xf32> to vector<2x726xf32>
    %7 = vector.extract_strided_slice %3 {offsets = [0, 28], sizes = [2, 726], strides = [1, 1]} : vector<2x784xf32> to vector<2x726xf32>
    %8 = vector.extract_strided_slice %3 {offsets = [0, 29], sizes = [2, 726], strides = [1, 1]} : vector<2x784xf32> to vector<2x726xf32>
    %9 = vector.extract_strided_slice %3 {offsets = [0, 30], sizes = [2, 726], strides = [1, 1]} : vector<2x784xf32> to vector<2x726xf32>
    %10 = vector.extract_strided_slice %3 {offsets = [0, 56], sizes = [2, 726], strides = [1, 1]} : vector<2x784xf32> to vector<2x726xf32>
    %11 = vector.extract_strided_slice %3 {offsets = [0, 57], sizes = [2, 726], strides = [1, 1]} : vector<2x784xf32> to vector<2x726xf32>
    %12 = vector.extract_strided_slice %3 {offsets = [0, 58], sizes = [2, 726], strides = [1, 1]} : vector<2x784xf32> to vector<2x726xf32>
    %c5_i32 = arith.constant 5 : i32
    %13 = arith.muli %arg0, %c5_i32 : i32
    %c0_i32_2 = arith.constant 0 : i32
    %14 = arith.addi %13, %c0_i32_2 : i32
    %c9_i32 = arith.constant 9 : i32
    %15 = arith.muli %14, %c9_i32 : i32
    %16 = arith.index_cast %15 : i32 to index
    %17 = memref.load %arg2[%16] : memref<180xf32, #tpu.memory_space<smem>>
    %18 = vector.broadcast %17 : f32 to vector<2x726xf32>
    %19 = arith.mulf %4, %18 : vector<2x726xf32>
    %c1_i32 = arith.constant 1 : i32
    %20 = arith.addi %15, %c1_i32 : i32
    %21 = arith.index_cast %20 : i32 to index
    %22 = memref.load %arg2[%21] : memref<180xf32, #tpu.memory_space<smem>>
    %23 = vector.broadcast %22 : f32 to vector<2x726xf32>
    %24 = arith.mulf %5, %23 : vector<2x726xf32>
    %25 = arith.addf %19, %24 : vector<2x726xf32>
    %c2_i32 = arith.constant 2 : i32
    %26 = arith.addi %15, %c2_i32 : i32
    %27 = arith.index_cast %26 : i32 to index
    %28 = memref.load %arg2[%27] : memref<180xf32, #tpu.memory_space<smem>>
    %29 = vector.broadcast %28 : f32 to vector<2x726xf32>
    %30 = arith.mulf %6, %29 : vector<2x726xf32>
    %31 = arith.addf %25, %30 : vector<2x726xf32>
    %c3_i32 = arith.constant 3 : i32
    %32 = arith.addi %15, %c3_i32 : i32
    %33 = arith.index_cast %32 : i32 to index
    %34 = memref.load %arg2[%33] : memref<180xf32, #tpu.memory_space<smem>>
    %35 = vector.broadcast %34 : f32 to vector<2x726xf32>
    %36 = arith.mulf %7, %35 : vector<2x726xf32>
    %37 = arith.addf %31, %36 : vector<2x726xf32>
    %c4_i32 = arith.constant 4 : i32
    %38 = arith.addi %15, %c4_i32 : i32
    %39 = arith.index_cast %38 : i32 to index
    %40 = memref.load %arg2[%39] : memref<180xf32, #tpu.memory_space<smem>>
    %41 = vector.broadcast %40 : f32 to vector<2x726xf32>
    %42 = arith.mulf %8, %41 : vector<2x726xf32>
    %43 = arith.addf %37, %42 : vector<2x726xf32>
    %c5_i32_3 = arith.constant 5 : i32
    %44 = arith.addi %15, %c5_i32_3 : i32
    %45 = arith.index_cast %44 : i32 to index
    %46 = memref.load %arg2[%45] : memref<180xf32, #tpu.memory_space<smem>>
    %47 = vector.broadcast %46 : f32 to vector<2x726xf32>
    %48 = arith.mulf %9, %47 : vector<2x726xf32>
    %49 = arith.addf %43, %48 : vector<2x726xf32>
    %c6_i32 = arith.constant 6 : i32
    %50 = arith.addi %15, %c6_i32 : i32
    %51 = arith.index_cast %50 : i32 to index
    %52 = memref.load %arg2[%51] : memref<180xf32, #tpu.memory_space<smem>>
    %53 = vector.broadcast %52 : f32 to vector<2x726xf32>
    %54 = arith.mulf %10, %53 : vector<2x726xf32>
    %55 = arith.addf %49, %54 : vector<2x726xf32>
    %c7_i32 = arith.constant 7 : i32
    %56 = arith.addi %15, %c7_i32 : i32
    %57 = arith.index_cast %56 : i32 to index
    %58 = memref.load %arg2[%57] : memref<180xf32, #tpu.memory_space<smem>>
    %59 = vector.broadcast %58 : f32 to vector<2x726xf32>
    %60 = arith.mulf %11, %59 : vector<2x726xf32>
    %61 = arith.addf %55, %60 : vector<2x726xf32>
    %c8_i32 = arith.constant 8 : i32
    %62 = arith.addi %15, %c8_i32 : i32
    %63 = arith.index_cast %62 : i32 to index
    %64 = memref.load %arg2[%63] : memref<180xf32, #tpu.memory_space<smem>>
    %65 = vector.broadcast %64 : f32 to vector<2x726xf32>
    %66 = arith.mulf %12, %65 : vector<2x726xf32>
    %67 = arith.addf %61, %66 : vector<2x726xf32>
    %68 = arith.index_cast %14 : i32 to index
    %69 = memref.load %arg3[%68] : memref<20xf32, #tpu.memory_space<smem>>
    %70 = vector.broadcast %69 : f32 to vector<2x726xf32>
    %71 = arith.addf %67, %70 : vector<2x726xf32>
    %72 = vector.extract_strided_slice %71 {offsets = [0, 0], sizes = [2, 697], strides = [1, 1]} : vector<2x726xf32> to vector<2x697xf32>
    %73 = vector.extract_strided_slice %71 {offsets = [0, 1], sizes = [2, 697], strides = [1, 1]} : vector<2x726xf32> to vector<2x697xf32>
    %74 = arith.maximumf %72, %73 : vector<2x697xf32>
    %75 = vector.extract_strided_slice %71 {offsets = [0, 28], sizes = [2, 697], strides = [1, 1]} : vector<2x726xf32> to vector<2x697xf32>
    %76 = vector.extract_strided_slice %71 {offsets = [0, 29], sizes = [2, 697], strides = [1, 1]} : vector<2x726xf32> to vector<2x697xf32>
    %77 = arith.maximumf %75, %76 : vector<2x697xf32>
    %78 = arith.maximumf %74, %77 : vector<2x697xf32>
    %cst = arith.constant 0.000000e+00 : f32
    %79 = vector.broadcast %cst : f32 to vector<2x697xf32>
    %80 = arith.maximumf %78, %79 : vector<2x697xf32>
    %81 = arith.truncf %80 : vector<2x697xf32> to vector<2x697xbf16>
    %c0_4 = arith.constant 0 : index
    %c0_5 = arith.constant 0 : index
    %c0_6 = arith.constant 0 : index
    %82 = vector.load %arg4[%c0_4, %c0_5, %c0_6] : memref<5x697x128xbf16, #tpu.memory_space<vmem>>, vector<1x697x128xbf16>
    %83 = vector.shape_cast %82 : vector<1x697x128xbf16> to vector<697x128xbf16>
    %cst_7 = arith.constant dense<0.000000e+00> : vector<2x128xf32>
    %84 = tpu.matmul %81, %83, %cst_7 {dimension_numbers = #tpu.dot_dimension_numbers<[1], [0], [0], [1], [0, 0, 1, 1], [], []>} : vector<2x697xbf16>, vector<697x128xbf16>, vector<2x128xf32> -> vector<2x128xf32>
    %c5_i32_8 = arith.constant 5 : i32
    %85 = arith.muli %arg0, %c5_i32_8 : i32
    %c1_i32_9 = arith.constant 1 : i32
    %86 = arith.addi %85, %c1_i32_9 : i32
    %c9_i32_10 = arith.constant 9 : i32
    %87 = arith.muli %86, %c9_i32_10 : i32
    %88 = arith.index_cast %87 : i32 to index
    %89 = memref.load %arg2[%88] : memref<180xf32, #tpu.memory_space<smem>>
    %90 = vector.broadcast %89 : f32 to vector<2x726xf32>
    %91 = arith.mulf %4, %90 : vector<2x726xf32>
    %c1_i32_11 = arith.constant 1 : i32
    %92 = arith.addi %87, %c1_i32_11 : i32
    %93 = arith.index_cast %92 : i32 to index
    %94 = memref.load %arg2[%93] : memref<180xf32, #tpu.memory_space<smem>>
    %95 = vector.broadcast %94 : f32 to vector<2x726xf32>
    %96 = arith.mulf %5, %95 : vector<2x726xf32>
    %97 = arith.addf %91, %96 : vector<2x726xf32>
    %c2_i32_12 = arith.constant 2 : i32
    %98 = arith.addi %87, %c2_i32_12 : i32
    %99 = arith.index_cast %98 : i32 to index
    %100 = memref.load %arg2[%99] : memref<180xf32, #tpu.memory_space<smem>>
    %101 = vector.broadcast %100 : f32 to vector<2x726xf32>
    %102 = arith.mulf %6, %101 : vector<2x726xf32>
    %103 = arith.addf %97, %102 : vector<2x726xf32>
    %c3_i32_13 = arith.constant 3 : i32
    %104 = arith.addi %87, %c3_i32_13 : i32
    %105 = arith.index_cast %104 : i32 to index
    %106 = memref.load %arg2[%105] : memref<180xf32, #tpu.memory_space<smem>>
    %107 = vector.broadcast %106 : f32 to vector<2x726xf32>
    %108 = arith.mulf %7, %107 : vector<2x726xf32>
    %109 = arith.addf %103, %108 : vector<2x726xf32>
    %c4_i32_14 = arith.constant 4 : i32
    %110 = arith.addi %87, %c4_i32_14 : i32
    %111 = arith.index_cast %110 : i32 to index
    %112 = memref.load %arg2[%111] : memref<180xf32, #tpu.memory_space<smem>>
    %113 = vector.broadcast %112 : f32 to vector<2x726xf32>
    %114 = arith.mulf %8, %113 : vector<2x726xf32>
    %115 = arith.addf %109, %114 : vector<2x726xf32>
    %c5_i32_15 = arith.constant 5 : i32
    %116 = arith.addi %87, %c5_i32_15 : i32
    %117 = arith.index_cast %116 : i32 to index
    %118 = memref.load %arg2[%117] : memref<180xf32, #tpu.memory_space<smem>>
    %119 = vector.broadcast %118 : f32 to vector<2x726xf32>
    %120 = arith.mulf %9, %119 : vector<2x726xf32>
    %121 = arith.addf %115, %120 : vector<2x726xf32>
    %c6_i32_16 = arith.constant 6 : i32
    %122 = arith.addi %87, %c6_i32_16 : i32
    %123 = arith.index_cast %122 : i32 to index
    %124 = memref.load %arg2[%123] : memref<180xf32, #tpu.memory_space<smem>>
    %125 = vector.broadcast %124 : f32 to vector<2x726xf32>
    %126 = arith.mulf %10, %125 : vector<2x726xf32>
    %127 = arith.addf %121, %126 : vector<2x726xf32>
    %c7_i32_17 = arith.constant 7 : i32
    %128 = arith.addi %87, %c7_i32_17 : i32
    %129 = arith.index_cast %128 : i32 to index
    %130 = memref.load %arg2[%129] : memref<180xf32, #tpu.memory_space<smem>>
    %131 = vector.broadcast %130 : f32 to vector<2x726xf32>
    %132 = arith.mulf %11, %131 : vector<2x726xf32>
    %133 = arith.addf %127, %132 : vector<2x726xf32>
    %c8_i32_18 = arith.constant 8 : i32
    %134 = arith.addi %87, %c8_i32_18 : i32
    %135 = arith.index_cast %134 : i32 to index
    %136 = memref.load %arg2[%135] : memref<180xf32, #tpu.memory_space<smem>>
    %137 = vector.broadcast %136 : f32 to vector<2x726xf32>
    %138 = arith.mulf %12, %137 : vector<2x726xf32>
    %139 = arith.addf %133, %138 : vector<2x726xf32>
    %140 = arith.index_cast %86 : i32 to index
    %141 = memref.load %arg3[%140] : memref<20xf32, #tpu.memory_space<smem>>
    %142 = vector.broadcast %141 : f32 to vector<2x726xf32>
    %143 = arith.addf %139, %142 : vector<2x726xf32>
    %144 = vector.extract_strided_slice %143 {offsets = [0, 0], sizes = [2, 697], strides = [1, 1]} : vector<2x726xf32> to vector<2x697xf32>
    %145 = vector.extract_strided_slice %143 {offsets = [0, 1], sizes = [2, 697], strides = [1, 1]} : vector<2x726xf32> to vector<2x697xf32>
    %146 = arith.maximumf %144, %145 : vector<2x697xf32>
    %147 = vector.extract_strided_slice %143 {offsets = [0, 28], sizes = [2, 697], strides = [1, 1]} : vector<2x726xf32> to vector<2x697xf32>
    %148 = vector.extract_strided_slice %143 {offsets = [0, 29], sizes = [2, 697], strides = [1, 1]} : vector<2x726xf32> to vector<2x697xf32>
    %149 = arith.maximumf %147, %148 : vector<2x697xf32>
    %150 = arith.maximumf %146, %149 : vector<2x697xf32>
    %cst_19 = arith.constant 0.000000e+00 : f32
    %151 = vector.broadcast %cst_19 : f32 to vector<2x697xf32>
    %152 = arith.maximumf %150, %151 : vector<2x697xf32>
    %153 = arith.truncf %152 : vector<2x697xf32> to vector<2x697xbf16>
    %c1 = arith.constant 1 : index
    %c0_20 = arith.constant 0 : index
    %c0_21 = arith.constant 0 : index
    %154 = vector.load %arg4[%c1, %c0_20, %c0_21] : memref<5x697x128xbf16, #tpu.memory_space<vmem>>, vector<1x697x128xbf16>
    %155 = vector.shape_cast %154 : vector<1x697x128xbf16> to vector<697x128xbf16>
    %cst_22 = arith.constant dense<0.000000e+00> : vector<2x128xf32>
    %156 = tpu.matmul %153, %155, %cst_22 {dimension_numbers = #tpu.dot_dimension_numbers<[1], [0], [0], [1], [0, 0, 1, 1], [], []>} : vector<2x697xbf16>, vector<697x128xbf16>, vector<2x128xf32> -> vector<2x128xf32>
    %157 = arith.addf %84, %156 : vector<2x128xf32>
    %c5_i32_23 = arith.constant 5 : i32
    %158 = arith.muli %arg0, %c5_i32_23 : i32
    %c2_i32_24 = arith.constant 2 : i32
    %159 = arith.addi %158, %c2_i32_24 : i32
    %c9_i32_25 = arith.constant 9 : i32
    %160 = arith.muli %159, %c9_i32_25 : i32
    %161 = arith.index_cast %160 : i32 to index
    %162 = memref.load %arg2[%161] : memref<180xf32, #tpu.memory_space<smem>>
    %163 = vector.broadcast %162 : f32 to vector<2x726xf32>
    %164 = arith.mulf %4, %163 : vector<2x726xf32>
    %c1_i32_26 = arith.constant 1 : i32
    %165 = arith.addi %160, %c1_i32_26 : i32
    %166 = arith.index_cast %165 : i32 to index
    %167 = memref.load %arg2[%166] : memref<180xf32, #tpu.memory_space<smem>>
    %168 = vector.broadcast %167 : f32 to vector<2x726xf32>
    %169 = arith.mulf %5, %168 : vector<2x726xf32>
    %170 = arith.addf %164, %169 : vector<2x726xf32>
    %c2_i32_27 = arith.constant 2 : i32
    %171 = arith.addi %160, %c2_i32_27 : i32
    %172 = arith.index_cast %171 : i32 to index
    %173 = memref.load %arg2[%172] : memref<180xf32, #tpu.memory_space<smem>>
    %174 = vector.broadcast %173 : f32 to vector<2x726xf32>
    %175 = arith.mulf %6, %174 : vector<2x726xf32>
    %176 = arith.addf %170, %175 : vector<2x726xf32>
    %c3_i32_28 = arith.constant 3 : i32
    %177 = arith.addi %160, %c3_i32_28 : i32
    %178 = arith.index_cast %177 : i32 to index
    %179 = memref.load %arg2[%178] : memref<180xf32, #tpu.memory_space<smem>>
    %180 = vector.broadcast %179 : f32 to vector<2x726xf32>
    %181 = arith.mulf %7, %180 : vector<2x726xf32>
    %182 = arith.addf %176, %181 : vector<2x726xf32>
    %c4_i32_29 = arith.constant 4 : i32
    %183 = arith.addi %160, %c4_i32_29 : i32
    %184 = arith.index_cast %183 : i32 to index
    %185 = memref.load %arg2[%184] : memref<180xf32, #tpu.memory_space<smem>>
    %186 = vector.broadcast %185 : f32 to vector<2x726xf32>
    %187 = arith.mulf %8, %186 : vector<2x726xf32>
    %188 = arith.addf %182, %187 : vector<2x726xf32>
    %c5_i32_30 = arith.constant 5 : i32
    %189 = arith.addi %160, %c5_i32_30 : i32
    %190 = arith.index_cast %189 : i32 to index
    %191 = memref.load %arg2[%190] : memref<180xf32, #tpu.memory_space<smem>>
    %192 = vector.broadcast %191 : f32 to vector<2x726xf32>
    %193 = arith.mulf %9, %192 : vector<2x726xf32>
    %194 = arith.addf %188, %193 : vector<2x726xf32>
    %c6_i32_31 = arith.constant 6 : i32
    %195 = arith.addi %160, %c6_i32_31 : i32
    %196 = arith.index_cast %195 : i32 to index
    %197 = memref.load %arg2[%196] : memref<180xf32, #tpu.memory_space<smem>>
    %198 = vector.broadcast %197 : f32 to vector<2x726xf32>
    %199 = arith.mulf %10, %198 : vector<2x726xf32>
    %200 = arith.addf %194, %199 : vector<2x726xf32>
    %c7_i32_32 = arith.constant 7 : i32
    %201 = arith.addi %160, %c7_i32_32 : i32
    %202 = arith.index_cast %201 : i32 to index
    %203 = memref.load %arg2[%202] : memref<180xf32, #tpu.memory_space<smem>>
    %204 = vector.broadcast %203 : f32 to vector<2x726xf32>
    %205 = arith.mulf %11, %204 : vector<2x726xf32>
    %206 = arith.addf %200, %205 : vector<2x726xf32>
    %c8_i32_33 = arith.constant 8 : i32
    %207 = arith.addi %160, %c8_i32_33 : i32
    %208 = arith.index_cast %207 : i32 to index
    %209 = memref.load %arg2[%208] : memref<180xf32, #tpu.memory_space<smem>>
    %210 = vector.broadcast %209 : f32 to vector<2x726xf32>
    %211 = arith.mulf %12, %210 : vector<2x726xf32>
    %212 = arith.addf %206, %211 : vector<2x726xf32>
    %213 = arith.index_cast %159 : i32 to index
    %214 = memref.load %arg3[%213] : memref<20xf32, #tpu.memory_space<smem>>
    %215 = vector.broadcast %214 : f32 to vector<2x726xf32>
    %216 = arith.addf %212, %215 : vector<2x726xf32>
    %217 = vector.extract_strided_slice %216 {offsets = [0, 0], sizes = [2, 697], strides = [1, 1]} : vector<2x726xf32> to vector<2x697xf32>
    %218 = vector.extract_strided_slice %216 {offsets = [0, 1], sizes = [2, 697], strides = [1, 1]} : vector<2x726xf32> to vector<2x697xf32>
    %219 = arith.maximumf %217, %218 : vector<2x697xf32>
    %220 = vector.extract_strided_slice %216 {offsets = [0, 28], sizes = [2, 697], strides = [1, 1]} : vector<2x726xf32> to vector<2x697xf32>
    %221 = vector.extract_strided_slice %216 {offsets = [0, 29], sizes = [2, 697], strides = [1, 1]} : vector<2x726xf32> to vector<2x697xf32>
    %222 = arith.maximumf %220, %221 : vector<2x697xf32>
    %223 = arith.maximumf %219, %222 : vector<2x697xf32>
    %cst_34 = arith.constant 0.000000e+00 : f32
    %224 = vector.broadcast %cst_34 : f32 to vector<2x697xf32>
    %225 = arith.maximumf %223, %224 : vector<2x697xf32>
    %226 = arith.truncf %225 : vector<2x697xf32> to vector<2x697xbf16>
    %c2 = arith.constant 2 : index
    %c0_35 = arith.constant 0 : index
    %c0_36 = arith.constant 0 : index
    %227 = vector.load %arg4[%c2, %c0_35, %c0_36] : memref<5x697x128xbf16, #tpu.memory_space<vmem>>, vector<1x697x128xbf16>
    %228 = vector.shape_cast %227 : vector<1x697x128xbf16> to vector<697x128xbf16>
    %cst_37 = arith.constant dense<0.000000e+00> : vector<2x128xf32>
    %229 = tpu.matmul %226, %228, %cst_37 {dimension_numbers = #tpu.dot_dimension_numbers<[1], [0], [0], [1], [0, 0, 1, 1], [], []>} : vector<2x697xbf16>, vector<697x128xbf16>, vector<2x128xf32> -> vector<2x128xf32>
    %230 = arith.addf %157, %229 : vector<2x128xf32>
    %c5_i32_38 = arith.constant 5 : i32
    %231 = arith.muli %arg0, %c5_i32_38 : i32
    %c3_i32_39 = arith.constant 3 : i32
    %232 = arith.addi %231, %c3_i32_39 : i32
    %c9_i32_40 = arith.constant 9 : i32
    %233 = arith.muli %232, %c9_i32_40 : i32
    %234 = arith.index_cast %233 : i32 to index
    %235 = memref.load %arg2[%234] : memref<180xf32, #tpu.memory_space<smem>>
    %236 = vector.broadcast %235 : f32 to vector<2x726xf32>
    %237 = arith.mulf %4, %236 : vector<2x726xf32>
    %c1_i32_41 = arith.constant 1 : i32
    %238 = arith.addi %233, %c1_i32_41 : i32
    %239 = arith.index_cast %238 : i32 to index
    %240 = memref.load %arg2[%239] : memref<180xf32, #tpu.memory_space<smem>>
    %241 = vector.broadcast %240 : f32 to vector<2x726xf32>
    %242 = arith.mulf %5, %241 : vector<2x726xf32>
    %243 = arith.addf %237, %242 : vector<2x726xf32>
    %c2_i32_42 = arith.constant 2 : i32
    %244 = arith.addi %233, %c2_i32_42 : i32
    %245 = arith.index_cast %244 : i32 to index
    %246 = memref.load %arg2[%245] : memref<180xf32, #tpu.memory_space<smem>>
    %247 = vector.broadcast %246 : f32 to vector<2x726xf32>
    %248 = arith.mulf %6, %247 : vector<2x726xf32>
    %249 = arith.addf %243, %248 : vector<2x726xf32>
    %c3_i32_43 = arith.constant 3 : i32
    %250 = arith.addi %233, %c3_i32_43 : i32
    %251 = arith.index_cast %250 : i32 to index
    %252 = memref.load %arg2[%251] : memref<180xf32, #tpu.memory_space<smem>>
    %253 = vector.broadcast %252 : f32 to vector<2x726xf32>
    %254 = arith.mulf %7, %253 : vector<2x726xf32>
    %255 = arith.addf %249, %254 : vector<2x726xf32>
    %c4_i32_44 = arith.constant 4 : i32
    %256 = arith.addi %233, %c4_i32_44 : i32
    %257 = arith.index_cast %256 : i32 to index
    %258 = memref.load %arg2[%257] : memref<180xf32, #tpu.memory_space<smem>>
    %259 = vector.broadcast %258 : f32 to vector<2x726xf32>
    %260 = arith.mulf %8, %259 : vector<2x726xf32>
    %261 = arith.addf %255, %260 : vector<2x726xf32>
    %c5_i32_45 = arith.constant 5 : i32
    %262 = arith.addi %233, %c5_i32_45 : i32
    %263 = arith.index_cast %262 : i32 to index
    %264 = memref.load %arg2[%263] : memref<180xf32, #tpu.memory_space<smem>>
    %265 = vector.broadcast %264 : f32 to vector<2x726xf32>
    %266 = arith.mulf %9, %265 : vector<2x726xf32>
    %267 = arith.addf %261, %266 : vector<2x726xf32>
    %c6_i32_46 = arith.constant 6 : i32
    %268 = arith.addi %233, %c6_i32_46 : i32
    %269 = arith.index_cast %268 : i32 to index
    %270 = memref.load %arg2[%269] : memref<180xf32, #tpu.memory_space<smem>>
    %271 = vector.broadcast %270 : f32 to vector<2x726xf32>
    %272 = arith.mulf %10, %271 : vector<2x726xf32>
    %273 = arith.addf %267, %272 : vector<2x726xf32>
    %c7_i32_47 = arith.constant 7 : i32
    %274 = arith.addi %233, %c7_i32_47 : i32
    %275 = arith.index_cast %274 : i32 to index
    %276 = memref.load %arg2[%275] : memref<180xf32, #tpu.memory_space<smem>>
    %277 = vector.broadcast %276 : f32 to vector<2x726xf32>
    %278 = arith.mulf %11, %277 : vector<2x726xf32>
    %279 = arith.addf %273, %278 : vector<2x726xf32>
    %c8_i32_48 = arith.constant 8 : i32
    %280 = arith.addi %233, %c8_i32_48 : i32
    %281 = arith.index_cast %280 : i32 to index
    %282 = memref.load %arg2[%281] : memref<180xf32, #tpu.memory_space<smem>>
    %283 = vector.broadcast %282 : f32 to vector<2x726xf32>
    %284 = arith.mulf %12, %283 : vector<2x726xf32>
    %285 = arith.addf %279, %284 : vector<2x726xf32>
    %286 = arith.index_cast %232 : i32 to index
    %287 = memref.load %arg3[%286] : memref<20xf32, #tpu.memory_space<smem>>
    %288 = vector.broadcast %287 : f32 to vector<2x726xf32>
    %289 = arith.addf %285, %288 : vector<2x726xf32>
    %290 = vector.extract_strided_slice %289 {offsets = [0, 0], sizes = [2, 697], strides = [1, 1]} : vector<2x726xf32> to vector<2x697xf32>
    %291 = vector.extract_strided_slice %289 {offsets = [0, 1], sizes = [2, 697], strides = [1, 1]} : vector<2x726xf32> to vector<2x697xf32>
    %292 = arith.maximumf %290, %291 : vector<2x697xf32>
    %293 = vector.extract_strided_slice %289 {offsets = [0, 28], sizes = [2, 697], strides = [1, 1]} : vector<2x726xf32> to vector<2x697xf32>
    %294 = vector.extract_strided_slice %289 {offsets = [0, 29], sizes = [2, 697], strides = [1, 1]} : vector<2x726xf32> to vector<2x697xf32>
    %295 = arith.maximumf %293, %294 : vector<2x697xf32>
    %296 = arith.maximumf %292, %295 : vector<2x697xf32>
    %cst_49 = arith.constant 0.000000e+00 : f32
    %297 = vector.broadcast %cst_49 : f32 to vector<2x697xf32>
    %298 = arith.maximumf %296, %297 : vector<2x697xf32>
    %299 = arith.truncf %298 : vector<2x697xf32> to vector<2x697xbf16>
    %c3 = arith.constant 3 : index
    %c0_50 = arith.constant 0 : index
    %c0_51 = arith.constant 0 : index
    %300 = vector.load %arg4[%c3, %c0_50, %c0_51] : memref<5x697x128xbf16, #tpu.memory_space<vmem>>, vector<1x697x128xbf16>
    %301 = vector.shape_cast %300 : vector<1x697x128xbf16> to vector<697x128xbf16>
    %cst_52 = arith.constant dense<0.000000e+00> : vector<2x128xf32>
    %302 = tpu.matmul %299, %301, %cst_52 {dimension_numbers = #tpu.dot_dimension_numbers<[1], [0], [0], [1], [0, 0, 1, 1], [], []>} : vector<2x697xbf16>, vector<697x128xbf16>, vector<2x128xf32> -> vector<2x128xf32>
    %303 = arith.addf %230, %302 : vector<2x128xf32>
    %c5_i32_53 = arith.constant 5 : i32
    %304 = arith.muli %arg0, %c5_i32_53 : i32
    %c4_i32_54 = arith.constant 4 : i32
    %305 = arith.addi %304, %c4_i32_54 : i32
    %c9_i32_55 = arith.constant 9 : i32
    %306 = arith.muli %305, %c9_i32_55 : i32
    %307 = arith.index_cast %306 : i32 to index
    %308 = memref.load %arg2[%307] : memref<180xf32, #tpu.memory_space<smem>>
    %309 = vector.broadcast %308 : f32 to vector<2x726xf32>
    %310 = arith.mulf %4, %309 : vector<2x726xf32>
    %c1_i32_56 = arith.constant 1 : i32
    %311 = arith.addi %306, %c1_i32_56 : i32
    %312 = arith.index_cast %311 : i32 to index
    %313 = memref.load %arg2[%312] : memref<180xf32, #tpu.memory_space<smem>>
    %314 = vector.broadcast %313 : f32 to vector<2x726xf32>
    %315 = arith.mulf %5, %314 : vector<2x726xf32>
    %316 = arith.addf %310, %315 : vector<2x726xf32>
    %c2_i32_57 = arith.constant 2 : i32
    %317 = arith.addi %306, %c2_i32_57 : i32
    %318 = arith.index_cast %317 : i32 to index
    %319 = memref.load %arg2[%318] : memref<180xf32, #tpu.memory_space<smem>>
    %320 = vector.broadcast %319 : f32 to vector<2x726xf32>
    %321 = arith.mulf %6, %320 : vector<2x726xf32>
    %322 = arith.addf %316, %321 : vector<2x726xf32>
    %c3_i32_58 = arith.constant 3 : i32
    %323 = arith.addi %306, %c3_i32_58 : i32
    %324 = arith.index_cast %323 : i32 to index
    %325 = memref.load %arg2[%324] : memref<180xf32, #tpu.memory_space<smem>>
    %326 = vector.broadcast %325 : f32 to vector<2x726xf32>
    %327 = arith.mulf %7, %326 : vector<2x726xf32>
    %328 = arith.addf %322, %327 : vector<2x726xf32>
    %c4_i32_59 = arith.constant 4 : i32
    %329 = arith.addi %306, %c4_i32_59 : i32
    %330 = arith.index_cast %329 : i32 to index
    %331 = memref.load %arg2[%330] : memref<180xf32, #tpu.memory_space<smem>>
    %332 = vector.broadcast %331 : f32 to vector<2x726xf32>
    %333 = arith.mulf %8, %332 : vector<2x726xf32>
    %334 = arith.addf %328, %333 : vector<2x726xf32>
    %c5_i32_60 = arith.constant 5 : i32
    %335 = arith.addi %306, %c5_i32_60 : i32
    %336 = arith.index_cast %335 : i32 to index
    %337 = memref.load %arg2[%336] : memref<180xf32, #tpu.memory_space<smem>>
    %338 = vector.broadcast %337 : f32 to vector<2x726xf32>
    %339 = arith.mulf %9, %338 : vector<2x726xf32>
    %340 = arith.addf %334, %339 : vector<2x726xf32>
    %c6_i32_61 = arith.constant 6 : i32
    %341 = arith.addi %306, %c6_i32_61 : i32
    %342 = arith.index_cast %341 : i32 to index
    %343 = memref.load %arg2[%342] : memref<180xf32, #tpu.memory_space<smem>>
    %344 = vector.broadcast %343 : f32 to vector<2x726xf32>
    %345 = arith.mulf %10, %344 : vector<2x726xf32>
    %346 = arith.addf %340, %345 : vector<2x726xf32>
    %c7_i32_62 = arith.constant 7 : i32
    %347 = arith.addi %306, %c7_i32_62 : i32
    %348 = arith.index_cast %347 : i32 to index
    %349 = memref.load %arg2[%348] : memref<180xf32, #tpu.memory_space<smem>>
    %350 = vector.broadcast %349 : f32 to vector<2x726xf32>
    %351 = arith.mulf %11, %350 : vector<2x726xf32>
    %352 = arith.addf %346, %351 : vector<2x726xf32>
    %c8_i32_63 = arith.constant 8 : i32
    %353 = arith.addi %306, %c8_i32_63 : i32
    %354 = arith.index_cast %353 : i32 to index
    %355 = memref.load %arg2[%354] : memref<180xf32, #tpu.memory_space<smem>>
    %356 = vector.broadcast %355 : f32 to vector<2x726xf32>
    %357 = arith.mulf %12, %356 : vector<2x726xf32>
    %358 = arith.addf %352, %357 : vector<2x726xf32>
    %359 = arith.index_cast %305 : i32 to index
    %360 = memref.load %arg3[%359] : memref<20xf32, #tpu.memory_space<smem>>
    %361 = vector.broadcast %360 : f32 to vector<2x726xf32>
    %362 = arith.addf %358, %361 : vector<2x726xf32>
    %363 = vector.extract_strided_slice %362 {offsets = [0, 0], sizes = [2, 697], strides = [1, 1]} : vector<2x726xf32> to vector<2x697xf32>
    %364 = vector.extract_strided_slice %362 {offsets = [0, 1], sizes = [2, 697], strides = [1, 1]} : vector<2x726xf32> to vector<2x697xf32>
    %365 = arith.maximumf %363, %364 : vector<2x697xf32>
    %366 = vector.extract_strided_slice %362 {offsets = [0, 28], sizes = [2, 697], strides = [1, 1]} : vector<2x726xf32> to vector<2x697xf32>
    %367 = vector.extract_strided_slice %362 {offsets = [0, 29], sizes = [2, 697], strides = [1, 1]} : vector<2x726xf32> to vector<2x697xf32>
    %368 = arith.maximumf %366, %367 : vector<2x697xf32>
    %369 = arith.maximumf %365, %368 : vector<2x697xf32>
    %cst_64 = arith.constant 0.000000e+00 : f32
    %370 = vector.broadcast %cst_64 : f32 to vector<2x697xf32>
    %371 = arith.maximumf %369, %370 : vector<2x697xf32>
    %372 = arith.truncf %371 : vector<2x697xf32> to vector<2x697xbf16>
    %c4 = arith.constant 4 : index
    %c0_65 = arith.constant 0 : index
    %c0_66 = arith.constant 0 : index
    %373 = vector.load %arg4[%c4, %c0_65, %c0_66] : memref<5x697x128xbf16, #tpu.memory_space<vmem>>, vector<1x697x128xbf16>
    %374 = vector.shape_cast %373 : vector<1x697x128xbf16> to vector<697x128xbf16>
    %cst_67 = arith.constant dense<0.000000e+00> : vector<2x128xf32>
    %375 = tpu.matmul %372, %374, %cst_67 {dimension_numbers = #tpu.dot_dimension_numbers<[1], [0], [0], [1], [0, 0, 1, 1], [], []>} : vector<2x697xbf16>, vector<697x128xbf16>, vector<2x128xf32> -> vector<2x128xf32>
    %376 = arith.addf %303, %375 : vector<2x128xf32>
    %c0_68 = arith.constant 0 : index
    %c0_69 = arith.constant 0 : index
    %377 = vector.load %arg9[%c0_68, %c0_69] : memref<2x128xf32, #tpu.memory_space<vmem>>, vector<2x128xf32>
    %378 = arith.addf %377, %376 : vector<2x128xf32>
    %c0_70 = arith.constant 0 : index
    %c0_71 = arith.constant 0 : index
    %379 = vector.load %arg9[%c0_70, %c0_71] : memref<2x128xf32, #tpu.memory_space<vmem>>, vector<2x128xf32>
    tpu.vector_store %arg9[%c0_70, %c0_71], %378 {strides = array<i32>} : memref<2x128xf32, #tpu.memory_space<vmem>>, vector<2x128xf32>,
    %c3_i32_72 = arith.constant 3 : i32
    %380 = arith.cmpi eq, %arg0, %c3_i32_72 : i32
    %381 = arith.extui %380 : i1 to i32
    %c0_i32_73 = arith.constant 0 : i32
    %382 = arith.cmpi ne, %381, %c0_i32_73 : i32
    scf.if %382 {
      %c0_74 = arith.constant 0 : index
      %c0_75 = arith.constant 0 : index
      %383 = vector.load %arg9[%c0_74, %c0_75] : memref<2x128xf32, #tpu.memory_space<vmem>>, vector<2x128xf32>
      %c0_76 = arith.constant 0 : index
      %c0_77 = arith.constant 0 : index
      %384 = vector.load %arg5[%c0_76, %c0_77] : memref<1x128xf32, #tpu.memory_space<vmem>>, vector<1x128xf32>
      %385 = vector.broadcast %384 : vector<1x128xf32> to vector<2x128xf32>
      %386 = arith.addf %383, %385 : vector<2x128xf32>
      %cst_78 = arith.constant 0.000000e+00 : f32
      %387 = vector.broadcast %cst_78 : f32 to vector<2x128xf32>
      %388 = arith.maximumf %386, %387 : vector<2x128xf32>
      %c0_79 = arith.constant 0 : index
      %c0_80 = arith.constant 0 : index
      %389 = vector.load %arg6[%c0_79, %c0_80] : memref<128x128xf32, #tpu.memory_space<vmem>>, vector<128x128xf32>
      %cst_81 = arith.constant dense<0.000000e+00> : vector<2x128xf32>
      %390 = tpu.matmul %388, %389, %cst_81 {dimension_numbers = #tpu.dot_dimension_numbers<[1], [0], [0], [1], [0, 0, 1, 1], [], []>} : vector<2x128xf32>, vector<128x128xf32>, vector<2x128xf32> -> vector<2x128xf32>
      %c0_82 = arith.constant 0 : index
      %c0_83 = arith.constant 0 : index
      %391 = vector.load %arg7[%c0_82, %c0_83] : memref<1x128xf32, #tpu.memory_space<vmem>>, vector<1x128xf32>
      %392 = vector.broadcast %391 : vector<1x128xf32> to vector<2x128xf32>
      %393 = arith.addf %390, %392 : vector<2x128xf32>
      %cst_84 = arith.constant dense<0xFF800000> : vector<2xf32>
      %394 = vector.multi_reduction <maximumf>, %393, %cst_84 [1] : vector<2x128xf32> to vector<2xf32>
      %395 = vector.shape_cast %394 : vector<2xf32> to vector<2x1xf32>
      %396 = vector.broadcast %395 : vector<2x1xf32> to vector<2x128xf32>
      %397 = arith.subf %393, %396 : vector<2x128xf32>
      %398 = math.exp %397 : vector<2x128xf32>
      %cst_85 = arith.constant dense<0.000000e+00> : vector<2xf32>
      %399 = vector.multi_reduction <add>, %398, %cst_85 [1] : vector<2x128xf32> to vector<2xf32>
      %400 = vector.shape_cast %399 : vector<2xf32> to vector<2x1xf32>
      %401 = math.log %400 : vector<2x1xf32>
      %402 = vector.broadcast %401 : vector<2x1xf32> to vector<2x128xf32>
      %403 = arith.subf %397, %402 : vector<2x128xf32>
      %c0_86 = arith.constant 0 : index
      %c0_87 = arith.constant 0 : index
      %404 = vector.load %arg8[%c0_86, %c0_87] : memref<2x128xf32, #tpu.memory_space<vmem>>, vector<2x128xf32>
      tpu.vector_store %arg8[%c0_86, %c0_87], %403 {strides = array<i32>} : memref<2x128xf32, #tpu.memory_space<vmem>>, vector<2x128xf32>,
    } else {
    }
    return
  }
  func.func @transform_0(%arg0: i32) -> (i32, i32) {
    %c0_i32 = arith.constant 0 : i32
    %c0_i32_0 = arith.constant 0 : i32
    %c0_i32_1 = arith.constant 0 : i32
    return %c0_i32, %c0_i32_0 : i32, i32
  }
  func.func @transform_1(%arg0: i32) -> i32 {
    %c0_i32 = arith.constant 0 : i32
    %c0_i32_0 = arith.constant 0 : i32
    return %c0_i32 : i32
  }
  func.func @transform_2(%arg0: i32) -> i32 {
    %c0_i32 = arith.constant 0 : i32
    %c0_i32_0 = arith.constant 0 : i32
    return %c0_i32 : i32
  }
  func.func @transform_3(%arg0: i32) -> (i32, i32, i32) {
    %c0_i32 = arith.constant 0 : i32
    %c0_i32_0 = arith.constant 0 : i32
    %c0_i32_1 = arith.constant 0 : i32
    return %arg0, %c0_i32, %c0_i32_0 : i32, i32, i32
  }
  func.func @transform_4(%arg0: i32) -> (i32, i32) {
    %c0_i32 = arith.constant 0 : i32
    %c0_i32_0 = arith.constant 0 : i32
    %c0_i32_1 = arith.constant 0 : i32
    return %c0_i32, %c0_i32_0 : i32, i32
  }
  func.func @transform_5(%arg0: i32) -> (i32, i32) {
    %c0_i32 = arith.constant 0 : i32
    %c0_i32_0 = arith.constant 0 : i32
    %c0_i32_1 = arith.constant 0 : i32
    return %c0_i32, %c0_i32_0 : i32, i32
  }
  func.func @transform_6(%arg0: i32) -> (i32, i32) {
    %c0_i32 = arith.constant 0 : i32
    %c0_i32_0 = arith.constant 0 : i32
    %c0_i32_1 = arith.constant 0 : i32
    return %c0_i32, %c0_i32_0 : i32, i32
  }
  func.func @transform_7(%arg0: i32) -> (i32, i32) {
    %c0_i32 = arith.constant 0 : i32
    %c0_i32_0 = arith.constant 0 : i32
    %c0_i32_1 = arith.constant 0 : i32
    return %c0_i32, %c0_i32_0 : i32, i32
  }
}

</mosaic_0001>

<llo_original>
// kernel: cnn_forward.1
$region0: #{cnn_forward.1}
  #allocation0 [shape = 'u32[]', space=smem, size = 0x4, offset = 0x4, fixed_abs, tag = 'smem constant byte address 0x4 - core index']
  #allocation1 [shape = 'u32[144,128]{1,0:T(1,128)}', space=vmem, size = 0x12000, scoped, tag = 'internal scratch']
  #allocation2 [shape = 'f32[2,128]{1,0:T(2,128)}', space=vmem, size = 0x400, scoped, tag = 'scratch operand']
  %s0 = inlined_call_operand.vmem [shape: f32[2,784], index: 0, kind: input, shape index: {}]
  %s1 = inlined_call_operand.hbm [shape: f32[180], index: 1, kind: input, shape index: {}]
  %s2 = inlined_call_operand.hbm [shape: f32[20], index: 2, kind: input, shape index: {}]
  %s3 = inlined_call_operand.hbm [shape: bf16[20,697,128], index: 3, kind: input, shape index: {}]
  %s4 = inlined_call_operand.hbm [shape: f32[1,128], index: 4, kind: input, shape index: {}]
  %s5 = inlined_call_operand.hbm [shape: f32[128,128], index: 5, kind: input, shape index: {}]
  %s6 = inlined_call_operand.hbm [shape: f32[1,128], index: 6, kind: input, shape index: {}]
  %s7 = inlined_call_operand.hbm [shape: f32[2,128], index: 7, kind: output, shape index: {}]
  %s8 = sld [smem:[#allocation0]]
  $region93: #{cnn_forward.1} parent=0
    _
  %s10 = ssub.s32 1, %s8
  %s11 = scalar_select 0, %s10, %s8
  $region1: #{cnn_forward.1} parent=0
    #allocation3 [shape = 'u8[1024]{0}', space=smem, size = 0x400, scoped, tag = 'input window, operand 1, single buffered']
    #allocation4 [shape = 's32[2]{0}', space=sflag, size = 0x8, scoped, tag = 'scoped memory for cnn_forward.1']
    #allocation5 [shape = 's32[2]{0}', space=sflag, size = 0x8, scoped, tag = 'scoped memory for cnn_forward.1']
    #allocation6 [shape = 's32[2]{0}', space=sflag, size = 0x8, scoped, tag = 'scoped memory for cnn_forward.1']
    #allocation7 [shape = 'u8[512]{0}', space=smem, size = 0x200, scoped, tag = 'input window, operand 2, single buffered']
    #allocation8 [shape = 's32[1]{0}', space=sflag, size = 0x4, scoped, tag = 'scoped memory for cnn_forward.1']
    #allocation9 [shape = 'u8[1802240]{0}', space=vmem, size = 0x1b8000, scoped, tag = 'input window, operand 3']
    #allocation10 [shape = 'u8[512]{0}', space=vmem, size = 0x400, scoped, tag = 'input window, operand 4, single buffered']
    #allocation11 [shape = 's32[1]{0}', space=sflag, size = 0x4, scoped, tag = 'scoped memory for cnn_forward.1']
    #allocation12 [shape = 'u8[65536]{0}', space=vmem, size = 0x10000, scoped, tag = 'input window, operand 5, single buffered']
    #allocation13 [shape = 'u8[512]{0}', space=vmem, size = 0x400, scoped, tag = 'input window, operand 6, single buffered']
    #allocation14 [shape = 's32[1]{0}', space=sflag, size = 0x4, scoped, tag = 'scoped memory for cnn_forward.1']
    #allocation15 [shape = 'u8[1024]{0}', space=vmem, size = 0x400, scoped, tag = 'output window, operand 0, single buffered']
    %12 = vsyncpa [#allocation6], 0
    %13 = vsyncpa [#allocation8], 0
    %14 = vsyncpa [#allocation4], 0
    %s15 = scalar_lea.sflag [#allocation4], 1
    %16 = vsyncpa %s15, 0
    %17 = vsyncpa [#allocation11], 0
    %18 = vsyncpa [#allocation14], 0
    %19 = vsyncpa [#allocation5], 0
    loop: start=0, step=1, limit=6
    $region2: #{cnn_forward.1} parent=1 // loop_pre_header
      _
    $region3: #{cnn_forward.1} parent=1 // loop_header
      %s21 = sphi 0, %s25
      %p22 = scmp.ge.s32.totalorder %s21, 6
      %s29 = sphi 0, %s29
      %s31 = sphi 0, %s29
      %s32 = sphi 0, %s31
      %s46 = sphi 0, %s32
      %s50 = sphi 0, %s50
      %s52 = sphi 0, %s50
      %s53 = sphi 0, %s52
      %s67 = sphi 0, %s53
      %s71 = sphi 0, %s71
      %s73 = sphi 0, %s71
      %s74 = sphi 0, %s73
      %s88 = sphi 0, %s74
      %s94 = sphi 0, %s96
      %s97 = sphi 0, %s94
      %s98 = sphi 0, %s97
      %s114 = sphi 0, %s98
      %s118 = sphi 0, %s118
      %s120 = sphi 0, %s118
      %s121 = sphi 0, %s120
      %s135 = sphi 0, %s121
      %s139 = sphi 0, %s139
      %s141 = sphi 0, %s139
      %s142 = sphi 0, %s141
      %s156 = sphi 0, %s142
      %s160 = sphi 0, %s160
      %s162 = sphi 0, %s160
      %s163 = sphi 0, %s162
      %s177 = sphi 0, %s163
      %s181 = sphi 0, %s181
      %s183 = sphi 0, %s181
      %s184 = sphi 0, %s183
      %s198 = sphi 0, %s184
    $region4: #{cnn_forward.1} parent=1 // loop_header_branch
      %24 = sbr.rel (%p22) target = $region8
    $region5: #{cnn_forward.1} parent=1 // loop_body
      %s26 = ssub.s32 %s21, 1
      %s27 = ssub.s32 %s21, 2
      %s28 = sadd.s32 %s21, 1
      %s30 = sadd.s32 %s29, 1
      %p33 = scmp.eq.s32.totalorder %s21, 3
      %p34 = scmp.ne.s32.totalorder %s29, %s31
      %p35 = scmp.eq.s32.totalorder %s21, 0
      %p36 = por %p34, %p35
      %p37 = scmp.ne.s32.totalorder %s29, %s31
      %p38 = scmp.eq.s32.totalorder %s26, 3
      %p39 = por %p37, %p38
      %p40 = scmp.ne.s32.totalorder %s31, %s32
      %p41 = scmp.eq.s32.totalorder %s26, 0
      %p42 = por %p40, %p41
      %p43 = scmp.ne.s32.totalorder %s31, %s32
      %p44 = scmp.eq.s32.totalorder %s27, 3
      %p45 = por %p43, %p44
      %p47 = scmp.ne.s32.totalorder %s32, %s46
      %p48 = scmp.eq.s32.totalorder %s27, 0
      %p49 = por %p47, %p48
      %s51 = sadd.s32 %s50, 1
      %p54 = scmp.eq.s32.totalorder %s21, 3
      %p55 = scmp.ne.s32.totalorder %s50, %s52
      %p56 = scmp.eq.s32.totalorder %s21, 0
      %p57 = por %p55, %p56
      %p58 = scmp.ne.s32.totalorder %s50, %s52
      %p59 = scmp.eq.s32.totalorder %s26, 3
      %p60 = por %p58, %p59
      %p61 = scmp.ne.s32.totalorder %s52, %s53
      %p62 = scmp.eq.s32.totalorder %s26, 0
      %p63 = por %p61, %p62
      %p64 = scmp.ne.s32.totalorder %s52, %s53
      %p65 = scmp.eq.s32.totalorder %s27, 3
      %p66 = por %p64, %p65
      %p68 = scmp.ne.s32.totalorder %s53, %s67
      %p69 = scmp.eq.s32.totalorder %s27, 0
      %p70 = por %p68, %p69
      %s72 = sadd.s32 %s71, 1
      %p75 = scmp.eq.s32.totalorder %s21, 3
      %p76 = scmp.ne.s32.totalorder %s71, %s73
      %p77 = scmp.eq.s32.totalorder %s21, 0
      %p78 = por %p76, %p77
      %p79 = scmp.ne.s32.totalorder %s71, %s73
      %p80 = scmp.eq.s32.totalorder %s26, 3
      %p81 = por %p79, %p80
      %p82 = scmp.ne.s32.totalorder %s73, %s74
      %p83 = scmp.eq.s32.totalorder %s26, 0
      %p84 = por %p82, %p83
      %p85 = scmp.ne.s32.totalorder %s73, %s74
      %p86 = scmp.eq.s32.totalorder %s27, 3
      %p87 = por %p85, %p86
      %p89 = scmp.ne.s32.totalorder %s74, %s88
      %p90 = scmp.eq.s32.totalorder %s27, 0
      %p91 = por %p89, %p90
      %s92 = ssub.s32 %s21, %s28
      %p93 = scmp.eq.s32.totalorder %s92, 0
      %s95 = sadd.s32 %s94, 1
      %s96 = scalar_select %p93, %s94, %s95
      %p99 = pneg %p93
      %p100 = scmp.eq.s32.totalorder %s21, 3
      %p101 = por %p99, %p100
      %p102 = scmp.ne.s32.totalorder %s94, %s97
      %p103 = scmp.eq.s32.totalorder %s21, 0
      %p104 = por %p102, %p103
      %p105 = scmp.ne.s32.totalorder %s94, %s97
      %p106 = scmp.eq.s32.totalorder %s26, 3
      %p107 = por %p105, %p106
      %p108 = scmp.ne.s32.totalorder %s97, %s98
      %p109 = scmp.eq.s32.totalorder %s26, 0
      %p110 = por %p108, %p109
      %p111 = scmp.ne.s32.totalorder %s97, %s98
      %p112 = scmp.eq.s32.totalorder %s27, 3
      %p113 = por %p111, %p112
      %p115 = scmp.ne.s32.totalorder %s98, %s114
      %p116 = scmp.eq.s32.totalorder %s27, 0
      %p117 = por %p115, %p116
      %s119 = sadd.s32 %s118, 1
      %p122 = scmp.eq.s32.totalorder %s21, 3
      %p123 = scmp.ne.s32.totalorder %s118, %s120
      %p124 = scmp.eq.s32.totalorder %s21, 0
      %p125 = por %p123, %p124
      %p126 = scmp.ne.s32.totalorder %s118, %s120
      %p127 = scmp.eq.s32.totalorder %s26, 3
      %p128 = por %p126, %p127
      %p129 = scmp.ne.s32.totalorder %s120, %s121
      %p130 = scmp.eq.s32.totalorder %s26, 0
      %p131 = por %p129, %p130
      %p132 = scmp.ne.s32.totalorder %s120, %s121
      %p133 = scmp.eq.s32.totalorder %s27, 3
      %p134 = por %p132, %p133
      %p136 = scmp.ne.s32.totalorder %s121, %s135
      %p137 = scmp.eq.s32.totalorder %s27, 0
      %p138 = por %p136, %p137
      %s140 = sadd.s32 %s139, 1
      %p143 = scmp.eq.s32.totalorder %s21, 3
      %p144 = scmp.ne.s32.totalorder %s139, %s141
      %p145 = scmp.eq.s32.totalorder %s21, 0
      %p146 = por %p144, %p145
      %p147 = scmp.ne.s32.totalorder %s139, %s141
      %p148 = scmp.eq.s32.totalorder %s26, 3
      %p149 = por %p147, %p148
      %p150 = scmp.ne.s32.totalorder %s141, %s142
      %p151 = scmp.eq.s32.totalorder %s26, 0
      %p152 = por %p150, %p151
      %p153 = scmp.ne.s32.totalorder %s141, %s142
      %p154 = scmp.eq.s32.totalorder %s27, 3
      %p155 = por %p153, %p154
      %p157 = scmp.ne.s32.totalorder %s142, %s156
      %p158 = scmp.eq.s32.totalorder %s27, 0
      %p159 = por %p157, %p158
      %s161 = sadd.s32 %s160, 1
      %p164 = scmp.eq.s32.totalorder %s21, 3
      %p165 = scmp.ne.s32.totalorder %s160, %s162
      %p166 = scmp.eq.s32.totalorder %s21, 0
      %p167 = por %p165, %p166
      %p168 = scmp.ne.s32.totalorder %s160, %s162
      %p169 = scmp.eq.s32.totalorder %s26, 3
      %p170 = por %p168, %p169
      %p171 = scmp.ne.s32.totalorder %s162, %s163
      %p172 = scmp.eq.s32.totalorder %s26, 0
      %p173 = por %p171, %p172
      %p174 = scmp.ne.s32.totalorder %s162, %s163
      %p175 = scmp.eq.s32.totalorder %s27, 3
      %p176 = por %p174, %p175
      %p178 = scmp.ne.s32.totalorder %s163, %s177
      %p179 = scmp.eq.s32.totalorder %s27, 0
      %p180 = por %p178, %p179
      %s182 = sadd.s32 %s181, 1
      %p185 = scmp.eq.s32.totalorder %s21, 3
      %p186 = scmp.ne.s32.totalorder %s181, %s183
      %p187 = scmp.eq.s32.totalorder %s21, 0
      %p188 = por %p186, %p187
      %p189 = scmp.ne.s32.totalorder %s181, %s183
      %p190 = scmp.eq.s32.totalorder %s26, 3
      %p191 = por %p189, %p190
      %p192 = scmp.ne.s32.totalorder %s183, %s184
      %p193 = scmp.eq.s32.totalorder %s26, 0
      %p194 = por %p192, %p193
      %p195 = scmp.ne.s32.totalorder %s183, %s184
      %p196 = scmp.eq.s32.totalorder %s27, 3
      %p197 = por %p195, %p196
      %p199 = scmp.ne.s32.totalorder %s184, %s198
      %p200 = scmp.eq.s32.totalorder %s27, 0
      %p201 = por %p199, %p200
      %p202 = scmp.le.s32.totalorder 1, %s21
      %p203 = scmp.lt.s32.totalorder %s21, 5
      %p204 = pnand %p202, %p203
      %p205 = pneg %p204
      // Predicated region
      $region9: #{cnn_forward.1} parent=5 // pred_check
        _
      $region10: #{cnn_forward.1} parent=5 // pred_check_branch
        %207 = sbr.rel (%p204) target = $region12
      $region11: #{cnn_forward.1} parent=5 // pred_region
        %s208 = ssub.s32 %s21, 1
        // Predicated region
        $region13: #{cnn_forward.1} parent=11 // pred_check
          %p209 = pneg %p42
        $region14: #{cnn_forward.1} parent=11 // pred_check_branch
          %211 = sbr.rel (%p209) target = $region16
        $region15: #{cnn_forward.1} parent=11 // pred_region
          _
        $region16: #{cnn_forward.1} parent=11 // pred_fallthru
          _
        // Predicated region
        $region17: #{cnn_forward.1} parent=11 // pred_check
          %p212 = pneg %p63
        $region18: #{cnn_forward.1} parent=11 // pred_check_branch
          %214 = sbr.rel (%p212) target = $region20
        $region19: #{cnn_forward.1} parent=11 // pred_region
          %s216 = ssub.s32 32, 32
          %217 = vsyncadd [#allocation6], %s216
          %220 = dma.hbm_to_smem %s1, 32, [#allocation3], [#allocation6]
        $region20: #{cnn_forward.1} parent=11 // pred_fallthru
          _
        // Predicated region
        $region21: #{cnn_forward.1} parent=11 // pred_check
          %p221 = pneg %p84
        $region22: #{cnn_forward.1} parent=11 // pred_check_branch
          %223 = sbr.rel (%p221) target = $region24
        $region23: #{cnn_forward.1} parent=11 // pred_region
          %s225 = ssub.s32 16, 16
          %226 = vsyncadd [#allocation8], %s225
          %229 = dma.hbm_to_smem %s2, 16, [#allocation7], [#allocation8]
        $region24: #{cnn_forward.1} parent=11 // pred_fallthru
          _
        // Predicated region
        $region25: #{cnn_forward.1} parent=11 // pred_check
          %p230 = pneg %p131
        $region26: #{cnn_forward.1} parent=11 // pred_check_branch
          %232 = sbr.rel (%p230) target = $region28
        $region27: #{cnn_forward.1} parent=11 // pred_region
          %s234 = ssub.s32 16, 16
          %235 = vsyncadd [#allocation11], %s234
          %s237 = sshll.u32 [#allocation10], 4
          %s238 = int_to_ptr.vmem [resolvable:$true] %s237
          %240 = dma.hbm_to_vmem [thread:$0]  %s4, 16, %s238, [#allocation11]
        $region28: #{cnn_forward.1} parent=11 // pred_fallthru
          _
        // Predicated region
        $region29: #{cnn_forward.1} parent=11 // pred_check
          %p241 = pneg %p152
        $region30: #{cnn_forward.1} parent=11 // pred_check_branch
          %243 = sbr.rel (%p241) target = $region32
        $region31: #{cnn_forward.1} parent=11 // pred_region
          %s245 = ssub.s32 2048, 2048
          %246 = vsyncadd [#allocation11], %s245
          %s247 = sshll.u32 [#allocation12], 4
          %s248 = int_to_ptr.vmem [resolvable:$true] %s247
          %253 = dma.hbm_to_vmem [thread:$0]  %s5, 2048, %s248, [#allocation11], 128, 128, 8
        $region32: #{cnn_forward.1} parent=11 // pred_fallthru
          _
        // Predicated region
        $region33: #{cnn_forward.1} parent=11 // pred_check
          %p254 = pneg %p173
        $region34: #{cnn_forward.1} parent=11 // pred_check_branch
          %256 = sbr.rel (%p254) target = $region36
        $region35: #{cnn_forward.1} parent=11 // pred_region
          %s258 = ssub.s32 16, 16
          %259 = vsyncadd [#allocation14], %s258
          %s261 = sshll.u32 [#allocation13], 4
          %s262 = int_to_ptr.vmem [resolvable:$true] %s261
          %264 = dma.hbm_to_vmem [thread:$0]  %s6, 16, %s262, [#allocation14]
        $region36: #{cnn_forward.1} parent=11 // pred_fallthru
          _
      $region12: #{cnn_forward.1} parent=5 // pred_fallthru
        _
      %p265 = scmp.lt.s32.totalorder %s21, 4
      // Predicated region
      $region37: #{cnn_forward.1} parent=5 // pred_check
        %p266 = pneg %p265
      $region38: #{cnn_forward.1} parent=5 // pred_check_branch
        %268 = sbr.rel (%p266) target = $region40
      $region39: #{cnn_forward.1} parent=5 // pred_region
        // Predicated region
        $region41: #{cnn_forward.1} parent=39 // pred_check
          %p269 = pneg %p104
        $region42: #{cnn_forward.1} parent=39 // pred_check_branch
          %271 = sbr.rel (%p269) target = $region44
        $region43: #{cnn_forward.1} parent=39 // pred_region
          %s272 = sand.u32 %s94, 1
          %s273 = scalar_lea.sflag [#allocation4], %s272
          %s274 = sand.u32 %s94, 1
          %s275 = smul.addr %s274, 1760
          %s276 = scalar_lea.vmem [#allocation9], %s275
          %s277 = smul.u32 5, %s21
          %s279 = ssub.s32 28160, 28160
          %280 = vsyncadd %s273, %s279
          %s281 = smul.addr %s277, 88
          %s282 = smul.addr %s281, 64
          %s283 = scalar_lea.hbm %s3, %s282
          %s284 = sshll.u32 %s276, 4
          %s285 = int_to_ptr.vmem [resolvable:$true] %s284
          %290 = dma.hbm_to_vmem [thread:$0]  %s283, 28160, %s285, %s273, 64, 64, 4
        $region44: #{cnn_forward.1} parent=39 // pred_fallthru
          _
      $region40: #{cnn_forward.1} parent=5 // pred_fallthru
        _
      %p291 = scmp.le.s32.totalorder 1, %s21
      %p292 = scmp.lt.s32.totalorder %s21, 5
      %p293 = pnand %p291, %p292
      %p294 = pneg %p293
      // Predicated region
      $region45: #{cnn_forward.1} parent=5 // pred_check
        _
      $region46: #{cnn_forward.1} parent=5 // pred_check_branch
        %296 = sbr.rel (%p293) target = $region48
      $region47: #{cnn_forward.1} parent=5 // pred_region
        %s297 = ssub.s32 %s21, 1
        // Predicated region
        $region49: #{cnn_forward.1} parent=47 // pred_check
          %p298 = pneg %p63
        $region50: #{cnn_forward.1} parent=47 // pred_check_branch
          %300 = sbr.rel (%p298) target = $region52
        $region51: #{cnn_forward.1} parent=47 // pred_region
          %301 = dma.done [#allocation6], 32
        $region52: #{cnn_forward.1} parent=47 // pred_fallthru
          _
        // Predicated region
        $region53: #{cnn_forward.1} parent=47 // pred_check
          %p302 = pneg %p84
        $region54: #{cnn_forward.1} parent=47 // pred_check_branch
          %304 = sbr.rel (%p302) target = $region56
        $region55: #{cnn_forward.1} parent=47 // pred_region
          %305 = dma.done [#allocation8], 16
        $region56: #{cnn_forward.1} parent=47 // pred_fallthru
          _
        %s306 = sand.u32 %s97, 1
        %s307 = scalar_lea.sflag [#allocation4], %s306
        %s308 = sand.u32 %s97, 1
        %s309 = smul.addr %s308, 1760
        %s310 = scalar_lea.vmem [#allocation9], %s309
        // Predicated region
        $region57: #{cnn_forward.1} parent=47 // pred_check
          %p311 = pneg %p110
        $region58: #{cnn_forward.1} parent=47 // pred_check_branch
          %313 = sbr.rel (%p311) target = $region60
        $region59: #{cnn_forward.1} parent=47 // pred_region
          %314 = dma.done %s307, 28160
        $region60: #{cnn_forward.1} parent=47 // pred_fallthru
          _
        // Predicated region
        $region61: #{cnn_forward.1} parent=47 // pred_check
          %p315 = pneg %p131
        $region62: #{cnn_forward.1} parent=47 // pred_check_branch
          %317 = sbr.rel (%p315) target = $region64
        $region63: #{cnn_forward.1} parent=47 // pred_region
          %318 = dma.done [#allocation11], 16
        $region64: #{cnn_forward.1} parent=47 // pred_fallthru
          _
        // Predicated region
        $region65: #{cnn_forward.1} parent=47 // pred_check
          %p319 = pneg %p152
        $region66: #{cnn_forward.1} parent=47 // pred_check_branch
          %321 = sbr.rel (%p319) target = $region68
        $region67: #{cnn_forward.1} parent=47 // pred_region
          %322 = dma.done [#allocation11], 2048
        $region68: #{cnn_forward.1} parent=47 // pred_fallthru
          _
        // Predicated region
        $region69: #{cnn_forward.1} parent=47 // pred_check
          %p323 = pneg %p173
        $region70: #{cnn_forward.1} parent=47 // pred_check_branch
          %325 = sbr.rel (%p323) target = $region72
        $region71: #{cnn_forward.1} parent=47 // pred_region
          %326 = dma.done [#allocation14], 16
        $region72: #{cnn_forward.1} parent=47 // pred_fallthru
          _
        %327 = sfence
        %p328 = pneg %p42
        %p329 = pneg %p39
        %p330 = pneg %p63
        %p331 = pneg %p60
        %p332 = pneg %p84
        %p333 = pneg %p81
        %s334 = sand.u32 %s97, 1
        %s335 = scalar_lea.sflag [#allocation4], %s334
        %s336 = sand.u32 %s97, 1
        %s337 = smul.addr %s336, 1760
        %s338 = scalar_lea.vmem [#allocation9], %s337
        %p339 = pneg %p110
        %p340 = pneg %p107
        %p341 = pneg %p131
        %p342 = pneg %p128
        %p343 = pneg %p152
        %p344 = pneg %p149
        %p345 = pneg %p173
        %p346 = pneg %p170
        %p347 = pneg %p194
        %p348 = pneg %p191
        %s349 = smul.u32 5, %s26
        %p351 = scmp.eq.s32.totalorder %s26, 0
        // Predicated region
        $region73: #{cnn_forward.1} parent=47 // pred_check
          %p352 = pneg %p351
        $region74: #{cnn_forward.1} parent=47 // pred_check_branch
          %354 = sbr.rel (%p352) target = $region76
        $region75: #{cnn_forward.1} parent=47 // pred_region
          %355 = vst [vmem:[#allocation2] sm:$0x3] 0.0
        $region76: #{cnn_forward.1} parent=47 // pred_fallthru
          _
        %v356 = vld [vmem:[%s0] sm:$0xff]
        %v357 = vld [vmem:[%s0 + $0x8] sm:$0x3f]
        %s358 = smul.u32 %s26, 5
        %s359 = smul.u32 %s26, 45
        %s360 = sld [smem:[#allocation3 + %s359]]
        %v361 = vstv %s360
        %v362 = vmul.f32 %v356, %v361
        %v363 = vmul.f32 %v357, %v361
        %s364 = sadd.s32 %s359, 1
        %s365 = sld [smem:[#allocation3 + %s364]]
        %v366 = vstv %s365
        %v367 = vmul.f32 %v356, %v366
        %v368 = vmul.f32 %v357, %v366
        %371 = vrot.lane.b32.xlu0 %v367, 127
        %v372 = vpop.permute.xlu0 %371
        %373 = vrot.lane.b32.xlu0 %v368, 127
        %v374 = vpop.permute.xlu0 %373
        %v375 = vrot.slane %v372, 2
        %v376 = vrot.slane %v374, 2
        %vm377 = vcmask 1045504
        %v378 = vsel %vm377, %v375, %v376
        %vm379 = vcmask 1039360
        %v380 = vsel %vm379, %v372, %v378
        %v381 = vsel %vm379, %v374, %v376
        %v384 = vadd.f32 %v362, %v380
        %v385 = vadd.f32 %v363, %v381
        %s386 = sadd.s32 %s359, 2
        %s387 = sld [smem:[#allocation3 + %s386]]
        %v388 = vstv %s387
        %v389 = vmul.f32 %v356, %v388
        %v390 = vmul.f32 %v357, %v388
        %393 = vrot.lane.b32.xlu0 %v389, 126
        %v394 = vpop.permute.xlu0 %393
        %395 = vrot.lane.b32.xlu0 %v390, 126
        %v396 = vpop.permute.xlu0 %395
        %v397 = vrot.slane %v394, 2
        %v398 = vrot.slane %v396, 2
        %v399 = vsel %vm377, %v397, %v398
        %vm400 = vcmask 1031168
        %v401 = vsel %vm400, %v394, %v399
        %v402 = vsel %vm400, %v396, %v398
        %v405 = vadd.f32 %v384, %v401
        %v406 = vadd.f32 %v385, %v402
        %s407 = sadd.s32 %s359, 3
        %s408 = sld [smem:[#allocation3 + %s407]]
        %v409 = vstv %s408
        %v410 = vmul.f32 %v356, %v409
        %v411 = vmul.f32 %v357, %v409
        %414 = vrot.lane.b32.xlu0 %v410, 100
        %v415 = vpop.permute.xlu0 %414
        %416 = vrot.lane.b32.xlu0 %v411, 100
        %v417 = vpop.permute.xlu0 %416
        %v418 = vrot.slane %v415, 2
        %v419 = vrot.slane %v417, 2
        %v420 = vsel %vm377, %v418, %v419
        %vm421 = vcmask 818176
        %v422 = vsel %vm421, %v415, %v420
        %v423 = vsel %vm421, %v417, %v419
        %v426 = vadd.f32 %v405, %v422
        %v427 = vadd.f32 %v406, %v423
        %s428 = sadd.s32 %s359, 4
        %s429 = sld [smem:[#allocation3 + %s428]]
        %v430 = vstv %s429
        %v431 = vmul.f32 %v356, %v430
        %v432 = vmul.f32 %v357, %v430
        %435 = vrot.lane.b32.xlu0 %v431, 99
        %v436 = vpop.permute.xlu0 %435
        %437 = vrot.lane.b32.xlu0 %v432, 99
        %v438 = vpop.permute.xlu0 %437
        %v439 = vrot.slane %v436, 2
        %v440 = vrot.slane %v438, 2
        %v441 = vsel %vm377, %v439, %v440
        %vm442 = vcmask 809984
        %v443 = vsel %vm442, %v436, %v441
        %v444 = vsel %vm442, %v438, %v440
        %v447 = vadd.f32 %v426, %v443
        %v448 = vadd.f32 %v427, %v444
        %s449 = sadd.s32 %s359, 5
        %s450 = sld [smem:[#allocation3 + %s449]]
        %v451 = vstv %s450
        %v452 = vmul.f32 %v356, %v451
        %v453 = vmul.f32 %v357, %v451
        %456 = vrot.lane.b32.xlu0 %v452, 98
        %v457 = vpop.permute.xlu0 %456
        %458 = vrot.lane.b32.xlu0 %v453, 98
        %v459 = vpop.permute.xlu0 %458
        %v460 = vrot.slane %v457, 2
        %v461 = vrot.slane %v459, 2
        %v462 = vsel %vm377, %v460, %v461
        %vm463 = vcmask 801792
        %v464 = vsel %vm463, %v457, %v462
        %v465 = vsel %vm463, %v459, %v461
        %v468 = vadd.f32 %v447, %v464
        %v469 = vadd.f32 %v448, %v465
        %s470 = sadd.s32 %s359, 6
        %s471 = sld [smem:[#allocation3 + %s470]]
        %v472 = vstv %s471
        %v473 = vmul.f32 %v356, %v472
        %v474 = vmul.f32 %v357, %v472
        %477 = vrot.lane.b32.xlu0 %v473, 72
        %v478 = vpop.permute.xlu0 %477
        %479 = vrot.lane.b32.xlu0 %v474, 72
        %v480 = vpop.permute.xlu0 %479
        %v481 = vrot.slane %v478, 2
        %v482 = vrot.slane %v480, 2
        %v483 = vsel %vm377, %v481, %v482
        %vm484 = vcmask 588800
        %v485 = vsel %vm484, %v478, %v483
        %v486 = vsel %vm484, %v480, %v482
        %v489 = vadd.f32 %v468, %v485
        %v490 = vadd.f32 %v469, %v486
        %s491 = sadd.s32 %s359, 7
        %s492 = sld [smem:[#allocation3 + %s491]]
        %v493 = vstv %s492
        %v494 = vmul.f32 %v356, %v493
        %v495 = vmul.f32 %v357, %v493
        %498 = vrot.lane.b32.xlu0 %v494, 71
        %v499 = vpop.permute.xlu0 %498
        %500 = vrot.lane.b32.xlu0 %v495, 71
        %v501 = vpop.permute.xlu0 %500
        %v502 = vrot.slane %v499, 2
        %v503 = vrot.slane %v501, 2
        %v504 = vsel %vm377, %v502, %v503
        %vm505 = vcmask 580608
        %v506 = vsel %vm505, %v499, %v504
        %v507 = vsel %vm505, %v501, %v503
        %v510 = vadd.f32 %v489, %v506
        %v511 = vadd.f32 %v490, %v507
        %s512 = sadd.s32 %s359, 8
        %s513 = sld [smem:[#allocation3 + %s512]]
        %v514 = vstv %s513
        %v515 = vmul.f32 %v356, %v514
        %v516 = vmul.f32 %v357, %v514
        %519 = vrot.lane.b32.xlu0 %v515, 70
        %v520 = vpop.permute.xlu0 %519
        %521 = vrot.lane.b32.xlu0 %v516, 70
        %v522 = vpop.permute.xlu0 %521
        %v523 = vrot.slane %v520, 2
        %v524 = vrot.slane %v522, 2
        %v525 = vsel %vm377, %v523, %v524
        %vm526 = vcmask 572416
        %v527 = vsel %vm526, %v520, %v525
        %v528 = vsel %vm526, %v522, %v524
        %v531 = vadd.f32 %v510, %v527
        %v532 = vadd.f32 %v511, %v528
        %s533 = sld [smem:[#allocation7 + %s358]]
        %v534 = vstv %s533
        %v535 = vadd.f32 %v531, %v534
        %v536 = vadd.f32 %v532, %v534
        %539 = vrot.lane.b32.xlu0 %v535, 127
        %v540 = vpop.permute.xlu0 %539
        %541 = vrot.lane.b32.xlu0 %v536, 127
        %v542 = vpop.permute.xlu0 %541
        %v543 = vrot.slane %v540, 2
        %v544 = vrot.slane %v542, 2
        %v545 = vsel %vm377, %v543, %v544
        %v546 = vsel %vm379, %v540, %v545
        %v547 = vsel %vm379, %v542, %v544
        %v550 = vmax.f32 %v535, %v546
        %v551 = vmax.f32 %v536, %v547
        %554 = vrot.lane.b32.xlu0 %v550, 100
        %v555 = vpop.permute.xlu0 %554
        %556 = vrot.lane.b32.xlu0 %v551, 100
        %v557 = vpop.permute.xlu0 %556
        %v558 = vrot.slane %v555, 2
        %v559 = vrot.slane %v557, 2
        %v560 = vsel %vm377, %v558, %v559
        %v561 = vsel %vm421, %v555, %v560
        %v562 = vsel %vm421, %v557, %v559
        %v565 = vmax.f32 %v550, %v561
        %v566 = vmax.f32 %v551, %v562
        %v567 = vmax.f32 %v565, 0.0
        %v568 = vmax.f32 %v566, 0.0
        %v571 = vcombine.high %v567, %v567
        %v573 = vunpack.c.l.s4 1983009808
        %v574 = vunpack.c.0.s8 %v573
        %v575 = vlaneseq
        %v576 = vshrl.u32 %v575, 7
        %v577 = vsub.s32 %v574, %v576
        %v578 = vrot.slane %v567, %v577
        %v580 = vunpack.c.l.s4 1983009808
        %v581 = vunpack.c.0.s8 %v580
        %v582 = vlaneseq
        %v583 = vshrl.u32 %v582, 7
        %v584 = vsub.s32 %v581, %v583
        %v585 = vrot.slane %v571, %v584
        %v586 = vcombine.high %v578, %v578
        %v587 = vcombine.high %v585, %v585
        %v589 = vunpack.c.l.s4 1983009808
        %v590 = vunpack.c.0.s8 %v589
        %v591 = vlaneseq
        %v592 = vshrl.u32 %v591, 7
        %v593 = vsub.s32 %v590, %v592
        %v594 = vrot.slane %v568, %v593
        %v595 = vcombine.high %v594, %v594
        %v602 = vpack.c.bf16 %v578, %v578
        %v603 = vpack.c.bf16 %v586, %v586
        %v604 = vpack.c.bf16 %v585, %v585
        %v605 = vpack.c.bf16 %v587, %v587
        %v606 = vpack.c.bf16 %v594, %v594
        %v607 = vpack.c.bf16 %v595, %v595
        %v608 = vld [vmem:[%s310] sm:$0xf]
        %v609 = vld [vmem:[%s310 + $0x4] sm:$0xf]
        %v610 = vld [vmem:[%s310 + $0x8] sm:$0xf]
        %v611 = vld [vmem:[%s310 + $0xc] sm:$0xf]
        %v612 = vld [vmem:[%s310 + $0x10] sm:$0xf]
        %v613 = vld [vmem:[%s310 + $0x14] sm:$0xf]
        %v614 = vld [vmem:[%s310 + $0x18] sm:$0xf]
        %v615 = vld [vmem:[%s310 + $0x1c] sm:$0xf]
        %v616 = vld [vmem:[%s310 + $0x20] sm:$0xf]
        %v617 = vld [vmem:[%s310 + $0x24] sm:$0xf]
        %v618 = vld [vmem:[%s310 + $0x28] sm:$0xf]
        %v619 = vld [vmem:[%s310 + $0x2c] sm:$0xf]
        %v620 = vld [vmem:[%s310 + $0x30] sm:$0xf]
        %v621 = vld [vmem:[%s310 + $0x34] sm:$0xf]
        %v622 = vld [vmem:[%s310 + $0x38] sm:$0xf]
        %v623 = vld [vmem:[%s310 + $0x3c] sm:$0xf]
        %v624 = vld [vmem:[%s310 + $0x40] sm:$0xf]
        %v625 = vld [vmem:[%s310 + $0x44] sm:$0xf]
        %v626 = vld [vmem:[%s310 + $0x48] sm:$0xf]
        %v627 = vld [vmem:[%s310 + $0x4c] sm:$0xf]
        %v628 = vld [vmem:[%s310 + $0x50] sm:$0xf]
        %v629 = vld [vmem:[%s310 + $0x54] sm:$0xf]
        %v630 = vld [vmem:[%s310 + $0x58] sm:$0xf]
        %v631 = vld [vmem:[%s310 + $0x5c] sm:$0xf]
        %v632 = vld [vmem:[%s310 + $0x60] sm:$0xf]
        %v633 = vld [vmem:[%s310 + $0x64] sm:$0xf]
        %v634 = vld [vmem:[%s310 + $0x68] sm:$0xf]
        %v635 = vld [vmem:[%s310 + $0x6c] sm:$0xf]
        %v636 = vld [vmem:[%s310 + $0x70] sm:$0xf]
        %v637 = vld [vmem:[%s310 + $0x74] sm:$0xf]
        %v638 = vld [vmem:[%s310 + $0x78] sm:$0xf]
        %v639 = vld [vmem:[%s310 + $0x7c] sm:$0xf]
        %v640 = vld [vmem:[%s310 + $0x80] sm:$0xf]
        %v641 = vld [vmem:[%s310 + $0x84] sm:$0xf]
        %v642 = vld [vmem:[%s310 + $0x88] sm:$0xf]
        %v643 = vld [vmem:[%s310 + $0x8c] sm:$0xf]
        %v644 = vld [vmem:[%s310 + $0x90] sm:$0xf]
        %v645 = vld [vmem:[%s310 + $0x94] sm:$0xf]
        %v646 = vld [vmem:[%s310 + $0x98] sm:$0xf]
        %v647 = vld [vmem:[%s310 + $0x9c] sm:$0xf]
        %v648 = vld [vmem:[%s310 + $0xa0] sm:$0xf]
        %v649 = vld [vmem:[%s310 + $0xa4] sm:$0xf]
        %v650 = vld [vmem:[%s310 + $0xa8] sm:$0xf]
        %v651 = vld [vmem:[%s310 + $0xac] sm:$0xf]
        %v652 = vld [vmem:[%s310 + $0xb0] sm:$0xf]
        %v653 = vld [vmem:[%s310 + $0xb4] sm:$0xf]
        %v654 = vld [vmem:[%s310 + $0xb8] sm:$0xf]
        %v655 = vld [vmem:[%s310 + $0xbc] sm:$0xf]
        %v656 = vld [vmem:[%s310 + $0xc0] sm:$0xf]
        %v657 = vld [vmem:[%s310 + $0xc4] sm:$0xf]
        %v658 = vld [vmem:[%s310 + $0xc8] sm:$0xf]
        %v659 = vld [vmem:[%s310 + $0xcc] sm:$0xf]
        %v660 = vld [vmem:[%s310 + $0xd0] sm:$0xf]
        %v661 = vld [vmem:[%s310 + $0xd4] sm:$0xf]
        %v662 = vld [vmem:[%s310 + $0xd8] sm:$0xf]
        %v663 = vld [vmem:[%s310 + $0xdc] sm:$0xf]
        %v664 = vld [vmem:[%s310 + $0xe0] sm:$0xf]
        %v665 = vld [vmem:[%s310 + $0xe4] sm:$0xf]
        %v666 = vld [vmem:[%s310 + $0xe8] sm:$0xf]
        %v667 = vld [vmem:[%s310 + $0xec] sm:$0xf]
        %v668 = vld [vmem:[%s310 + $0xf0] sm:$0xf]
        %v669 = vld [vmem:[%s310 + $0xf4] sm:$0xf]
        %v670 = vld [vmem:[%s310 + $0xf8] sm:$0xf]
        %v671 = vld [vmem:[%s310 + $0xfc] sm:$0xf]
        %v672 = vld [vmem:[%s310 + $0x100] sm:$0xf]
        %v673 = vld [vmem:[%s310 + $0x104] sm:$0xf]
        %v674 = vld [vmem:[%s310 + $0x108] sm:$0xf]
        %v675 = vld [vmem:[%s310 + $0x10c] sm:$0xf]
        %v676 = vld [vmem:[%s310 + $0x110] sm:$0xf]
        %v677 = vld [vmem:[%s310 + $0x114] sm:$0xf]
        %v678 = vld [vmem:[%s310 + $0x118] sm:$0xf]
        %v679 = vld [vmem:[%s310 + $0x11c] sm:$0xf]
        %v680 = vld [vmem:[%s310 + $0x120] sm:$0xf]
        %v681 = vld [vmem:[%s310 + $0x124] sm:$0xf]
        %v682 = vld [vmem:[%s310 + $0x128] sm:$0xf]
        %v683 = vld [vmem:[%s310 + $0x12c] sm:$0xf]
        %v684 = vld [vmem:[%s310 + $0x130] sm:$0xf]
        %v685 = vld [vmem:[%s310 + $0x134] sm:$0xf]
        %v686 = vld [vmem:[%s310 + $0x138] sm:$0xf]
        %v687 = vld [vmem:[%s310 + $0x13c] sm:$0xf]
        %v688 = vld [vmem:[%s310 + $0x140] sm:$0xf]
        %v689 = vld [vmem:[%s310 + $0x144] sm:$0xf]
        %v690 = vld [vmem:[%s310 + $0x148] sm:$0xf]
        %v691 = vld [vmem:[%s310 + $0x14c] sm:$0xf]
        %v692 = vld [vmem:[%s310 + $0x150] sm:$0xf]
        %v693 = vld [vmem:[%s310 + $0x154] sm:$0xf]
        %v694 = vld [vmem:[%s310 + $0x158] sm:$0xf]
        %v695 = vld [vmem:[%s310 + $0x15c] sm:$0x1]
        %s696 = sadd.s32 %s358, 1
        %s697 = smul.u32 %s696, 9
        %s698 = sld [smem:[#allocation3 + %s697]]
        %v699 = vstv %s698
        %v700 = vmul.f32 %v356, %v699
        %v701 = vmul.f32 %v357, %v699
        %s702 = sadd.s32 %s697, 1
        %s703 = sld [smem:[#allocation3 + %s702]]
        %v704 = vstv %s703
        %v705 = vmul.f32 %v356, %v704
        %v706 = vmul.f32 %v357, %v704
        %709 = vrot.lane.b32.xlu0 %v705, 127
        %v710 = vpop.permute.xlu0 %709
        %711 = vrot.lane.b32.xlu0 %v706, 127
        %v712 = vpop.permute.xlu0 %711
        %v713 = vrot.slane %v710, 2
        %v714 = vrot.slane %v712, 2
        %v715 = vsel %vm377, %v713, %v714
        %v716 = vsel %vm379, %v710, %v715
        %v717 = vsel %vm379, %v712, %v714
        %v720 = vadd.f32 %v700, %v716
        %v721 = vadd.f32 %v701, %v717
        %s722 = sadd.s32 %s697, 2
        %s723 = sld [smem:[#allocation3 + %s722]]
        %v724 = vstv %s723
        %v725 = vmul.f32 %v356, %v724
        %v726 = vmul.f32 %v357, %v724
        %729 = vrot.lane.b32.xlu0 %v725, 126
        %v730 = vpop.permute.xlu0 %729
        %731 = vrot.lane.b32.xlu0 %v726, 126
        %v732 = vpop.permute.xlu0 %731
        %v733 = vrot.slane %v730, 2
        %v734 = vrot.slane %v732, 2
        %v735 = vsel %vm377, %v733, %v734
        %v736 = vsel %vm400, %v730, %v735
        %v737 = vsel %vm400, %v732, %v734
        %v740 = vadd.f32 %v720, %v736
        %v741 = vadd.f32 %v721, %v737
        %s742 = sadd.s32 %s697, 3
        %s743 = sld [smem:[#allocation3 + %s742]]
        %v744 = vstv %s743
        %v745 = vmul.f32 %v356, %v744
        %v746 = vmul.f32 %v357, %v744
        %749 = vrot.lane.b32.xlu0 %v745, 100
        %v750 = vpop.permute.xlu0 %749
        %751 = vrot.lane.b32.xlu0 %v746, 100
        %v752 = vpop.permute.xlu0 %751
        %v753 = vrot.slane %v750, 2
        %v754 = vrot.slane %v752, 2
        %v755 = vsel %vm377, %v753, %v754
        %v756 = vsel %vm421, %v750, %v755
        %v757 = vsel %vm421, %v752, %v754
        %v760 = vadd.f32 %v740, %v756
        %v761 = vadd.f32 %v741, %v757
        %s762 = sadd.s32 %s697, 4
        %s763 = sld [smem:[#allocation3 + %s762]]
        %v764 = vstv %s763
        %v765 = vmul.f32 %v356, %v764
        %v766 = vmul.f32 %v357, %v764
        %769 = vrot.lane.b32.xlu0 %v765, 99
        %v770 = vpop.permute.xlu0 %769
        %771 = vrot.lane.b32.xlu0 %v766, 99
        %v772 = vpop.permute.xlu0 %771
        %v773 = vrot.slane %v770, 2
        %v774 = vrot.slane %v772, 2
        %v775 = vsel %vm377, %v773, %v774
        %v776 = vsel %vm442, %v770, %v775
        %v777 = vsel %vm442, %v772, %v774
        %v780 = vadd.f32 %v760, %v776
        %v781 = vadd.f32 %v761, %v777
        %s782 = sadd.s32 %s697, 5
        %s783 = sld [smem:[#allocation3 + %s782]]
        %v784 = vstv %s783
        %v785 = vmul.f32 %v356, %v784
        %v786 = vmul.f32 %v357, %v784
        %789 = vrot.lane.b32.xlu0 %v785, 98
        %v790 = vpop.permute.xlu0 %789
        %791 = vrot.lane.b32.xlu0 %v786, 98
        %v792 = vpop.permute.xlu0 %791
        %v793 = vrot.slane %v790, 2
        %v794 = vrot.slane %v792, 2
        %v795 = vsel %vm377, %v793, %v794
        %v796 = vsel %vm463, %v790, %v795
        %v797 = vsel %vm463, %v792, %v794
        %v800 = vadd.f32 %v780, %v796
        %v801 = vadd.f32 %v781, %v797
        %s802 = sadd.s32 %s697, 6
        %s803 = sld [smem:[#allocation3 + %s802]]
        %v804 = vstv %s803
        %v805 = vmul.f32 %v356, %v804
        %v806 = vmul.f32 %v357, %v804
        %809 = vrot.lane.b32.xlu0 %v805, 72
        %v810 = vpop.permute.xlu0 %809
        %811 = vrot.lane.b32.xlu0 %v806, 72
        %v812 = vpop.permute.xlu0 %811
        %v813 = vrot.slane %v810, 2
        %v814 = vrot.slane %v812, 2
        %v815 = vsel %vm377, %v813, %v814
        %v816 = vsel %vm484, %v810, %v815
        %v817 = vsel %vm484, %v812, %v814
        %v820 = vadd.f32 %v800, %v816
        %v821 = vadd.f32 %v801, %v817
        %s822 = sadd.s32 %s697, 7
        %s823 = sld [smem:[#allocation3 + %s822]]
        %v824 = vstv %s823
        %v825 = vmul.f32 %v356, %v824
        %v826 = vmul.f32 %v357, %v824
        %829 = vrot.lane.b32.xlu0 %v825, 71
        %v830 = vpop.permute.xlu0 %829
        %831 = vrot.lane.b32.xlu0 %v826, 71
        %v832 = vpop.permute.xlu0 %831
        %v833 = vrot.slane %v830, 2
        %v834 = vrot.slane %v832, 2
        %v835 = vsel %vm377, %v833, %v834
        %v836 = vsel %vm505, %v830, %v835
        %v837 = vsel %vm505, %v832, %v834
        %v840 = vadd.f32 %v820, %v836
        %v841 = vadd.f32 %v821, %v837
        %s842 = sadd.s32 %s697, 8
        %s843 = sld [smem:[#allocation3 + %s842]]
        %v844 = vstv %s843
        %v845 = vmul.f32 %v356, %v844
        %v846 = vmul.f32 %v357, %v844
        %849 = vrot.lane.b32.xlu0 %v845, 70
        %v850 = vpop.permute.xlu0 %849
        %851 = vrot.lane.b32.xlu0 %v846, 70
        %v852 = vpop.permute.xlu0 %851
        %v853 = vrot.slane %v850, 2
        %v854 = vrot.slane %v852, 2
        %v855 = vsel %vm377, %v853, %v854
        %v856 = vsel %vm526, %v850, %v855
        %v857 = vsel %vm526, %v852, %v854
        %v860 = vadd.f32 %v840, %v856
        %v861 = vadd.f32 %v841, %v857
        %s862 = sld [smem:[#allocation7 + %s696]]
        %v863 = vstv %s862
        %v864 = vadd.f32 %v860, %v863
        %v865 = vadd.f32 %v861, %v863
        %868 = vrot.lane.b32.xlu0 %v864, 127
        %v869 = vpop.permute.xlu0 %868
        %870 = vrot.lane.b32.xlu0 %v865, 127
        %v871 = vpop.permute.xlu0 %870
        %v872 = vrot.slane %v869, 2
        %v873 = vrot.slane %v871, 2
        %v874 = vsel %vm377, %v872, %v873
        %v875 = vsel %vm379, %v869, %v874
        %v876 = vsel %vm379, %v871, %v873
        %v879 = vmax.f32 %v864, %v875
        %v880 = vmax.f32 %v865, %v876
        %883 = vrot.lane.b32.xlu0 %v879, 100
        %v884 = vpop.permute.xlu0 %883
        %885 = vrot.lane.b32.xlu0 %v880, 100
        %v886 = vpop.permute.xlu0 %885
        %v887 = vrot.slane %v884, 2
        %v888 = vrot.slane %v886, 2
        %v889 = vsel %vm377, %v887, %v888
        %v890 = vsel %vm421, %v884, %v889
        %v891 = vsel %vm421, %v886, %v888
        %v894 = vmax.f32 %v879, %v890
        %v895 = vmax.f32 %v880, %v891
        %v896 = vmax.f32 %v894, 0.0
        %v897 = vmax.f32 %v895, 0.0
        %v900 = vcombine.high %v896, %v896
        %v902 = vunpack.c.l.s4 1983009808
        %v903 = vunpack.c.0.s8 %v902
        %v904 = vlaneseq
        %v905 = vshrl.u32 %v904, 7
        %v906 = vsub.s32 %v903, %v905
        %v907 = vrot.slane %v896, %v906
        %v909 = vunpack.c.l.s4 1983009808
        %v910 = vunpack.c.0.s8 %v909
        %v911 = vlaneseq
        %v912 = vshrl.u32 %v911, 7
        %v913 = vsub.s32 %v910, %v912
        %v914 = vrot.slane %v900, %v913
        %v915 = vcombine.high %v907, %v907
        %v916 = vcombine.high %v914, %v914
        %v918 = vunpack.c.l.s4 1983009808
        %v919 = vunpack.c.0.s8 %v918
        %v920 = vlaneseq
        %v921 = vshrl.u32 %v920, 7
        %v922 = vsub.s32 %v919, %v921
        %v923 = vrot.slane %v897, %v922
        %v924 = vcombine.high %v923, %v923
        %v931 = vpack.c.bf16 %v907, %v907
        %v932 = vpack.c.bf16 %v915, %v915
        %v933 = vpack.c.bf16 %v914, %v914
        %v934 = vpack.c.bf16 %v916, %v916
        %v935 = vpack.c.bf16 %v923, %v923
        %v936 = vpack.c.bf16 %v924, %v924
        %s937 = scalar_lea.vmem %s310, 352 [#allocation9]
        %v938 = vld [vmem:[%s937] sm:$0xf]
        %v939 = vld [vmem:[%s937 + $0x4] sm:$0xf]
        %v940 = vld [vmem:[%s937 + $0x8] sm:$0xf]
        %v941 = vld [vmem:[%s937 + $0xc] sm:$0xf]
        %v942 = vld [vmem:[%s937 + $0x10] sm:$0xf]
        %v943 = vld [vmem:[%s937 + $0x14] sm:$0xf]
        %v944 = vld [vmem:[%s937 + $0x18] sm:$0xf]
        %v945 = vld [vmem:[%s937 + $0x1c] sm:$0xf]
        %v946 = vld [vmem:[%s937 + $0x20] sm:$0xf]
        %v947 = vld [vmem:[%s937 + $0x24] sm:$0xf]
        %v948 = vld [vmem:[%s937 + $0x28] sm:$0xf]
        %v949 = vld [vmem:[%s937 + $0x2c] sm:$0xf]
        %v950 = vld [vmem:[%s937 + $0x30] sm:$0xf]
        %v951 = vld [vmem:[%s937 + $0x34] sm:$0xf]
        %v952 = vld [vmem:[%s937 + $0x38] sm:$0xf]
        %v953 = vld [vmem:[%s937 + $0x3c] sm:$0xf]
        %v954 = vld [vmem:[%s937 + $0x40] sm:$0xf]
        %v955 = vld [vmem:[%s937 + $0x44] sm:$0xf]
        %v956 = vld [vmem:[%s937 + $0x48] sm:$0xf]
        %v957 = vld [vmem:[%s937 + $0x4c] sm:$0xf]
        %v958 = vld [vmem:[%s937 + $0x50] sm:$0xf]
        %v959 = vld [vmem:[%s937 + $0x54] sm:$0xf]
        %v960 = vld [vmem:[%s937 + $0x58] sm:$0xf]
        %v961 = vld [vmem:[%s937 + $0x5c] sm:$0xf]
        %v962 = vld [vmem:[%s937 + $0x60] sm:$0xf]
        %v963 = vld [vmem:[%s937 + $0x64] sm:$0xf]
        %v964 = vld [vmem:[%s937 + $0x68] sm:$0xf]
        %v965 = vld [vmem:[%s937 + $0x6c] sm:$0xf]
        %v966 = vld [vmem:[%s937 + $0x70] sm:$0xf]
        %v967 = vld [vmem:[%s937 + $0x74] sm:$0xf]
        %v968 = vld [vmem:[%s937 + $0x78] sm:$0xf]
        %v969 = vld [vmem:[%s937 + $0x7c] sm:$0xf]
        %v970 = vld [vmem:[%s937 + $0x80] sm:$0xf]
        %v971 = vld [vmem:[%s937 + $0x84] sm:$0xf]
        %v972 = vld [vmem:[%s937 + $0x88] sm:$0xf]
        %v973 = vld [vmem:[%s937 + $0x8c] sm:$0xf]
        %v974 = vld [vmem:[%s937 + $0x90] sm:$0xf]
        %v975 = vld [vmem:[%s937 + $0x94] sm:$0xf]
        %v976 = vld [vmem:[%s937 + $0x98] sm:$0xf]
        %v977 = vld [vmem:[%s937 + $0x9c] sm:$0xf]
        %v978 = vld [vmem:[%s937 + $0xa0] sm:$0xf]
        %v979 = vld [vmem:[%s937 + $0xa4] sm:$0xf]
        %v980 = vld [vmem:[%s937 + $0xa8] sm:$0xf]
        %v981 = vld [vmem:[%s937 + $0xac] sm:$0xf]
        %v982 = vld [vmem:[%s937 + $0xb0] sm:$0xf]
        %v983 = vld [vmem:[%s937 + $0xb4] sm:$0xf]
        %v984 = vld [vmem:[%s937 + $0xb8] sm:$0xf]
        %v985 = vld [vmem:[%s937 + $0xbc] sm:$0xf]
        %v986 = vld [vmem:[%s937 + $0xc0] sm:$0xf]
        %v987 = vld [vmem:[%s937 + $0xc4] sm:$0xf]
        %v988 = vld [vmem:[%s937 + $0xc8] sm:$0xf]
        %v989 = vld [vmem:[%s937 + $0xcc] sm:$0xf]
        %v990 = vld [vmem:[%s937 + $0xd0] sm:$0xf]
        %v991 = vld [vmem:[%s937 + $0xd4] sm:$0xf]
        %v992 = vld [vmem:[%s937 + $0xd8] sm:$0xf]
        %v993 = vld [vmem:[%s937 + $0xdc] sm:$0xf]
        %v994 = vld [vmem:[%s937 + $0xe0] sm:$0xf]
        %v995 = vld [vmem:[%s937 + $0xe4] sm:$0xf]
        %v996 = vld [vmem:[%s937 + $0xe8] sm:$0xf]
        %v997 = vld [vmem:[%s937 + $0xec] sm:$0xf]
        %v998 = vld [vmem:[%s937 + $0xf0] sm:$0xf]
        %v999 = vld [vmem:[%s937 + $0xf4] sm:$0xf]
        %v1000 = vld [vmem:[%s937 + $0xf8] sm:$0xf]
        %v1001 = vld [vmem:[%s937 + $0xfc] sm:$0xf]
        %v1002 = vld [vmem:[%s937 + $0x100] sm:$0xf]
        %v1003 = vld [vmem:[%s937 + $0x104] sm:$0xf]
        %v1004 = vld [vmem:[%s937 + $0x108] sm:$0xf]
        %v1005 = vld [vmem:[%s937 + $0x10c] sm:$0xf]
        %v1006 = vld [vmem:[%s937 + $0x110] sm:$0xf]
        %v1007 = vld [vmem:[%s937 + $0x114] sm:$0xf]
        %v1008 = vld [vmem:[%s937 + $0x118] sm:$0xf]
        %v1009 = vld [vmem:[%s937 + $0x11c] sm:$0xf]
        %v1010 = vld [vmem:[%s937 + $0x120] sm:$0xf]
        %v1011 = vld [vmem:[%s937 + $0x124] sm:$0xf]
        %v1012 = vld [vmem:[%s937 + $0x128] sm:$0xf]
        %v1013 = vld [vmem:[%s937 + $0x12c] sm:$0xf]
        %v1014 = vld [vmem:[%s937 + $0x130] sm:$0xf]
        %v1015 = vld [vmem:[%s937 + $0x134] sm:$0xf]
        %v1016 = vld [vmem:[%s937 + $0x138] sm:$0xf]
        %v1017 = vld [vmem:[%s937 + $0x13c] sm:$0xf]
        %v1018 = vld [vmem:[%s937 + $0x140] sm:$0xf]
        %v1019 = vld [vmem:[%s937 + $0x144] sm:$0xf]
        %v1020 = vld [vmem:[%s937 + $0x148] sm:$0xf]
        %v1021 = vld [vmem:[%s937 + $0x14c] sm:$0xf]
        %v1022 = vld [vmem:[%s937 + $0x150] sm:$0xf]
        %v1023 = vld [vmem:[%s937 + $0x154] sm:$0xf]
        %v1024 = vld [vmem:[%s937 + $0x158] sm:$0xf]
        %v1025 = vld [vmem:[%s937 + $0x15c] sm:$0x1]
        %v1114 = vunpack.c.l.b16 %v938
        %v1115 = vunpack.c.l.b16 %v939
        %v1116 = vunpack.c.l.b16 %v940
        %v1117 = vunpack.c.l.b16 %v941
        %v1118 = vunpack.c.l.b16 %v942
        %v1119 = vunpack.c.l.b16 %v943
        %v1120 = vunpack.c.l.b16 %v944
        %v1121 = vunpack.c.l.b16 %v945
        %v1122 = vunpack.c.l.b16 %v946
        %v1123 = vunpack.c.l.b16 %v947
        %v1124 = vunpack.c.l.b16 %v948
        %v1125 = vunpack.c.l.b16 %v949
        %v1126 = vunpack.c.l.b16 %v950
        %v1127 = vunpack.c.l.b16 %v951
        %v1128 = vunpack.c.l.b16 %v952
        %v1129 = vunpack.c.l.b16 %v953
        %v1130 = vunpack.c.l.b16 %v954
        %v1131 = vunpack.c.l.b16 %v955
        %v1132 = vunpack.c.l.b16 %v956
        %v1133 = vunpack.c.l.b16 %v957
        %v1134 = vunpack.c.l.b16 %v958
        %v1135 = vunpack.c.l.b16 %v959
        %v1136 = vunpack.c.l.b16 %v960
        %v1137 = vunpack.c.l.b16 %v961
        %v1138 = vunpack.c.l.b16 %v962
        %v1139 = vunpack.c.l.b16 %v963
        %v1140 = vunpack.c.l.b16 %v964
        %v1141 = vunpack.c.l.b16 %v965
        %v1142 = vunpack.c.l.b16 %v966
        %v1143 = vunpack.c.l.b16 %v967
        %v1144 = vunpack.c.l.b16 %v968
        %v1145 = vunpack.c.l.b16 %v969
        %v1146 = vunpack.c.l.b16 %v970
        %v1147 = vunpack.c.l.b16 %v971
        %v1148 = vunpack.c.l.b16 %v972
        %v1149 = vunpack.c.l.b16 %v973
        %v1150 = vunpack.c.l.b16 %v974
        %v1151 = vunpack.c.l.b16 %v975
        %v1152 = vunpack.c.l.b16 %v976
        %v1153 = vunpack.c.l.b16 %v977
        %v1154 = vunpack.c.l.b16 %v978
        %v1155 = vunpack.c.l.b16 %v979
        %v1156 = vunpack.c.l.b16 %v980
        %v1157 = vunpack.c.l.b16 %v981
        %v1158 = vunpack.c.l.b16 %v982
        %v1159 = vunpack.c.l.b16 %v983
        %v1160 = vunpack.c.l.b16 %v984
        %v1161 = vunpack.c.l.b16 %v985
        %v1162 = vunpack.c.l.b16 %v986
        %v1163 = vunpack.c.l.b16 %v987
        %v1164 = vunpack.c.l.b16 %v988
        %v1165 = vunpack.c.l.b16 %v989
        %v1166 = vunpack.c.l.b16 %v990
        %v1167 = vunpack.c.l.b16 %v991
        %v1168 = vunpack.c.l.b16 %v992
        %v1169 = vunpack.c.l.b16 %v993
        %v1170 = vunpack.c.l.b16 %v994
        %v1171 = vunpack.c.l.b16 %v995
        %v1172 = vunpack.c.l.b16 %v996
        %v1173 = vunpack.c.l.b16 %v997
        %v1174 = vunpack.c.l.b16 %v998
        %v1175 = vunpack.c.l.b16 %v999
        %v1176 = vunpack.c.l.b16 %v1000
        %v1177 = vunpack.c.l.b16 %v1001
        %v1178 = vunpack.c.l.b16 %v1002
        %v1179 = vunpack.c.l.b16 %v1003
        %v1180 = vunpack.c.l.b16 %v1004
        %v1181 = vunpack.c.l.b16 %v1005
        %v1182 = vunpack.c.l.b16 %v1006
        %v1183 = vunpack.c.l.b16 %v1007
        %v1184 = vunpack.c.l.b16 %v1008
        %v1185 = vunpack.c.l.b16 %v1009
        %v1186 = vunpack.c.l.b16 %v1010
        %v1187 = vunpack.c.l.b16 %v1011
        %v1188 = vunpack.c.l.b16 %v1012
        %v1189 = vunpack.c.l.b16 %v1013
        %v1190 = vunpack.c.l.b16 %v1014
        %v1191 = vunpack.c.l.b16 %v1015
        %v1192 = vunpack.c.l.b16 %v1016
        %v1193 = vunpack.c.l.b16 %v1017
        %v1194 = vunpack.c.l.b16 %v1018
        %v1195 = vunpack.c.l.b16 %v1019
        %v1196 = vunpack.c.l.b16 %v1020
        %v1197 = vunpack.c.l.b16 %v1021
        %v1198 = vunpack.c.l.b16 %v1022
        %v1199 = vunpack.c.l.b16 %v1023
        %v1200 = vunpack.c.l.b16 %v1024
        %v1201 = vunpack.c.l.b16 %v1025
        %v1202 = vpack.c.b16 %v1115, %v1114
        %v1203 = vpack.c.b16 %v1117, %v1116
        %v1204 = vpack.c.b16 %v1119, %v1118
        %v1205 = vpack.c.b16 %v1121, %v1120
        %v1206 = vpack.c.b16 %v1123, %v1122
        %v1207 = vpack.c.b16 %v1125, %v1124
        %v1208 = vpack.c.b16 %v1127, %v1126
        %v1209 = vpack.c.b16 %v1129, %v1128
        %v1210 = vpack.c.b16 %v1131, %v1130
        %v1211 = vpack.c.b16 %v1133, %v1132
        %v1212 = vpack.c.b16 %v1135, %v1134
        %v1213 = vpack.c.b16 %v1137, %v1136
        %v1214 = vpack.c.b16 %v1139, %v1138
        %v1215 = vpack.c.b16 %v1141, %v1140
        %v1216 = vpack.c.b16 %v1143, %v1142
        %v1217 = vpack.c.b16 %v1145, %v1144
        %v1218 = vpack.c.b16 %v1147, %v1146
        %v1219 = vpack.c.b16 %v1149, %v1148
        %v1220 = vpack.c.b16 %v1151, %v1150
        %v1221 = vpack.c.b16 %v1153, %v1152
        %v1222 = vpack.c.b16 %v1155, %v1154
        %v1223 = vpack.c.b16 %v1157, %v1156
        %v1224 = vpack.c.b16 %v1159, %v1158
        %v1225 = vpack.c.b16 %v1161, %v1160
        %v1226 = vpack.c.b16 %v1163, %v1162
        %v1227 = vpack.c.b16 %v1165, %v1164
        %v1228 = vpack.c.b16 %v1167, %v1166
        %v1229 = vpack.c.b16 %v1169, %v1168
        %v1230 = vpack.c.b16 %v1171, %v1170
        %v1231 = vpack.c.b16 %v1173, %v1172
        %v1232 = vpack.c.b16 %v1175, %v1174
        %v1233 = vpack.c.b16 %v1177, %v1176
        %v1234 = vpack.c.b16 %v1179, %v1178
        %v1235 = vpack.c.b16 %v1181, %v1180
        %v1236 = vpack.c.b16 %v1183, %v1182
        %v1237 = vpack.c.b16 %v1185, %v1184
        %v1238 = vpack.c.b16 %v1187, %v1186
        %v1239 = vpack.c.b16 %v1189, %v1188
        %v1240 = vpack.c.b16 %v1191, %v1190
        %v1241 = vpack.c.b16 %v1193, %v1192
        %v1242 = vpack.c.b16 %v1195, %v1194
        %v1243 = vpack.c.b16 %v1197, %v1196
        %v1244 = vpack.c.b16 %v1199, %v1198
        %v1245 = vpack.c.b16 %v1201, %v1200
        %vm1289 = vcmask 465920
        %v1291 = vsel %vm1289, %v936, 0
        %vm1293 = vcmask 1043456
        %vm1294 = vcmask 1044480
        %v1295 = vsel %vm1293, 4294967295, 65535
        %v1296 = vsel %vm1294, %v1295, 0
        %v1298 = vand.u32 %v1245, %v1296
        %1300 = vmatprep.subr.bf16.mxu0 0
        %1301 = vmatpush1.bf16.msra.mxu0 %v1202
        %1302 = vmatprep.subr.bf16.mxu0 0
        %1303 = vmatpush1.bf16.msra.mxu0 %v1203
        %1304 = vmatprep.subr.bf16.mxu0 0
        %1305 = vmatpush1.bf16.msra.mxu0 %v1204
        %1306 = vmatprep.subr.bf16.mxu0 0
        %1307 = vmatpush1.bf16.msra.mxu0 %v1205
        %1308 = vmatprep.subr.bf16.mxu0 0
        %1309 = vmatpush1.bf16.msra.mxu0 %v1206
        %1310 = vmatprep.subr.bf16.mxu0 0
        %1311 = vmatpush1.bf16.msra.mxu0 %v1207
        %1312 = vmatprep.subr.bf16.mxu0 0
        %1313 = vmatpush1.bf16.msra.mxu0 %v1208
        %1314 = vmatprep.subr.bf16.mxu0 0
        %1315 = vmatpush1.bf16.msra.mxu0 %v1209
        %1316 = vmatprep.subr.bf16.mxu0 0
        %1317 = vmatpush1.bf16.msra.mxu0 %v1210
        %1318 = vmatprep.subr.bf16.mxu0 0
        %1319 = vmatpush1.bf16.msra.mxu0 %v1211
        %1320 = vmatprep.subr.bf16.mxu0 0
        %1321 = vmatpush1.bf16.msra.mxu0 %v1212
        %1322 = vmatprep.subr.bf16.mxu0 0
        %1323 = vmatpush1.bf16.msra.mxu0 %v1213
        %1324 = vmatprep.subr.bf16.mxu0 0
        %1325 = vmatpush1.bf16.msra.mxu0 %v1214
        %1326 = vmatprep.subr.bf16.mxu0 0
        %1327 = vmatpush1.bf16.msra.mxu0 %v1215
        %1328 = vmatprep.subr.bf16.mxu0 0
        %1329 = vmatpush1.bf16.msra.mxu0 %v1216
        %1330 = vmatprep.subr.bf16.mxu0 0
        %1331 = vmatpush1.bf16.msra.mxu0 %v1217
        %1332 = vmatprep.mubr.bf16.mxu0 %v932
        %1333 = vmatmul.mubr.bf16.gmra.mrb[0].mxu0 %v931
        %v1334 = vpop.f32.mrb[0].mxu0
        %v1335 = vadd.f32 0.0, %v1334
        %v1336 = vpop.f32.mrb[0].mxu0
        %v1337 = vpop.f32.mrb[0].mxu0
        %v1338 = vpop.f32.mrb[0].mxu0
        %1339 = vdwg.mxu0
        %1340 = vmatprep.subr.bf16.mxu0 0
        %1341 = vmatpush1.bf16.msra.mxu0 %v1218
        %1342 = vmatprep.subr.bf16.mxu0 0
        %1343 = vmatpush1.bf16.msra.mxu0 %v1219
        %1344 = vmatprep.subr.bf16.mxu0 0
        %1345 = vmatpush1.bf16.msra.mxu0 %v1220
        %1346 = vmatprep.subr.bf16.mxu0 0
        %1347 = vmatpush1.bf16.msra.mxu0 %v1221
        %1348 = vmatprep.subr.bf16.mxu0 0
        %1349 = vmatpush1.bf16.msra.mxu0 %v1222
        %1350 = vmatprep.subr.bf16.mxu0 0
        %1351 = vmatpush1.bf16.msra.mxu0 %v1223
        %1352 = vmatprep.subr.bf16.mxu0 0
        %1353 = vmatpush1.bf16.msra.mxu0 %v1224
        %1354 = vmatprep.subr.bf16.mxu0 0
        %1355 = vmatpush1.bf16.msra.mxu0 %v1225
        %1356 = vmatprep.subr.bf16.mxu0 0
        %1357 = vmatpush1.bf16.msra.mxu0 %v1226
        %1358 = vmatprep.subr.bf16.mxu0 0
        %1359 = vmatpush1.bf16.msra.mxu0 %v1227
        %1360 = vmatprep.subr.bf16.mxu0 0
        %1361 = vmatpush1.bf16.msra.mxu0 %v1228
        %1362 = vmatprep.subr.bf16.mxu0 0
        %1363 = vmatpush1.bf16.msra.mxu0 %v1229
        %1364 = vmatprep.subr.bf16.mxu0 0
        %1365 = vmatpush1.bf16.msra.mxu0 %v1230
        %1366 = vmatprep.subr.bf16.mxu0 0
        %1367 = vmatpush1.bf16.msra.mxu0 %v1231
        %1368 = vmatprep.subr.bf16.mxu0 0
        %1369 = vmatpush1.bf16.msra.mxu0 %v1232
        %1370 = vmatprep.subr.bf16.mxu0 0
        %1371 = vmatpush1.bf16.msra.mxu0 %v1233
        %1372 = vmatprep.mubr.bf16.mxu0 %v934
        %1373 = vmatmul.mubr.bf16.gmra.mrb[0].mxu0 %v933
        %v1374 = vpop.f32.mrb[0].mxu0
        %v1375 = vadd.f32 %v1335, %v1374
        %v1376 = vpop.f32.mrb[0].mxu0
        %v1377 = vpop.f32.mrb[0].mxu0
        %v1378 = vpop.f32.mrb[0].mxu0
        %1379 = vdwg.mxu0
        %1380 = vmatprep.subr.bf16.mxu0 0
        %1381 = vmatpush1.bf16.msra.mxu0 %v1234
        %1382 = vmatprep.subr.bf16.mxu0 0
        %1383 = vmatpush1.bf16.msra.mxu0 %v1235
        %1384 = vmatprep.subr.bf16.mxu0 0
        %1385 = vmatpush1.bf16.msra.mxu0 %v1236
        %1386 = vmatprep.subr.bf16.mxu0 0
        %1387 = vmatpush1.bf16.msra.mxu0 %v1237
        %1388 = vmatprep.subr.bf16.mxu0 0
        %1389 = vmatpush1.bf16.msra.mxu0 %v1238
        %1390 = vmatprep.subr.bf16.mxu0 0
        %1391 = vmatpush1.bf16.msra.mxu0 %v1239
        %1392 = vmatprep.subr.bf16.mxu0 0
        %1393 = vmatpush1.bf16.msra.mxu0 %v1240
        %1394 = vmatprep.subr.bf16.mxu0 0
        %1395 = vmatpush1.bf16.msra.mxu0 %v1241
        %1396 = vmatprep.subr.bf16.mxu0 0
        %1397 = vmatpush1.bf16.msra.mxu0 %v1242
        %1398 = vmatprep.subr.bf16.mxu0 0
        %1399 = vmatpush1.bf16.msra.mxu0 %v1243
        %1400 = vmatprep.subr.bf16.mxu0 0
        %1401 = vmatpush1.bf16.msra.mxu0 %v1244
        %1402 = vmatprep.subr.bf16.mxu0 0
        %1403 = vmatpush1.bf16.msra.mxu0 %v1298
        %1404 = vmatprep.subr.bf16.mxu0 0
        %1405 = vmatpush1.bf16.msra.mxu0 0
        %1406 = vmatprep.subr.bf16.mxu0 0
        %1407 = vmatpush1.bf16.msra.mxu0 0
        %1408 = vmatprep.subr.bf16.mxu0 0
        %1409 = vmatpush1.bf16.msra.mxu0 0
        %1410 = vmatprep.subr.bf16.mxu0 0
        %1411 = vmatpush1.bf16.msra.mxu0 0
        %1412 = vmatprep.mubr.bf16.mxu0 %v1291
        %1413 = vmatmul.mubr.bf16.gmra.mrb[0].mxu0 %v935
        %v1414 = vpop.f32.mrb[0].mxu0
        %v1415 = vadd.f32 %v1375, %v1414
        %v1416 = vpop.f32.mrb[0].mxu0
        %v1417 = vpop.f32.mrb[0].mxu0
        %v1418 = vpop.f32.mrb[0].mxu0
        %1419 = vdwg.mxu0
        %v1508 = vunpack.c.l.b16 %v608
        %v1509 = vunpack.c.l.b16 %v609
        %v1510 = vunpack.c.l.b16 %v610
        %v1511 = vunpack.c.l.b16 %v611
        %v1512 = vunpack.c.l.b16 %v612
        %v1513 = vunpack.c.l.b16 %v613
        %v1514 = vunpack.c.l.b16 %v614
        %v1515 = vunpack.c.l.b16 %v615
        %v1516 = vunpack.c.l.b16 %v616
        %v1517 = vunpack.c.l.b16 %v617
        %v1518 = vunpack.c.l.b16 %v618
        %v1519 = vunpack.c.l.b16 %v619
        %v1520 = vunpack.c.l.b16 %v620
        %v1521 = vunpack.c.l.b16 %v621
        %v1522 = vunpack.c.l.b16 %v622
        %v1523 = vunpack.c.l.b16 %v623
        %v1524 = vunpack.c.l.b16 %v624
        %v1525 = vunpack.c.l.b16 %v625
        %v1526 = vunpack.c.l.b16 %v626
        %v1527 = vunpack.c.l.b16 %v627
        %v1528 = vunpack.c.l.b16 %v628
        %v1529 = vunpack.c.l.b16 %v629
        %v1530 = vunpack.c.l.b16 %v630
        %v1531 = vunpack.c.l.b16 %v631
        %v1532 = vunpack.c.l.b16 %v632
        %v1533 = vunpack.c.l.b16 %v633
        %v1534 = vunpack.c.l.b16 %v634
        %v1535 = vunpack.c.l.b16 %v635
        %v1536 = vunpack.c.l.b16 %v636
        %v1537 = vunpack.c.l.b16 %v637
        %v1538 = vunpack.c.l.b16 %v638
        %v1539 = vunpack.c.l.b16 %v639
        %v1540 = vunpack.c.l.b16 %v640
        %v1541 = vunpack.c.l.b16 %v641
        %v1542 = vunpack.c.l.b16 %v642
        %v1543 = vunpack.c.l.b16 %v643
        %v1544 = vunpack.c.l.b16 %v644
        %v1545 = vunpack.c.l.b16 %v645
        %v1546 = vunpack.c.l.b16 %v646
        %v1547 = vunpack.c.l.b16 %v647
        %v1548 = vunpack.c.l.b16 %v648
        %v1549 = vunpack.c.l.b16 %v649
        %v1550 = vunpack.c.l.b16 %v650
        %v1551 = vunpack.c.l.b16 %v651
        %v1552 = vunpack.c.l.b16 %v652
        %v1553 = vunpack.c.l.b16 %v653
        %v1554 = vunpack.c.l.b16 %v654
        %v1555 = vunpack.c.l.b16 %v655
        %v1556 = vunpack.c.l.b16 %v656
        %v1557 = vunpack.c.l.b16 %v657
        %v1558 = vunpack.c.l.b16 %v658
        %v1559 = vunpack.c.l.b16 %v659
        %v1560 = vunpack.c.l.b16 %v660
        %v1561 = vunpack.c.l.b16 %v661
        %v1562 = vunpack.c.l.b16 %v662
        %v1563 = vunpack.c.l.b16 %v663
        %v1564 = vunpack.c.l.b16 %v664
        %v1565 = vunpack.c.l.b16 %v665
        %v1566 = vunpack.c.l.b16 %v666
        %v1567 = vunpack.c.l.b16 %v667
        %v1568 = vunpack.c.l.b16 %v668
        %v1569 = vunpack.c.l.b16 %v669
        %v1570 = vunpack.c.l.b16 %v670
        %v1571 = vunpack.c.l.b16 %v671
        %v1572 = vunpack.c.l.b16 %v672
        %v1573 = vunpack.c.l.b16 %v673
        %v1574 = vunpack.c.l.b16 %v674
        %v1575 = vunpack.c.l.b16 %v675
        %v1576 = vunpack.c.l.b16 %v676
        %v1577 = vunpack.c.l.b16 %v677
        %v1578 = vunpack.c.l.b16 %v678
        %v1579 = vunpack.c.l.b16 %v679
        %v1580 = vunpack.c.l.b16 %v680
        %v1581 = vunpack.c.l.b16 %v681
        %v1582 = vunpack.c.l.b16 %v682
        %v1583 = vunpack.c.l.b16 %v683
        %v1584 = vunpack.c.l.b16 %v684
        %v1585 = vunpack.c.l.b16 %v685
        %v1586 = vunpack.c.l.b16 %v686
        %v1587 = vunpack.c.l.b16 %v687
        %v1588 = vunpack.c.l.b16 %v688
        %v1589 = vunpack.c.l.b16 %v689
        %v1590 = vunpack.c.l.b16 %v690
        %v1591 = vunpack.c.l.b16 %v691
        %v1592 = vunpack.c.l.b16 %v692
        %v1593 = vunpack.c.l.b16 %v693
        %v1594 = vunpack.c.l.b16 %v694
        %v1595 = vunpack.c.l.b16 %v695
        %v1596 = vpack.c.b16 %v1509, %v1508
        %v1597 = vpack.c.b16 %v1511, %v1510
        %v1598 = vpack.c.b16 %v1513, %v1512
        %v1599 = vpack.c.b16 %v1515, %v1514
        %v1600 = vpack.c.b16 %v1517, %v1516
        %v1601 = vpack.c.b16 %v1519, %v1518
        %v1602 = vpack.c.b16 %v1521, %v1520
        %v1603 = vpack.c.b16 %v1523, %v1522
        %v1604 = vpack.c.b16 %v1525, %v1524
        %v1605 = vpack.c.b16 %v1527, %v1526
        %v1606 = vpack.c.b16 %v1529, %v1528
        %v1607 = vpack.c.b16 %v1531, %v1530
        %v1608 = vpack.c.b16 %v1533, %v1532
        %v1609 = vpack.c.b16 %v1535, %v1534
        %v1610 = vpack.c.b16 %v1537, %v1536
        %v1611 = vpack.c.b16 %v1539, %v1538
        %v1612 = vpack.c.b16 %v1541, %v1540
        %v1613 = vpack.c.b16 %v1543, %v1542
        %v1614 = vpack.c.b16 %v1545, %v1544
        %v1615 = vpack.c.b16 %v1547, %v1546
        %v1616 = vpack.c.b16 %v1549, %v1548
        %v1617 = vpack.c.b16 %v1551, %v1550
        %v1618 = vpack.c.b16 %v1553, %v1552
        %v1619 = vpack.c.b16 %v1555, %v1554
        %v1620 = vpack.c.b16 %v1557, %v1556
        %v1621 = vpack.c.b16 %v1559, %v1558
        %v1622 = vpack.c.b16 %v1561, %v1560
        %v1623 = vpack.c.b16 %v1563, %v1562
        %v1624 = vpack.c.b16 %v1565, %v1564
        %v1625 = vpack.c.b16 %v1567, %v1566
        %v1626 = vpack.c.b16 %v1569, %v1568
        %v1627 = vpack.c.b16 %v1571, %v1570
        %v1628 = vpack.c.b16 %v1573, %v1572
        %v1629 = vpack.c.b16 %v1575, %v1574
        %v1630 = vpack.c.b16 %v1577, %v1576
        %v1631 = vpack.c.b16 %v1579, %v1578
        %v1632 = vpack.c.b16 %v1581, %v1580
        %v1633 = vpack.c.b16 %v1583, %v1582
        %v1634 = vpack.c.b16 %v1585, %v1584
        %v1635 = vpack.c.b16 %v1587, %v1586
        %v1636 = vpack.c.b16 %v1589, %v1588
        %v1637 = vpack.c.b16 %v1591, %v1590
        %v1638 = vpack.c.b16 %v1593, %v1592
        %v1639 = vpack.c.b16 %v1595, %v1594
        %v1684 = vsel %vm1289, %v607, 0
        %v1687 = vand.u32 %v1639, %v1296
        %1689 = vmatprep.subr.bf16.mxu0 0
        %1690 = vmatpush1.bf16.msra.mxu0 %v1596
        %1691 = vmatprep.subr.bf16.mxu0 0
        %1692 = vmatpush1.bf16.msra.mxu0 %v1597
        %1693 = vmatprep.subr.bf16.mxu0 0
        %1694 = vmatpush1.bf16.msra.mxu0 %v1598
        %1695 = vmatprep.subr.bf16.mxu0 0
        %1696 = vmatpush1.bf16.msra.mxu0 %v1599
        %1697 = vmatprep.subr.bf16.mxu0 0
        %1698 = vmatpush1.bf16.msra.mxu0 %v1600
        %1699 = vmatprep.subr.bf16.mxu0 0
        %1700 = vmatpush1.bf16.msra.mxu0 %v1601
        %1701 = vmatprep.subr.bf16.mxu0 0
        %1702 = vmatpush1.bf16.msra.mxu0 %v1602
        %1703 = vmatprep.subr.bf16.mxu0 0
        %1704 = vmatpush1.bf16.msra.mxu0 %v1603
        %1705 = vmatprep.subr.bf16.mxu0 0
        %1706 = vmatpush1.bf16.msra.mxu0 %v1604
        %1707 = vmatprep.subr.bf16.mxu0 0
        %1708 = vmatpush1.bf16.msra.mxu0 %v1605
        %1709 = vmatprep.subr.bf16.mxu0 0
        %1710 = vmatpush1.bf16.msra.mxu0 %v1606
        %1711 = vmatprep.subr.bf16.mxu0 0
        %1712 = vmatpush1.bf16.msra.mxu0 %v1607
        %1713 = vmatprep.subr.bf16.mxu0 0
        %1714 = vmatpush1.bf16.msra.mxu0 %v1608
        %1715 = vmatprep.subr.bf16.mxu0 0
        %1716 = vmatpush1.bf16.msra.mxu0 %v1609
        %1717 = vmatprep.subr.bf16.mxu0 0
        %1718 = vmatpush1.bf16.msra.mxu0 %v1610
        %1719 = vmatprep.subr.bf16.mxu0 0
        %1720 = vmatpush1.bf16.msra.mxu0 %v1611
        %1721 = vmatprep.mubr.bf16.mxu0 %v603
        %1722 = vmatmul.mubr.bf16.gmra.mrb[0].mxu0 %v602
        %v1723 = vpop.f32.mrb[0].mxu0
        %v1724 = vadd.f32 %v1415, %v1723
        %v1725 = vpop.f32.mrb[0].mxu0
        %v1726 = vpop.f32.mrb[0].mxu0
        %v1727 = vpop.f32.mrb[0].mxu0
        %1728 = vdwg.mxu0
        %1729 = vmatprep.subr.bf16.mxu0 0
        %1730 = vmatpush1.bf16.msra.mxu0 %v1612
        %1731 = vmatprep.subr.bf16.mxu0 0
        %1732 = vmatpush1.bf16.msra.mxu0 %v1613
        %1733 = vmatprep.subr.bf16.mxu0 0
        %1734 = vmatpush1.bf16.msra.mxu0 %v1614
        %1735 = vmatprep.subr.bf16.mxu0 0
        %1736 = vmatpush1.bf16.msra.mxu0 %v1615
        %1737 = vmatprep.subr.bf16.mxu0 0
        %1738 = vmatpush1.bf16.msra.mxu0 %v1616
        %1739 = vmatprep.subr.bf16.mxu0 0
        %1740 = vmatpush1.bf16.msra.mxu0 %v1617
        %1741 = vmatprep.subr.bf16.mxu0 0
        %1742 = vmatpush1.bf16.msra.mxu0 %v1618
        %1743 = vmatprep.subr.bf16.mxu0 0
        %1744 = vmatpush1.bf16.msra.mxu0 %v1619
        %1745 = vmatprep.subr.bf16.mxu0 0
        %1746 = vmatpush1.bf16.msra.mxu0 %v1620
        %1747 = vmatprep.subr.bf16.mxu0 0
        %1748 = vmatpush1.bf16.msra.mxu0 %v1621
        %1749 = vmatprep.subr.bf16.mxu0 0
        %1750 = vmatpush1.bf16.msra.mxu0 %v1622
        %1751 = vmatprep.subr.bf16.mxu0 0
        %1752 = vmatpush1.bf16.msra.mxu0 %v1623
        %1753 = vmatprep.subr.bf16.mxu0 0
        %1754 = vmatpush1.bf16.msra.mxu0 %v1624
        %1755 = vmatprep.subr.bf16.mxu0 0
        %1756 = vmatpush1.bf16.msra.mxu0 %v1625
        %1757 = vmatprep.subr.bf16.mxu0 0
        %1758 = vmatpush1.bf16.msra.mxu0 %v1626
        %1759 = vmatprep.subr.bf16.mxu0 0
        %1760 = vmatpush1.bf16.msra.mxu0 %v1627
        %1761 = vmatprep.mubr.bf16.mxu0 %v605
        %1762 = vmatmul.mubr.bf16.gmra.mrb[0].mxu0 %v604
        %v1763 = vpop.f32.mrb[0].mxu0
        %v1764 = vadd.f32 %v1724, %v1763
        %v1765 = vpop.f32.mrb[0].mxu0
        %v1766 = vpop.f32.mrb[0].mxu0
        %v1767 = vpop.f32.mrb[0].mxu0
        %1768 = vdwg.mxu0
        %1769 = vmatprep.subr.bf16.mxu0 0
        %1770 = vmatpush1.bf16.msra.mxu0 %v1628
        %1771 = vmatprep.subr.bf16.mxu0 0
        %1772 = vmatpush1.bf16.msra.mxu0 %v1629
        %1773 = vmatprep.subr.bf16.mxu0 0
        %1774 = vmatpush1.bf16.msra.mxu0 %v1630
        %1775 = vmatprep.subr.bf16.mxu0 0
        %1776 = vmatpush1.bf16.msra.mxu0 %v1631
        %1777 = vmatprep.subr.bf16.mxu0 0
        %1778 = vmatpush1.bf16.msra.mxu0 %v1632
        %1779 = vmatprep.subr.bf16.mxu0 0
        %1780 = vmatpush1.bf16.msra.mxu0 %v1633
        %1781 = vmatprep.subr.bf16.mxu0 0
        %1782 = vmatpush1.bf16.msra.mxu0 %v1634
        %1783 = vmatprep.subr.bf16.mxu0 0
        %1784 = vmatpush1.bf16.msra.mxu0 %v1635
        %1785 = vmatprep.subr.bf16.mxu0 0
        %1786 = vmatpush1.bf16.msra.mxu0 %v1636
        %1787 = vmatprep.subr.bf16.mxu0 0
        %1788 = vmatpush1.bf16.msra.mxu0 %v1637
        %1789 = vmatprep.subr.bf16.mxu0 0
        %1790 = vmatpush1.bf16.msra.mxu0 %v1638
        %1791 = vmatprep.subr.bf16.mxu0 0
        %1792 = vmatpush1.bf16.msra.mxu0 %v1687
        %1793 = vmatprep.subr.bf16.mxu0 0
        %1794 = vmatpush1.bf16.msra.mxu0 0
        %1795 = vmatprep.subr.bf16.mxu0 0
        %1796 = vmatpush1.bf16.msra.mxu0 0
        %1797 = vmatprep.subr.bf16.mxu0 0
        %1798 = vmatpush1.bf16.msra.mxu0 0
        %1799 = vmatprep.subr.bf16.mxu0 0
        %1800 = vmatpush1.bf16.msra.mxu0 0
        %1801 = vmatprep.mubr.bf16.mxu0 %v1684
        %1802 = vmatmul.mubr.bf16.gmra.mrb[0].mxu0 %v606
        %v1803 = vpop.f32.mrb[0].mxu0
        %v1804 = vadd.f32 %v1764, %v1803
        %v1805 = vpop.f32.mrb[0].mxu0
        %v1806 = vpop.f32.mrb[0].mxu0
        %v1807 = vpop.f32.mrb[0].mxu0
        %1808 = vdwg.mxu0
        %s1809 = sadd.s32 %s358, 2
        %s1810 = smul.u32 %s1809, 9
        %s1811 = sld [smem:[#allocation3 + %s1810]]
        %v1812 = vstv %s1811
        %v1813 = vmul.f32 %v356, %v1812
        %v1814 = vmul.f32 %v357, %v1812
        %s1815 = sadd.s32 %s1810, 1
        %s1816 = sld [smem:[#allocation3 + %s1815]]
        %v1817 = vstv %s1816
        %v1818 = vmul.f32 %v356, %v1817
        %v1819 = vmul.f32 %v357, %v1817
        %1822 = vrot.lane.b32.xlu0 %v1818, 127
        %v1823 = vpop.permute.xlu0 %1822
        %1824 = vrot.lane.b32.xlu0 %v1819, 127
        %v1825 = vpop.permute.xlu0 %1824
        %v1826 = vrot.slane %v1823, 2
        %v1827 = vrot.slane %v1825, 2
        %v1828 = vsel %vm377, %v1826, %v1827
        %v1829 = vsel %vm379, %v1823, %v1828
        %v1830 = vsel %vm379, %v1825, %v1827
        %v1833 = vadd.f32 %v1813, %v1829
        %v1834 = vadd.f32 %v1814, %v1830
        %s1835 = sadd.s32 %s1810, 2
        %s1836 = sld [smem:[#allocation3 + %s1835]]
        %v1837 = vstv %s1836
        %v1838 = vmul.f32 %v356, %v1837
        %v1839 = vmul.f32 %v357, %v1837
        %1842 = vrot.lane.b32.xlu0 %v1838, 126
        %v1843 = vpop.permute.xlu0 %1842
        %1844 = vrot.lane.b32.xlu0 %v1839, 126
        %v1845 = vpop.permute.xlu0 %1844
        %v1846 = vrot.slane %v1843, 2
        %v1847 = vrot.slane %v1845, 2
        %v1848 = vsel %vm377, %v1846, %v1847
        %v1849 = vsel %vm400, %v1843, %v1848
        %v1850 = vsel %vm400, %v1845, %v1847
        %v1853 = vadd.f32 %v1833, %v1849
        %v1854 = vadd.f32 %v1834, %v1850
        %s1855 = sadd.s32 %s1810, 3
        %s1856 = sld [smem:[#allocation3 + %s1855]]
        %v1857 = vstv %s1856
        %v1858 = vmul.f32 %v356, %v1857
        %v1859 = vmul.f32 %v357, %v1857
        %1862 = vrot.lane.b32.xlu0 %v1858, 100
        %v1863 = vpop.permute.xlu0 %1862
        %1864 = vrot.lane.b32.xlu0 %v1859, 100
        %v1865 = vpop.permute.xlu0 %1864
        %v1866 = vrot.slane %v1863, 2
        %v1867 = vrot.slane %v1865, 2
        %v1868 = vsel %vm377, %v1866, %v1867
        %v1869 = vsel %vm421, %v1863, %v1868
        %v1870 = vsel %vm421, %v1865, %v1867
        %v1873 = vadd.f32 %v1853, %v1869
        %v1874 = vadd.f32 %v1854, %v1870
        %s1875 = sadd.s32 %s1810, 4
        %s1876 = sld [smem:[#allocation3 + %s1875]]
        %v1877 = vstv %s1876
        %v1878 = vmul.f32 %v356, %v1877
        %v1879 = vmul.f32 %v357, %v1877
        %1882 = vrot.lane.b32.xlu0 %v1878, 99
        %v1883 = vpop.permute.xlu0 %1882
        %1884 = vrot.lane.b32.xlu0 %v1879, 99
        %v1885 = vpop.permute.xlu0 %1884
        %v1886 = vrot.slane %v1883, 2
        %v1887 = vrot.slane %v1885, 2
        %v1888 = vsel %vm377, %v1886, %v1887
        %v1889 = vsel %vm442, %v1883, %v1888
        %v1890 = vsel %vm442, %v1885, %v1887
        %v1893 = vadd.f32 %v1873, %v1889
        %v1894 = vadd.f32 %v1874, %v1890
        %s1895 = sadd.s32 %s1810, 5
        %s1896 = sld [smem:[#allocation3 + %s1895]]
        %v1897 = vstv %s1896
        %v1898 = vmul.f32 %v356, %v1897
        %v1899 = vmul.f32 %v357, %v1897
        %1902 = vrot.lane.b32.xlu0 %v1898, 98
        %v1903 = vpop.permute.xlu0 %1902
        %1904 = vrot.lane.b32.xlu0 %v1899, 98
        %v1905 = vpop.permute.xlu0 %1904
        %v1906 = vrot.slane %v1903, 2
        %v1907 = vrot.slane %v1905, 2
        %v1908 = vsel %vm377, %v1906, %v1907
        %v1909 = vsel %vm463, %v1903, %v1908
        %v1910 = vsel %vm463, %v1905, %v1907
        %v1913 = vadd.f32 %v1893, %v1909
        %v1914 = vadd.f32 %v1894, %v1910
        %s1915 = sadd.s32 %s1810, 6
        %s1916 = sld [smem:[#allocation3 + %s1915]]
        %v1917 = vstv %s1916
        %v1918 = vmul.f32 %v356, %v1917
        %v1919 = vmul.f32 %v357, %v1917
        %1922 = vrot.lane.b32.xlu0 %v1918, 72
        %v1923 = vpop.permute.xlu0 %1922
        %1924 = vrot.lane.b32.xlu0 %v1919, 72
        %v1925 = vpop.permute.xlu0 %1924
        %v1926 = vrot.slane %v1923, 2
        %v1927 = vrot.slane %v1925, 2
        %v1928 = vsel %vm377, %v1926, %v1927
        %v1929 = vsel %vm484, %v1923, %v1928
        %v1930 = vsel %vm484, %v1925, %v1927
        %v1933 = vadd.f32 %v1913, %v1929
        %v1934 = vadd.f32 %v1914, %v1930
        %s1935 = sadd.s32 %s1810, 7
        %s1936 = sld [smem:[#allocation3 + %s1935]]
        %v1937 = vstv %s1936
        %v1938 = vmul.f32 %v356, %v1937
        %v1939 = vmul.f32 %v357, %v1937
        %1942 = vrot.lane.b32.xlu0 %v1938, 71
        %v1943 = vpop.permute.xlu0 %1942
        %1944 = vrot.lane.b32.xlu0 %v1939, 71
        %v1945 = vpop.permute.xlu0 %1944
        %v1946 = vrot.slane %v1943, 2
        %v1947 = vrot.slane %v1945, 2
        %v1948 = vsel %vm377, %v1946, %v1947
        %v1949 = vsel %vm505, %v1943, %v1948
        %v1950 = vsel %vm505, %v1945, %v1947
        %v1953 = vadd.f32 %v1933, %v1949
        %v1954 = vadd.f32 %v1934, %v1950
        %s1955 = sadd.s32 %s1810, 8
        %s1956 = sld [smem:[#allocation3 + %s1955]]
        %v1957 = vstv %s1956
        %v1958 = vmul.f32 %v356, %v1957
        %v1959 = vmul.f32 %v357, %v1957
        %1962 = vrot.lane.b32.xlu0 %v1958, 70
        %v1963 = vpop.permute.xlu0 %1962
        %1964 = vrot.lane.b32.xlu0 %v1959, 70
        %v1965 = vpop.permute.xlu0 %1964
        %v1966 = vrot.slane %v1963, 2
        %v1967 = vrot.slane %v1965, 2
        %v1968 = vsel %vm377, %v1966, %v1967
        %v1969 = vsel %vm526, %v1963, %v1968
        %v1970 = vsel %vm526, %v1965, %v1967
        %v1973 = vadd.f32 %v1953, %v1969
        %v1974 = vadd.f32 %v1954, %v1970
        %s1975 = sld [smem:[#allocation7 + %s1809]]
        %v1976 = vstv %s1975
        %v1977 = vadd.f32 %v1973, %v1976
        %v1978 = vadd.f32 %v1974, %v1976
        %1981 = vrot.lane.b32.xlu0 %v1977, 127
        %v1982 = vpop.permute.xlu0 %1981
        %1983 = vrot.lane.b32.xlu0 %v1978, 127
        %v1984 = vpop.permute.xlu0 %1983
        %v1985 = vrot.slane %v1982, 2
        %v1986 = vrot.slane %v1984, 2
        %v1987 = vsel %vm377, %v1985, %v1986
        %v1988 = vsel %vm379, %v1982, %v1987
        %v1989 = vsel %vm379, %v1984, %v1986
        %v1992 = vmax.f32 %v1977, %v1988
        %v1993 = vmax.f32 %v1978, %v1989
        %1996 = vrot.lane.b32.xlu0 %v1992, 100
        %v1997 = vpop.permute.xlu0 %1996
        %1998 = vrot.lane.b32.xlu0 %v1993, 100
        %v1999 = vpop.permute.xlu0 %1998
        %v2000 = vrot.slane %v1997, 2
        %v2001 = vrot.slane %v1999, 2
        %v2002 = vsel %vm377, %v2000, %v2001
        %v2003 = vsel %vm421, %v1997, %v2002
        %v2004 = vsel %vm421, %v1999, %v2001
        %v2007 = vmax.f32 %v1992, %v2003
        %v2008 = vmax.f32 %v1993, %v2004
        %v2009 = vmax.f32 %v2007, 0.0
        %v2010 = vmax.f32 %v2008, 0.0
        %v2013 = vcombine.high %v2009, %v2009
        %v2015 = vunpack.c.l.s4 1983009808
        %v2016 = vunpack.c.0.s8 %v2015
        %v2017 = vlaneseq
        %v2018 = vshrl.u32 %v2017, 7
        %v2019 = vsub.s32 %v2016, %v2018
        %v2020 = vrot.slane %v2009, %v2019
        %v2022 = vunpack.c.l.s4 1983009808
        %v2023 = vunpack.c.0.s8 %v2022
        %v2024 = vlaneseq
        %v2025 = vshrl.u32 %v2024, 7
        %v2026 = vsub.s32 %v2023, %v2025
        %v2027 = vrot.slane %v2013, %v2026
        %v2028 = vcombine.high %v2020, %v2020
        %v2029 = vcombine.high %v2027, %v2027
        %v2031 = vunpack.c.l.s4 1983009808
        %v2032 = vunpack.c.0.s8 %v2031
        %v2033 = vlaneseq
        %v2034 = vshrl.u32 %v2033, 7
        %v2035 = vsub.s32 %v2032, %v2034
        %v2036 = vrot.slane %v2010, %v2035
        %v2037 = vcombine.high %v2036, %v2036
        %v2044 = vpack.c.bf16 %v2020, %v2020
        %v2045 = vpack.c.bf16 %v2028, %v2028
        %v2046 = vpack.c.bf16 %v2027, %v2027
        %v2047 = vpack.c.bf16 %v2029, %v2029
        %v2048 = vpack.c.bf16 %v2036, %v2036
        %v2049 = vpack.c.bf16 %v2037, %v2037
        %s2050 = scalar_lea.vmem %s310, 704 [#allocation9]
        %v2051 = vld [vmem:[%s2050] sm:$0xf]
        %v2052 = vld [vmem:[%s2050 + $0x4] sm:$0xf]
        %v2053 = vld [vmem:[%s2050 + $0x8] sm:$0xf]
        %v2054 = vld [vmem:[%s2050 + $0xc] sm:$0xf]
        %v2055 = vld [vmem:[%s2050 + $0x10] sm:$0xf]
        %v2056 = vld [vmem:[%s2050 + $0x14] sm:$0xf]
        %v2057 = vld [vmem:[%s2050 + $0x18] sm:$0xf]
        %v2058 = vld [vmem:[%s2050 + $0x1c] sm:$0xf]
        %v2059 = vld [vmem:[%s2050 + $0x20] sm:$0xf]
        %v2060 = vld [vmem:[%s2050 + $0x24] sm:$0xf]
        %v2061 = vld [vmem:[%s2050 + $0x28] sm:$0xf]
        %v2062 = vld [vmem:[%s2050 + $0x2c] sm:$0xf]
        %v2063 = vld [vmem:[%s2050 + $0x30] sm:$0xf]
        %v2064 = vld [vmem:[%s2050 + $0x34] sm:$0xf]
        %v2065 = vld [vmem:[%s2050 + $0x38] sm:$0xf]
        %v2066 = vld [vmem:[%s2050 + $0x3c] sm:$0xf]
        %v2067 = vld [vmem:[%s2050 + $0x40] sm:$0xf]
        %v2068 = vld [vmem:[%s2050 + $0x44] sm:$0xf]
        %v2069 = vld [vmem:[%s2050 + $0x48] sm:$0xf]
        %v2070 = vld [vmem:[%s2050 + $0x4c] sm:$0xf]
        %v2071 = vld [vmem:[%s2050 + $0x50] sm:$0xf]
        %v2072 = vld [vmem:[%s2050 + $0x54] sm:$0xf]
        %v2073 = vld [vmem:[%s2050 + $0x58] sm:$0xf]
        %v2074 = vld [vmem:[%s2050 + $0x5c] sm:$0xf]
        %v2075 = vld [vmem:[%s2050 + $0x60] sm:$0xf]
        %v2076 = vld [vmem:[%s2050 + $0x64] sm:$0xf]
        %v2077 = vld [vmem:[%s2050 + $0x68] sm:$0xf]
        %v2078 = vld [vmem:[%s2050 + $0x6c] sm:$0xf]
        %v2079 = vld [vmem:[%s2050 + $0x70] sm:$0xf]
        %v2080 = vld [vmem:[%s2050 + $0x74] sm:$0xf]
        %v2081 = vld [vmem:[%s2050 + $0x78] sm:$0xf]
        %v2082 = vld [vmem:[%s2050 + $0x7c] sm:$0xf]
        %v2083 = vld [vmem:[%s2050 + $0x80] sm:$0xf]
        %v2084 = vld [vmem:[%s2050 + $0x84] sm:$0xf]
        %v2085 = vld [vmem:[%s2050 + $0x88] sm:$0xf]
        %v2086 = vld [vmem:[%s2050 + $0x8c] sm:$0xf]
        %v2087 = vld [vmem:[%s2050 + $0x90] sm:$0xf]
        %v2088 = vld [vmem:[%s2050 + $0x94] sm:$0xf]
        %v2089 = vld [vmem:[%s2050 + $0x98] sm:$0xf]
        %v2090 = vld [vmem:[%s2050 + $0x9c] sm:$0xf]
        %v2091 = vld [vmem:[%s2050 + $0xa0] sm:$0xf]
        %v2092 = vld [vmem:[%s2050 + $0xa4] sm:$0xf]
        %v2093 = vld [vmem:[%s2050 + $0xa8] sm:$0xf]
        %v2094 = vld [vmem:[%s2050 + $0xac] sm:$0xf]
        %v2095 = vld [vmem:[%s2050 + $0xb0] sm:$0xf]
        %v2096 = vld [vmem:[%s2050 + $0xb4] sm:$0xf]
        %v2097 = vld [vmem:[%s2050 + $0xb8] sm:$0xf]
        %v2098 = vld [vmem:[%s2050 + $0xbc] sm:$0xf]
        %v2099 = vld [vmem:[%s2050 + $0xc0] sm:$0xf]
        %v2100 = vld [vmem:[%s2050 + $0xc4] sm:$0xf]
        %v2101 = vld [vmem:[%s2050 + $0xc8] sm:$0xf]
        %v2102 = vld [vmem:[%s2050 + $0xcc] sm:$0xf]
        %v2103 = vld [vmem:[%s2050 + $0xd0] sm:$0xf]
        %v2104 = vld [vmem:[%s2050 + $0xd4] sm:$0xf]
        %v2105 = vld [vmem:[%s2050 + $0xd8] sm:$0xf]
        %v2106 = vld [vmem:[%s2050 + $0xdc] sm:$0xf]
        %v2107 = vld [vmem:[%s2050 + $0xe0] sm:$0xf]
        %v2108 = vld [vmem:[%s2050 + $0xe4] sm:$0xf]
        %v2109 = vld [vmem:[%s2050 + $0xe8] sm:$0xf]
        %v2110 = vld [vmem:[%s2050 + $0xec] sm:$0xf]
        %v2111 = vld [vmem:[%s2050 + $0xf0] sm:$0xf]
        %v2112 = vld [vmem:[%s2050 + $0xf4] sm:$0xf]
        %v2113 = vld [vmem:[%s2050 + $0xf8] sm:$0xf]
        %v2114 = vld [vmem:[%s2050 + $0xfc] sm:$0xf]
        %v2115 = vld [vmem:[%s2050 + $0x100] sm:$0xf]
        %v2116 = vld [vmem:[%s2050 + $0x104] sm:$0xf]
        %v2117 = vld [vmem:[%s2050 + $0x108] sm:$0xf]
        %v2118 = vld [vmem:[%s2050 + $0x10c] sm:$0xf]
        %v2119 = vld [vmem:[%s2050 + $0x110] sm:$0xf]
        %v2120 = vld [vmem:[%s2050 + $0x114] sm:$0xf]
        %v2121 = vld [vmem:[%s2050 + $0x118] sm:$0xf]
        %v2122 = vld [vmem:[%s2050 + $0x11c] sm:$0xf]
        %v2123 = vld [vmem:[%s2050 + $0x120] sm:$0xf]
        %v2124 = vld [vmem:[%s2050 + $0x124] sm:$0xf]
        %v2125 = vld [vmem:[%s2050 + $0x128] sm:$0xf]
        %v2126 = vld [vmem:[%s2050 + $0x12c] sm:$0xf]
        %v2127 = vld [vmem:[%s2050 + $0x130] sm:$0xf]
        %v2128 = vld [vmem:[%s2050 + $0x134] sm:$0xf]
        %v2129 = vld [vmem:[%s2050 + $0x138] sm:$0xf]
        %v2130 = vld [vmem:[%s2050 + $0x13c] sm:$0xf]
        %v2131 = vld [vmem:[%s2050 + $0x140] sm:$0xf]
        %v2132 = vld [vmem:[%s2050 + $0x144] sm:$0xf]
        %v2133 = vld [vmem:[%s2050 + $0x148] sm:$0xf]
        %v2134 = vld [vmem:[%s2050 + $0x14c] sm:$0xf]
        %v2135 = vld [vmem:[%s2050 + $0x150] sm:$0xf]
        %v2136 = vld [vmem:[%s2050 + $0x154] sm:$0xf]
        %v2137 = vld [vmem:[%s2050 + $0x158] sm:$0xf]
        %v2138 = vld [vmem:[%s2050 + $0x15c] sm:$0x1]
        %v2227 = vunpack.c.l.b16 %v2051
        %v2228 = vunpack.c.l.b16 %v2052
        %v2229 = vunpack.c.l.b16 %v2053
        %v2230 = vunpack.c.l.b16 %v2054
        %v2231 = vunpack.c.l.b16 %v2055
        %v2232 = vunpack.c.l.b16 %v2056
        %v2233 = vunpack.c.l.b16 %v2057
        %v2234 = vunpack.c.l.b16 %v2058
        %v2235 = vunpack.c.l.b16 %v2059
        %v2236 = vunpack.c.l.b16 %v2060
        %v2237 = vunpack.c.l.b16 %v2061
        %v2238 = vunpack.c.l.b16 %v2062
        %v2239 = vunpack.c.l.b16 %v2063
        %v2240 = vunpack.c.l.b16 %v2064
        %v2241 = vunpack.c.l.b16 %v2065
        %v2242 = vunpack.c.l.b16 %v2066
        %v2243 = vunpack.c.l.b16 %v2067
        %v2244 = vunpack.c.l.b16 %v2068
        %v2245 = vunpack.c.l.b16 %v2069
        %v2246 = vunpack.c.l.b16 %v2070
        %v2247 = vunpack.c.l.b16 %v2071
        %v2248 = vunpack.c.l.b16 %v2072
        %v2249 = vunpack.c.l.b16 %v2073
        %v2250 = vunpack.c.l.b16 %v2074
        %v2251 = vunpack.c.l.b16 %v2075
        %v2252 = vunpack.c.l.b16 %v2076
        %v2253 = vunpack.c.l.b16 %v2077
        %v2254 = vunpack.c.l.b16 %v2078
        %v2255 = vunpack.c.l.b16 %v2079
        %v2256 = vunpack.c.l.b16 %v2080
        %v2257 = vunpack.c.l.b16 %v2081
        %v2258 = vunpack.c.l.b16 %v2082
        %v2259 = vunpack.c.l.b16 %v2083
        %v2260 = vunpack.c.l.b16 %v2084
        %v2261 = vunpack.c.l.b16 %v2085
        %v2262 = vunpack.c.l.b16 %v2086
        %v2263 = vunpack.c.l.b16 %v2087
        %v2264 = vunpack.c.l.b16 %v2088
        %v2265 = vunpack.c.l.b16 %v2089
        %v2266 = vunpack.c.l.b16 %v2090
        %v2267 = vunpack.c.l.b16 %v2091
        %v2268 = vunpack.c.l.b16 %v2092
        %v2269 = vunpack.c.l.b16 %v2093
        %v2270 = vunpack.c.l.b16 %v2094
        %v2271 = vunpack.c.l.b16 %v2095
        %v2272 = vunpack.c.l.b16 %v2096
        %v2273 = vunpack.c.l.b16 %v2097
        %v2274 = vunpack.c.l.b16 %v2098
        %v2275 = vunpack.c.l.b16 %v2099
        %v2276 = vunpack.c.l.b16 %v2100
        %v2277 = vunpack.c.l.b16 %v2101
        %v2278 = vunpack.c.l.b16 %v2102
        %v2279 = vunpack.c.l.b16 %v2103
        %v2280 = vunpack.c.l.b16 %v2104
        %v2281 = vunpack.c.l.b16 %v2105
        %v2282 = vunpack.c.l.b16 %v2106
        %v2283 = vunpack.c.l.b16 %v2107
        %v2284 = vunpack.c.l.b16 %v2108
        %v2285 = vunpack.c.l.b16 %v2109
        %v2286 = vunpack.c.l.b16 %v2110
        %v2287 = vunpack.c.l.b16 %v2111
        %v2288 = vunpack.c.l.b16 %v2112
        %v2289 = vunpack.c.l.b16 %v2113
        %v2290 = vunpack.c.l.b16 %v2114
        %v2291 = vunpack.c.l.b16 %v2115
        %v2292 = vunpack.c.l.b16 %v2116
        %v2293 = vunpack.c.l.b16 %v2117
        %v2294 = vunpack.c.l.b16 %v2118
        %v2295 = vunpack.c.l.b16 %v2119
        %v2296 = vunpack.c.l.b16 %v2120
        %v2297 = vunpack.c.l.b16 %v2121
        %v2298 = vunpack.c.l.b16 %v2122
        %v2299 = vunpack.c.l.b16 %v2123
        %v2300 = vunpack.c.l.b16 %v2124
        %v2301 = vunpack.c.l.b16 %v2125
        %v2302 = vunpack.c.l.b16 %v2126
        %v2303 = vunpack.c.l.b16 %v2127
        %v2304 = vunpack.c.l.b16 %v2128
        %v2305 = vunpack.c.l.b16 %v2129
        %v2306 = vunpack.c.l.b16 %v2130
        %v2307 = vunpack.c.l.b16 %v2131
        %v2308 = vunpack.c.l.b16 %v2132
        %v2309 = vunpack.c.l.b16 %v2133
        %v2310 = vunpack.c.l.b16 %v2134
        %v2311 = vunpack.c.l.b16 %v2135
        %v2312 = vunpack.c.l.b16 %v2136
        %v2313 = vunpack.c.l.b16 %v2137
        %v2314 = vunpack.c.l.b16 %v2138
        %v2315 = vpack.c.b16 %v2228, %v2227
        %v2316 = vpack.c.b16 %v2230, %v2229
        %v2317 = vpack.c.b16 %v2232, %v2231
        %v2318 = vpack.c.b16 %v2234, %v2233
        %v2319 = vpack.c.b16 %v2236, %v2235
        %v2320 = vpack.c.b16 %v2238, %v2237
        %v2321 = vpack.c.b16 %v2240, %v2239
        %v2322 = vpack.c.b16 %v2242, %v2241
        %v2323 = vpack.c.b16 %v2244, %v2243
        %v2324 = vpack.c.b16 %v2246, %v2245
        %v2325 = vpack.c.b16 %v2248, %v2247
        %v2326 = vpack.c.b16 %v2250, %v2249
        %v2327 = vpack.c.b16 %v2252, %v2251
        %v2328 = vpack.c.b16 %v2254, %v2253
        %v2329 = vpack.c.b16 %v2256, %v2255
        %v2330 = vpack.c.b16 %v2258, %v2257
        %v2331 = vpack.c.b16 %v2260, %v2259
        %v2332 = vpack.c.b16 %v2262, %v2261
        %v2333 = vpack.c.b16 %v2264, %v2263
        %v2334 = vpack.c.b16 %v2266, %v2265
        %v2335 = vpack.c.b16 %v2268, %v2267
        %v2336 = vpack.c.b16 %v2270, %v2269
        %v2337 = vpack.c.b16 %v2272, %v2271
        %v2338 = vpack.c.b16 %v2274, %v2273
        %v2339 = vpack.c.b16 %v2276, %v2275
        %v2340 = vpack.c.b16 %v2278, %v2277
        %v2341 = vpack.c.b16 %v2280, %v2279
        %v2342 = vpack.c.b16 %v2282, %v2281
        %v2343 = vpack.c.b16 %v2284, %v2283
        %v2344 = vpack.c.b16 %v2286, %v2285
        %v2345 = vpack.c.b16 %v2288, %v2287
        %v2346 = vpack.c.b16 %v2290, %v2289
        %v2347 = vpack.c.b16 %v2292, %v2291
        %v2348 = vpack.c.b16 %v2294, %v2293
        %v2349 = vpack.c.b16 %v2296, %v2295
        %v2350 = vpack.c.b16 %v2298, %v2297
        %v2351 = vpack.c.b16 %v2300, %v2299
        %v2352 = vpack.c.b16 %v2302, %v2301
        %v2353 = vpack.c.b16 %v2304, %v2303
        %v2354 = vpack.c.b16 %v2306, %v2305
        %v2355 = vpack.c.b16 %v2308, %v2307
        %v2356 = vpack.c.b16 %v2310, %v2309
        %v2357 = vpack.c.b16 %v2312, %v2311
        %v2358 = vpack.c.b16 %v2314, %v2313
        %v2403 = vsel %vm1289, %v2049, 0
        %v2406 = vand.u32 %v2358, %v1296
        %2408 = vmatprep.subr.bf16.mxu0 0
        %2409 = vmatpush1.bf16.msra.mxu0 %v2315
        %2410 = vmatprep.subr.bf16.mxu0 0
        %2411 = vmatpush1.bf16.msra.mxu0 %v2316
        %2412 = vmatprep.subr.bf16.mxu0 0
        %2413 = vmatpush1.bf16.msra.mxu0 %v2317
        %2414 = vmatprep.subr.bf16.mxu0 0
        %2415 = vmatpush1.bf16.msra.mxu0 %v2318
        %2416 = vmatprep.subr.bf16.mxu0 0
        %2417 = vmatpush1.bf16.msra.mxu0 %v2319
        %2418 = vmatprep.subr.bf16.mxu0 0
        %2419 = vmatpush1.bf16.msra.mxu0 %v2320
        %2420 = vmatprep.subr.bf16.mxu0 0
        %2421 = vmatpush1.bf16.msra.mxu0 %v2321
        %2422 = vmatprep.subr.bf16.mxu0 0
        %2423 = vmatpush1.bf16.msra.mxu0 %v2322
        %2424 = vmatprep.subr.bf16.mxu0 0
        %2425 = vmatpush1.bf16.msra.mxu0 %v2323
        %2426 = vmatprep.subr.bf16.mxu0 0
        %2427 = vmatpush1.bf16.msra.mxu0 %v2324
        %2428 = vmatprep.subr.bf16.mxu0 0
        %2429 = vmatpush1.bf16.msra.mxu0 %v2325
        %2430 = vmatprep.subr.bf16.mxu0 0
        %2431 = vmatpush1.bf16.msra.mxu0 %v2326
        %2432 = vmatprep.subr.bf16.mxu0 0
        %2433 = vmatpush1.bf16.msra.mxu0 %v2327
        %2434 = vmatprep.subr.bf16.mxu0 0
        %2435 = vmatpush1.bf16.msra.mxu0 %v2328
        %2436 = vmatprep.subr.bf16.mxu0 0
        %2437 = vmatpush1.bf16.msra.mxu0 %v2329
        %2438 = vmatprep.subr.bf16.mxu0 0
        %2439 = vmatpush1.bf16.msra.mxu0 %v2330
        %2440 = vmatprep.mubr.bf16.mxu0 %v2045
        %2441 = vmatmul.mubr.bf16.gmra.mrb[0].mxu0 %v2044
        %v2442 = vpop.f32.mrb[0].mxu0
        %v2443 = vadd.f32 0.0, %v2442
        %v2444 = vpop.f32.mrb[0].mxu0
        %v2445 = vpop.f32.mrb[0].mxu0
        %v2446 = vpop.f32.mrb[0].mxu0
        %2447 = vdwg.mxu0
        %2448 = vmatprep.subr.bf16.mxu0 0
        %2449 = vmatpush1.bf16.msra.mxu0 %v2331
        %2450 = vmatprep.subr.bf16.mxu0 0
        %2451 = vmatpush1.bf16.msra.mxu0 %v2332
        %2452 = vmatprep.subr.bf16.mxu0 0
        %2453 = vmatpush1.bf16.msra.mxu0 %v2333
        %2454 = vmatprep.subr.bf16.mxu0 0
        %2455 = vmatpush1.bf16.msra.mxu0 %v2334
        %2456 = vmatprep.subr.bf16.mxu0 0
        %2457 = vmatpush1.bf16.msra.mxu0 %v2335
        %2458 = vmatprep.subr.bf16.mxu0 0
        %2459 = vmatpush1.bf16.msra.mxu0 %v2336
        %2460 = vmatprep.subr.bf16.mxu0 0
        %2461 = vmatpush1.bf16.msra.mxu0 %v2337
        %2462 = vmatprep.subr.bf16.mxu0 0
        %2463 = vmatpush1.bf16.msra.mxu0 %v2338
        %2464 = vmatprep.subr.bf16.mxu0 0
        %2465 = vmatpush1.bf16.msra.mxu0 %v2339
        %2466 = vmatprep.subr.bf16.mxu0 0
        %2467 = vmatpush1.bf16.msra.mxu0 %v2340
        %2468 = vmatprep.subr.bf16.mxu0 0
        %2469 = vmatpush1.bf16.msra.mxu0 %v2341
        %2470 = vmatprep.subr.bf16.mxu0 0
        %2471 = vmatpush1.bf16.msra.mxu0 %v2342
        %2472 = vmatprep.subr.bf16.mxu0 0
        %2473 = vmatpush1.bf16.msra.mxu0 %v2343
        %2474 = vmatprep.subr.bf16.mxu0 0
        %2475 = vmatpush1.bf16.msra.mxu0 %v2344
        %2476 = vmatprep.subr.bf16.mxu0 0
        %2477 = vmatpush1.bf16.msra.mxu0 %v2345
        %2478 = vmatprep.subr.bf16.mxu0 0
        %2479 = vmatpush1.bf16.msra.mxu0 %v2346
        %2480 = vmatprep.mubr.bf16.mxu0 %v2047
        %2481 = vmatmul.mubr.bf16.gmra.mrb[0].mxu0 %v2046
        %v2482 = vpop.f32.mrb[0].mxu0
        %v2483 = vadd.f32 %v2443, %v2482
        %v2484 = vpop.f32.mrb[0].mxu0
        %v2485 = vpop.f32.mrb[0].mxu0
        %v2486 = vpop.f32.mrb[0].mxu0
        %2487 = vdwg.mxu0
        %2488 = vmatprep.subr.bf16.mxu0 0
        %2489 = vmatpush1.bf16.msra.mxu0 %v2347
        %2490 = vmatprep.subr.bf16.mxu0 0
        %2491 = vmatpush1.bf16.msra.mxu0 %v2348
        %2492 = vmatprep.subr.bf16.mxu0 0
        %2493 = vmatpush1.bf16.msra.mxu0 %v2349
        %2494 = vmatprep.subr.bf16.mxu0 0
        %2495 = vmatpush1.bf16.msra.mxu0 %v2350
        %2496 = vmatprep.subr.bf16.mxu0 0
        %2497 = vmatpush1.bf16.msra.mxu0 %v2351
        %2498 = vmatprep.subr.bf16.mxu0 0
        %2499 = vmatpush1.bf16.msra.mxu0 %v2352
        %2500 = vmatprep.subr.bf16.mxu0 0
        %2501 = vmatpush1.bf16.msra.mxu0 %v2353
        %2502 = vmatprep.subr.bf16.mxu0 0
        %2503 = vmatpush1.bf16.msra.mxu0 %v2354
        %2504 = vmatprep.subr.bf16.mxu0 0
        %2505 = vmatpush1.bf16.msra.mxu0 %v2355
        %2506 = vmatprep.subr.bf16.mxu0 0
        %2507 = vmatpush1.bf16.msra.mxu0 %v2356
        %2508 = vmatprep.subr.bf16.mxu0 0
        %2509 = vmatpush1.bf16.msra.mxu0 %v2357
        %2510 = vmatprep.subr.bf16.mxu0 0
        %2511 = vmatpush1.bf16.msra.mxu0 %v2406
        %2512 = vmatprep.subr.bf16.mxu0 0
        %2513 = vmatpush1.bf16.msra.mxu0 0
        %2514 = vmatprep.subr.bf16.mxu0 0
        %2515 = vmatpush1.bf16.msra.mxu0 0
        %2516 = vmatprep.subr.bf16.mxu0 0
        %2517 = vmatpush1.bf16.msra.mxu0 0
        %2518 = vmatprep.subr.bf16.mxu0 0
        %2519 = vmatpush1.bf16.msra.mxu0 0
        %2520 = vmatprep.mubr.bf16.mxu0 %v2403
        %2521 = vmatmul.mubr.bf16.gmra.mrb[0].mxu0 %v2048
        %v2522 = vpop.f32.mrb[0].mxu0
        %v2523 = vadd.f32 %v2483, %v2522
        %v2524 = vpop.f32.mrb[0].mxu0
        %v2525 = vpop.f32.mrb[0].mxu0
        %v2526 = vpop.f32.mrb[0].mxu0
        %2527 = vdwg.mxu0
        %v2528 = vadd.f32 %v1804, %v2523
        %s2529 = sadd.s32 %s358, 3
        %s2530 = smul.u32 %s2529, 9
        %s2531 = sld [smem:[#allocation3 + %s2530]]
        %v2532 = vstv %s2531
        %v2533 = vmul.f32 %v356, %v2532
        %v2534 = vmul.f32 %v357, %v2532
        %s2535 = sadd.s32 %s2530, 1
        %s2536 = sld [smem:[#allocation3 + %s2535]]
        %v2537 = vstv %s2536
        %v2538 = vmul.f32 %v356, %v2537
        %v2539 = vmul.f32 %v357, %v2537
        %2542 = vrot.lane.b32.xlu0 %v2538, 127
        %v2543 = vpop.permute.xlu0 %2542
        %2544 = vrot.lane.b32.xlu0 %v2539, 127
        %v2545 = vpop.permute.xlu0 %2544
        %v2546 = vrot.slane %v2543, 2
        %v2547 = vrot.slane %v2545, 2
        %v2548 = vsel %vm377, %v2546, %v2547
        %v2549 = vsel %vm379, %v2543, %v2548
        %v2550 = vsel %vm379, %v2545, %v2547
        %v2553 = vadd.f32 %v2533, %v2549
        %v2554 = vadd.f32 %v2534, %v2550
        %s2555 = sadd.s32 %s2530, 2
        %s2556 = sld [smem:[#allocation3 + %s2555]]
        %v2557 = vstv %s2556
        %v2558 = vmul.f32 %v356, %v2557
        %v2559 = vmul.f32 %v357, %v2557
        %2562 = vrot.lane.b32.xlu0 %v2558, 126
        %v2563 = vpop.permute.xlu0 %2562
        %2564 = vrot.lane.b32.xlu0 %v2559, 126
        %v2565 = vpop.permute.xlu0 %2564
        %v2566 = vrot.slane %v2563, 2
        %v2567 = vrot.slane %v2565, 2
        %v2568 = vsel %vm377, %v2566, %v2567
        %v2569 = vsel %vm400, %v2563, %v2568
        %v2570 = vsel %vm400, %v2565, %v2567
        %v2573 = vadd.f32 %v2553, %v2569
        %v2574 = vadd.f32 %v2554, %v2570
        %s2575 = sadd.s32 %s2530, 3
        %s2576 = sld [smem:[#allocation3 + %s2575]]
        %v2577 = vstv %s2576
        %v2578 = vmul.f32 %v356, %v2577
        %v2579 = vmul.f32 %v357, %v2577
        %2582 = vrot.lane.b32.xlu0 %v2578, 100
        %v2583 = vpop.permute.xlu0 %2582
        %2584 = vrot.lane.b32.xlu0 %v2579, 100
        %v2585 = vpop.permute.xlu0 %2584
        %v2586 = vrot.slane %v2583, 2
        %v2587 = vrot.slane %v2585, 2
        %v2588 = vsel %vm377, %v2586, %v2587
        %v2589 = vsel %vm421, %v2583, %v2588
        %v2590 = vsel %vm421, %v2585, %v2587
        %v2593 = vadd.f32 %v2573, %v2589
        %v2594 = vadd.f32 %v2574, %v2590
        %s2595 = sadd.s32 %s2530, 4
        %s2596 = sld [smem:[#allocation3 + %s2595]]
        %v2597 = vstv %s2596
        %v2598 = vmul.f32 %v356, %v2597
        %v2599 = vmul.f32 %v357, %v2597
        %2602 = vrot.lane.b32.xlu0 %v2598, 99
        %v2603 = vpop.permute.xlu0 %2602
        %2604 = vrot.lane.b32.xlu0 %v2599, 99
        %v2605 = vpop.permute.xlu0 %2604
        %v2606 = vrot.slane %v2603, 2
        %v2607 = vrot.slane %v2605, 2
        %v2608 = vsel %vm377, %v2606, %v2607
        %v2609 = vsel %vm442, %v2603, %v2608
        %v2610 = vsel %vm442, %v2605, %v2607
        %v2613 = vadd.f32 %v2593, %v2609
        %v2614 = vadd.f32 %v2594, %v2610
        %s2615 = sadd.s32 %s2530, 5
        %s2616 = sld [smem:[#allocation3 + %s2615]]
        %v2617 = vstv %s2616
        %v2618 = vmul.f32 %v356, %v2617
        %v2619 = vmul.f32 %v357, %v2617
        %2622 = vrot.lane.b32.xlu0 %v2618, 98
        %v2623 = vpop.permute.xlu0 %2622
        %2624 = vrot.lane.b32.xlu0 %v2619, 98
        %v2625 = vpop.permute.xlu0 %2624
        %v2626 = vrot.slane %v2623, 2
        %v2627 = vrot.slane %v2625, 2
        %v2628 = vsel %vm377, %v2626, %v2627
        %v2629 = vsel %vm463, %v2623, %v2628
        %v2630 = vsel %vm463, %v2625, %v2627
        %v2633 = vadd.f32 %v2613, %v2629
        %v2634 = vadd.f32 %v2614, %v2630
        %s2635 = sadd.s32 %s2530, 6
        %s2636 = sld [smem:[#allocation3 + %s2635]]
        %v2637 = vstv %s2636
        %v2638 = vmul.f32 %v356, %v2637
        %v2639 = vmul.f32 %v357, %v2637
        %2642 = vrot.lane.b32.xlu0 %v2638, 72
        %v2643 = vpop.permute.xlu0 %2642
        %2644 = vrot.lane.b32.xlu0 %v2639, 72
        %v2645 = vpop.permute.xlu0 %2644
        %v2646 = vrot.slane %v2643, 2
        %v2647 = vrot.slane %v2645, 2
        %v2648 = vsel %vm377, %v2646, %v2647
        %v2649 = vsel %vm484, %v2643, %v2648
        %v2650 = vsel %vm484, %v2645, %v2647
        %v2653 = vadd.f32 %v2633, %v2649
        %v2654 = vadd.f32 %v2634, %v2650
        %s2655 = sadd.s32 %s2530, 7
        %s2656 = sld [smem:[#allocation3 + %s2655]]
        %v2657 = vstv %s2656
        %v2658 = vmul.f32 %v356, %v2657
        %v2659 = vmul.f32 %v357, %v2657
        %2662 = vrot.lane.b32.xlu0 %v2658, 71
        %v2663 = vpop.permute.xlu0 %2662
        %2664 = vrot.lane.b32.xlu0 %v2659, 71
        %v2665 = vpop.permute.xlu0 %2664
        %v2666 = vrot.slane %v2663, 2
        %v2667 = vrot.slane %v2665, 2
        %v2668 = vsel %vm377, %v2666, %v2667
        %v2669 = vsel %vm505, %v2663, %v2668
        %v2670 = vsel %vm505, %v2665, %v2667
        %v2673 = vadd.f32 %v2653, %v2669
        %v2674 = vadd.f32 %v2654, %v2670
        %s2675 = sadd.s32 %s2530, 8
        %s2676 = sld [smem:[#allocation3 + %s2675]]
        %v2677 = vstv %s2676
        %v2678 = vmul.f32 %v356, %v2677
        %v2679 = vmul.f32 %v357, %v2677
        %2682 = vrot.lane.b32.xlu0 %v2678, 70
        %v2683 = vpop.permute.xlu0 %2682
        %2684 = vrot.lane.b32.xlu0 %v2679, 70
        %v2685 = vpop.permute.xlu0 %2684
        %v2686 = vrot.slane %v2683, 2
        %v2687 = vrot.slane %v2685, 2
        %v2688 = vsel %vm377, %v2686, %v2687
        %v2689 = vsel %vm526, %v2683, %v2688
        %v2690 = vsel %vm526, %v2685, %v2687
        %v2693 = vadd.f32 %v2673, %v2689
        %v2694 = vadd.f32 %v2674, %v2690
        %s2695 = sld [smem:[#allocation7 + %s2529]]
        %v2696 = vstv %s2695
        %v2697 = vadd.f32 %v2693, %v2696
        %v2698 = vadd.f32 %v2694, %v2696
        %2701 = vrot.lane.b32.xlu0 %v2697, 127
        %v2702 = vpop.permute.xlu0 %2701
        %2703 = vrot.lane.b32.xlu0 %v2698, 127
        %v2704 = vpop.permute.xlu0 %2703
        %v2705 = vrot.slane %v2702, 2
        %v2706 = vrot.slane %v2704, 2
        %v2707 = vsel %vm377, %v2705, %v2706
        %v2708 = vsel %vm379, %v2702, %v2707
        %v2709 = vsel %vm379, %v2704, %v2706
        %v2712 = vmax.f32 %v2697, %v2708
        %v2713 = vmax.f32 %v2698, %v2709
        %2716 = vrot.lane.b32.xlu0 %v2712, 100
        %v2717 = vpop.permute.xlu0 %2716
        %2718 = vrot.lane.b32.xlu0 %v2713, 100
        %v2719 = vpop.permute.xlu0 %2718
        %v2720 = vrot.slane %v2717, 2
        %v2721 = vrot.slane %v2719, 2
        %v2722 = vsel %vm377, %v2720, %v2721
        %v2723 = vsel %vm421, %v2717, %v2722
        %v2724 = vsel %vm421, %v2719, %v2721
        %v2727 = vmax.f32 %v2712, %v2723
        %v2728 = vmax.f32 %v2713, %v2724
        %v2729 = vmax.f32 %v2727, 0.0
        %v2730 = vmax.f32 %v2728, 0.0
        %v2733 = vcombine.high %v2729, %v2729
        %v2735 = vunpack.c.l.s4 1983009808
        %v2736 = vunpack.c.0.s8 %v2735
        %v2737 = vlaneseq
        %v2738 = vshrl.u32 %v2737, 7
        %v2739 = vsub.s32 %v2736, %v2738
        %v2740 = vrot.slane %v2729, %v2739
        %v2742 = vunpack.c.l.s4 1983009808
        %v2743 = vunpack.c.0.s8 %v2742
        %v2744 = vlaneseq
        %v2745 = vshrl.u32 %v2744, 7
        %v2746 = vsub.s32 %v2743, %v2745
        %v2747 = vrot.slane %v2733, %v2746
        %v2748 = vcombine.high %v2740, %v2740
        %v2749 = vcombine.high %v2747, %v2747
        %v2751 = vunpack.c.l.s4 1983009808
        %v2752 = vunpack.c.0.s8 %v2751
        %v2753 = vlaneseq
        %v2754 = vshrl.u32 %v2753, 7
        %v2755 = vsub.s32 %v2752, %v2754
        %v2756 = vrot.slane %v2730, %v2755
        %v2757 = vcombine.high %v2756, %v2756
        %v2764 = vpack.c.bf16 %v2740, %v2740
        %v2765 = vpack.c.bf16 %v2748, %v2748
        %v2766 = vpack.c.bf16 %v2747, %v2747
        %v2767 = vpack.c.bf16 %v2749, %v2749
        %v2768 = vpack.c.bf16 %v2756, %v2756
        %v2769 = vpack.c.bf16 %v2757, %v2757
        %s2770 = scalar_lea.vmem %s310, 1056 [#allocation9]
        %v2771 = vld [vmem:[%s2770] sm:$0xf]
        %v2772 = vld [vmem:[%s2770 + $0x4] sm:$0xf]
        %v2773 = vld [vmem:[%s2770 + $0x8] sm:$0xf]
        %v2774 = vld [vmem:[%s2770 + $0xc] sm:$0xf]
        %v2775 = vld [vmem:[%s2770 + $0x10] sm:$0xf]
        %v2776 = vld [vmem:[%s2770 + $0x14] sm:$0xf]
        %v2777 = vld [vmem:[%s2770 + $0x18] sm:$0xf]
        %v2778 = vld [vmem:[%s2770 + $0x1c] sm:$0xf]
        %v2779 = vld [vmem:[%s2770 + $0x20] sm:$0xf]
        %v2780 = vld [vmem:[%s2770 + $0x24] sm:$0xf]
        %v2781 = vld [vmem:[%s2770 + $0x28] sm:$0xf]
        %v2782 = vld [vmem:[%s2770 + $0x2c] sm:$0xf]
        %v2783 = vld [vmem:[%s2770 + $0x30] sm:$0xf]
        %v2784 = vld [vmem:[%s2770 + $0x34] sm:$0xf]
        %v2785 = vld [vmem:[%s2770 + $0x38] sm:$0xf]
        %v2786 = vld [vmem:[%s2770 + $0x3c] sm:$0xf]
        %v2787 = vld [vmem:[%s2770 + $0x40] sm:$0xf]
        %v2788 = vld [vmem:[%s2770 + $0x44] sm:$0xf]
        %v2789 = vld [vmem:[%s2770 + $0x48] sm:$0xf]
        %v2790 = vld [vmem:[%s2770 + $0x4c] sm:$0xf]
        %v2791 = vld [vmem:[%s2770 + $0x50] sm:$0xf]
        %v2792 = vld [vmem:[%s2770 + $0x54] sm:$0xf]
        %v2793 = vld [vmem:[%s2770 + $0x58] sm:$0xf]
        %v2794 = vld [vmem:[%s2770 + $0x5c] sm:$0xf]
        %v2795 = vld [vmem:[%s2770 + $0x60] sm:$0xf]
        %v2796 = vld [vmem:[%s2770 + $0x64] sm:$0xf]
        %v2797 = vld [vmem:[%s2770 + $0x68] sm:$0xf]
        %v2798 = vld [vmem:[%s2770 + $0x6c] sm:$0xf]
        %v2799 = vld [vmem:[%s2770 + $0x70] sm:$0xf]
        %v2800 = vld [vmem:[%s2770 + $0x74] sm:$0xf]
        %v2801 = vld [vmem:[%s2770 + $0x78] sm:$0xf]
        %v2802 = vld [vmem:[%s2770 + $0x7c] sm:$0xf]
        %v2803 = vld [vmem:[%s2770 + $0x80] sm:$0xf]
        %v2804 = vld [vmem:[%s2770 + $0x84] sm:$0xf]
        %v2805 = vld [vmem:[%s2770 + $0x88] sm:$0xf]
        %v2806 = vld [vmem:[%s2770 + $0x8c] sm:$0xf]
        %v2807 = vld [vmem:[%s2770 + $0x90] sm:$0xf]
        %v2808 = vld [vmem:[%s2770 + $0x94] sm:$0xf]
        %v2809 = vld [vmem:[%s2770 + $0x98] sm:$0xf]
        %v2810 = vld [vmem:[%s2770 + $0x9c] sm:$0xf]
        %v2811 = vld [vmem:[%s2770 + $0xa0] sm:$0xf]
        %v2812 = vld [vmem:[%s2770 + $0xa4] sm:$0xf]
        %v2813 = vld [vmem:[%s2770 + $0xa8] sm:$0xf]
        %v2814 = vld [vmem:[%s2770 + $0xac] sm:$0xf]
        %v2815 = vld [vmem:[%s2770 + $0xb0] sm:$0xf]
        %v2816 = vld [vmem:[%s2770 + $0xb4] sm:$0xf]
        %v2817 = vld [vmem:[%s2770 + $0xb8] sm:$0xf]
        %v2818 = vld [vmem:[%s2770 + $0xbc] sm:$0xf]
        %v2819 = vld [vmem:[%s2770 + $0xc0] sm:$0xf]
        %v2820 = vld [vmem:[%s2770 + $0xc4] sm:$0xf]
        %v2821 = vld [vmem:[%s2770 + $0xc8] sm:$0xf]
        %v2822 = vld [vmem:[%s2770 + $0xcc] sm:$0xf]
        %v2823 = vld [vmem:[%s2770 + $0xd0] sm:$0xf]
        %v2824 = vld [vmem:[%s2770 + $0xd4] sm:$0xf]
        %v2825 = vld [vmem:[%s2770 + $0xd8] sm:$0xf]
        %v2826 = vld [vmem:[%s2770 + $0xdc] sm:$0xf]
        %v2827 = vld [vmem:[%s2770 + $0xe0] sm:$0xf]
        %v2828 = vld [vmem:[%s2770 + $0xe4] sm:$0xf]
        %v2829 = vld [vmem:[%s2770 + $0xe8] sm:$0xf]
        %v2830 = vld [vmem:[%s2770 + $0xec] sm:$0xf]
        %v2831 = vld [vmem:[%s2770 + $0xf0] sm:$0xf]
        %v2832 = vld [vmem:[%s2770 + $0xf4] sm:$0xf]
        %v2833 = vld [vmem:[%s2770 + $0xf8] sm:$0xf]
        %v2834 = vld [vmem:[%s2770 + $0xfc] sm:$0xf]
        %v2835 = vld [vmem:[%s2770 + $0x100] sm:$0xf]
        %v2836 = vld [vmem:[%s2770 + $0x104] sm:$0xf]
        %v2837 = vld [vmem:[%s2770 + $0x108] sm:$0xf]
        %v2838 = vld [vmem:[%s2770 + $0x10c] sm:$0xf]
        %v2839 = vld [vmem:[%s2770 + $0x110] sm:$0xf]
        %v2840 = vld [vmem:[%s2770 + $0x114] sm:$0xf]
        %v2841 = vld [vmem:[%s2770 + $0x118] sm:$0xf]
        %v2842 = vld [vmem:[%s2770 + $0x11c] sm:$0xf]
        %v2843 = vld [vmem:[%s2770 + $0x120] sm:$0xf]
        %v2844 = vld [vmem:[%s2770 + $0x124] sm:$0xf]
        %v2845 = vld [vmem:[%s2770 + $0x128] sm:$0xf]
        %v2846 = vld [vmem:[%s2770 + $0x12c] sm:$0xf]
        %v2847 = vld [vmem:[%s2770 + $0x130] sm:$0xf]
        %v2848 = vld [vmem:[%s2770 + $0x134] sm:$0xf]
        %v2849 = vld [vmem:[%s2770 + $0x138] sm:$0xf]
        %v2850 = vld [vmem:[%s2770 + $0x13c] sm:$0xf]
        %v2851 = vld [vmem:[%s2770 + $0x140] sm:$0xf]
        %v2852 = vld [vmem:[%s2770 + $0x144] sm:$0xf]
        %v2853 = vld [vmem:[%s2770 + $0x148] sm:$0xf]
        %v2854 = vld [vmem:[%s2770 + $0x14c] sm:$0xf]
        %v2855 = vld [vmem:[%s2770 + $0x150] sm:$0xf]
        %v2856 = vld [vmem:[%s2770 + $0x154] sm:$0xf]
        %v2857 = vld [vmem:[%s2770 + $0x158] sm:$0xf]
        %v2858 = vld [vmem:[%s2770 + $0x15c] sm:$0x1]
        %v2947 = vunpack.c.l.b16 %v2771
        %v2948 = vunpack.c.l.b16 %v2772
        %v2949 = vunpack.c.l.b16 %v2773
        %v2950 = vunpack.c.l.b16 %v2774
        %v2951 = vunpack.c.l.b16 %v2775
        %v2952 = vunpack.c.l.b16 %v2776
        %v2953 = vunpack.c.l.b16 %v2777
        %v2954 = vunpack.c.l.b16 %v2778
        %v2955 = vunpack.c.l.b16 %v2779
        %v2956 = vunpack.c.l.b16 %v2780
        %v2957 = vunpack.c.l.b16 %v2781
        %v2958 = vunpack.c.l.b16 %v2782
        %v2959 = vunpack.c.l.b16 %v2783
        %v2960 = vunpack.c.l.b16 %v2784
        %v2961 = vunpack.c.l.b16 %v2785
        %v2962 = vunpack.c.l.b16 %v2786
        %v2963 = vunpack.c.l.b16 %v2787
        %v2964 = vunpack.c.l.b16 %v2788
        %v2965 = vunpack.c.l.b16 %v2789
        %v2966 = vunpack.c.l.b16 %v2790
        %v2967 = vunpack.c.l.b16 %v2791
        %v2968 = vunpack.c.l.b16 %v2792
        %v2969 = vunpack.c.l.b16 %v2793
        %v2970 = vunpack.c.l.b16 %v2794
        %v2971 = vunpack.c.l.b16 %v2795
        %v2972 = vunpack.c.l.b16 %v2796
        %v2973 = vunpack.c.l.b16 %v2797
        %v2974 = vunpack.c.l.b16 %v2798
        %v2975 = vunpack.c.l.b16 %v2799
        %v2976 = vunpack.c.l.b16 %v2800
        %v2977 = vunpack.c.l.b16 %v2801
        %v2978 = vunpack.c.l.b16 %v2802
        %v2979 = vunpack.c.l.b16 %v2803
        %v2980 = vunpack.c.l.b16 %v2804
        %v2981 = vunpack.c.l.b16 %v2805
        %v2982 = vunpack.c.l.b16 %v2806
        %v2983 = vunpack.c.l.b16 %v2807
        %v2984 = vunpack.c.l.b16 %v2808
        %v2985 = vunpack.c.l.b16 %v2809
        %v2986 = vunpack.c.l.b16 %v2810
        %v2987 = vunpack.c.l.b16 %v2811
        %v2988 = vunpack.c.l.b16 %v2812
        %v2989 = vunpack.c.l.b16 %v2813
        %v2990 = vunpack.c.l.b16 %v2814
        %v2991 = vunpack.c.l.b16 %v2815
        %v2992 = vunpack.c.l.b16 %v2816
        %v2993 = vunpack.c.l.b16 %v2817
        %v2994 = vunpack.c.l.b16 %v2818
        %v2995 = vunpack.c.l.b16 %v2819
        %v2996 = vunpack.c.l.b16 %v2820
        %v2997 = vunpack.c.l.b16 %v2821
        %v2998 = vunpack.c.l.b16 %v2822
        %v2999 = vunpack.c.l.b16 %v2823
        %v3000 = vunpack.c.l.b16 %v2824
        %v3001 = vunpack.c.l.b16 %v2825
        %v3002 = vunpack.c.l.b16 %v2826
        %v3003 = vunpack.c.l.b16 %v2827
        %v3004 = vunpack.c.l.b16 %v2828
        %v3005 = vunpack.c.l.b16 %v2829
        %v3006 = vunpack.c.l.b16 %v2830
        %v3007 = vunpack.c.l.b16 %v2831
        %v3008 = vunpack.c.l.b16 %v2832
        %v3009 = vunpack.c.l.b16 %v2833
        %v3010 = vunpack.c.l.b16 %v2834
        %v3011 = vunpack.c.l.b16 %v2835
        %v3012 = vunpack.c.l.b16 %v2836
        %v3013 = vunpack.c.l.b16 %v2837
        %v3014 = vunpack.c.l.b16 %v2838
        %v3015 = vunpack.c.l.b16 %v2839
        %v3016 = vunpack.c.l.b16 %v2840
        %v3017 = vunpack.c.l.b16 %v2841
        %v3018 = vunpack.c.l.b16 %v2842
        %v3019 = vunpack.c.l.b16 %v2843
        %v3020 = vunpack.c.l.b16 %v2844
        %v3021 = vunpack.c.l.b16 %v2845
        %v3022 = vunpack.c.l.b16 %v2846
        %v3023 = vunpack.c.l.b16 %v2847
        %v3024 = vunpack.c.l.b16 %v2848
        %v3025 = vunpack.c.l.b16 %v2849
        %v3026 = vunpack.c.l.b16 %v2850
        %v3027 = vunpack.c.l.b16 %v2851
        %v3028 = vunpack.c.l.b16 %v2852
        %v3029 = vunpack.c.l.b16 %v2853
        %v3030 = vunpack.c.l.b16 %v2854
        %v3031 = vunpack.c.l.b16 %v2855
        %v3032 = vunpack.c.l.b16 %v2856
        %v3033 = vunpack.c.l.b16 %v2857
        %v3034 = vunpack.c.l.b16 %v2858
        %v3035 = vpack.c.b16 %v2948, %v2947
        %v3036 = vpack.c.b16 %v2950, %v2949
        %v3037 = vpack.c.b16 %v2952, %v2951
        %v3038 = vpack.c.b16 %v2954, %v2953
        %v3039 = vpack.c.b16 %v2956, %v2955
        %v3040 = vpack.c.b16 %v2958, %v2957
        %v3041 = vpack.c.b16 %v2960, %v2959
        %v3042 = vpack.c.b16 %v2962, %v2961
        %v3043 = vpack.c.b16 %v2964, %v2963
        %v3044 = vpack.c.b16 %v2966, %v2965
        %v3045 = vpack.c.b16 %v2968, %v2967
        %v3046 = vpack.c.b16 %v2970, %v2969
        %v3047 = vpack.c.b16 %v2972, %v2971
        %v3048 = vpack.c.b16 %v2974, %v2973
        %v3049 = vpack.c.b16 %v2976, %v2975
        %v3050 = vpack.c.b16 %v2978, %v2977
        %v3051 = vpack.c.b16 %v2980, %v2979
        %v3052 = vpack.c.b16 %v2982, %v2981
        %v3053 = vpack.c.b16 %v2984, %v2983
        %v3054 = vpack.c.b16 %v2986, %v2985
        %v3055 = vpack.c.b16 %v2988, %v2987
        %v3056 = vpack.c.b16 %v2990, %v2989
        %v3057 = vpack.c.b16 %v2992, %v2991
        %v3058 = vpack.c.b16 %v2994, %v2993
        %v3059 = vpack.c.b16 %v2996, %v2995
        %v3060 = vpack.c.b16 %v2998, %v2997
        %v3061 = vpack.c.b16 %v3000, %v2999
        %v3062 = vpack.c.b16 %v3002, %v3001
        %v3063 = vpack.c.b16 %v3004, %v3003
        %v3064 = vpack.c.b16 %v3006, %v3005
        %v3065 = vpack.c.b16 %v3008, %v3007
        %v3066 = vpack.c.b16 %v3010, %v3009
        %v3067 = vpack.c.b16 %v3012, %v3011
        %v3068 = vpack.c.b16 %v3014, %v3013
        %v3069 = vpack.c.b16 %v3016, %v3015
        %v3070 = vpack.c.b16 %v3018, %v3017
        %v3071 = vpack.c.b16 %v3020, %v3019
        %v3072 = vpack.c.b16 %v3022, %v3021
        %v3073 = vpack.c.b16 %v3024, %v3023
        %v3074 = vpack.c.b16 %v3026, %v3025
        %v3075 = vpack.c.b16 %v3028, %v3027
        %v3076 = vpack.c.b16 %v3030, %v3029
        %v3077 = vpack.c.b16 %v3032, %v3031
        %v3078 = vpack.c.b16 %v3034, %v3033
        %v3123 = vsel %vm1289, %v2769, 0
        %v3126 = vand.u32 %v3078, %v1296
        %3128 = vmatprep.subr.bf16.mxu0 0
        %3129 = vmatpush1.bf16.msra.mxu0 %v3035
        %3130 = vmatprep.subr.bf16.mxu0 0
        %3131 = vmatpush1.bf16.msra.mxu0 %v3036
        %3132 = vmatprep.subr.bf16.mxu0 0
        %3133 = vmatpush1.bf16.msra.mxu0 %v3037
        %3134 = vmatprep.subr.bf16.mxu0 0
        %3135 = vmatpush1.bf16.msra.mxu0 %v3038
        %3136 = vmatprep.subr.bf16.mxu0 0
        %3137 = vmatpush1.bf16.msra.mxu0 %v3039
        %3138 = vmatprep.subr.bf16.mxu0 0
        %3139 = vmatpush1.bf16.msra.mxu0 %v3040
        %3140 = vmatprep.subr.bf16.mxu0 0
        %3141 = vmatpush1.bf16.msra.mxu0 %v3041
        %3142 = vmatprep.subr.bf16.mxu0 0
        %3143 = vmatpush1.bf16.msra.mxu0 %v3042
        %3144 = vmatprep.subr.bf16.mxu0 0
        %3145 = vmatpush1.bf16.msra.mxu0 %v3043
        %3146 = vmatprep.subr.bf16.mxu0 0
        %3147 = vmatpush1.bf16.msra.mxu0 %v3044
        %3148 = vmatprep.subr.bf16.mxu0 0
        %3149 = vmatpush1.bf16.msra.mxu0 %v3045
        %3150 = vmatprep.subr.bf16.mxu0 0
        %3151 = vmatpush1.bf16.msra.mxu0 %v3046
        %3152 = vmatprep.subr.bf16.mxu0 0
        %3153 = vmatpush1.bf16.msra.mxu0 %v3047
        %3154 = vmatprep.subr.bf16.mxu0 0
        %3155 = vmatpush1.bf16.msra.mxu0 %v3048
        %3156 = vmatprep.subr.bf16.mxu0 0
        %3157 = vmatpush1.bf16.msra.mxu0 %v3049
        %3158 = vmatprep.subr.bf16.mxu0 0
        %3159 = vmatpush1.bf16.msra.mxu0 %v3050
        %3160 = vmatprep.mubr.bf16.mxu0 %v2765
        %3161 = vmatmul.mubr.bf16.gmra.mrb[0].mxu0 %v2764
        %v3162 = vpop.f32.mrb[0].mxu0
        %v3163 = vadd.f32 0.0, %v3162
        %v3164 = vpop.f32.mrb[0].mxu0
        %v3165 = vpop.f32.mrb[0].mxu0
        %v3166 = vpop.f32.mrb[0].mxu0
        %3167 = vdwg.mxu0
        %3168 = vmatprep.subr.bf16.mxu0 0
        %3169 = vmatpush1.bf16.msra.mxu0 %v3051
        %3170 = vmatprep.subr.bf16.mxu0 0
        %3171 = vmatpush1.bf16.msra.mxu0 %v3052
        %3172 = vmatprep.subr.bf16.mxu0 0
        %3173 = vmatpush1.bf16.msra.mxu0 %v3053
        %3174 = vmatprep.subr.bf16.mxu0 0
        %3175 = vmatpush1.bf16.msra.mxu0 %v3054
        %3176 = vmatprep.subr.bf16.mxu0 0
        %3177 = vmatpush1.bf16.msra.mxu0 %v3055
        %3178 = vmatprep.subr.bf16.mxu0 0
        %3179 = vmatpush1.bf16.msra.mxu0 %v3056
        %3180 = vmatprep.subr.bf16.mxu0 0
        %3181 = vmatpush1.bf16.msra.mxu0 %v3057
        %3182 = vmatprep.subr.bf16.mxu0 0
        %3183 = vmatpush1.bf16.msra.mxu0 %v3058
        %3184 = vmatprep.subr.bf16.mxu0 0
        %3185 = vmatpush1.bf16.msra.mxu0 %v3059
        %3186 = vmatprep.subr.bf16.mxu0 0
        %3187 = vmatpush1.bf16.msra.mxu0 %v3060
        %3188 = vmatprep.subr.bf16.mxu0 0
        %3189 = vmatpush1.bf16.msra.mxu0 %v3061
        %3190 = vmatprep.subr.bf16.mxu0 0
        %3191 = vmatpush1.bf16.msra.mxu0 %v3062
        %3192 = vmatprep.subr.bf16.mxu0 0
        %3193 = vmatpush1.bf16.msra.mxu0 %v3063
        %3194 = vmatprep.subr.bf16.mxu0 0
        %3195 = vmatpush1.bf16.msra.mxu0 %v3064
        %3196 = vmatprep.subr.bf16.mxu0 0
        %3197 = vmatpush1.bf16.msra.mxu0 %v3065
        %3198 = vmatprep.subr.bf16.mxu0 0
        %3199 = vmatpush1.bf16.msra.mxu0 %v3066
        %3200 = vmatprep.mubr.bf16.mxu0 %v2767
        %3201 = vmatmul.mubr.bf16.gmra.mrb[0].mxu0 %v2766
        %v3202 = vpop.f32.mrb[0].mxu0
        %v3203 = vadd.f32 %v3163, %v3202
        %v3204 = vpop.f32.mrb[0].mxu0
        %v3205 = vpop.f32.mrb[0].mxu0
        %v3206 = vpop.f32.mrb[0].mxu0
        %3207 = vdwg.mxu0
        %3208 = vmatprep.subr.bf16.mxu0 0
        %3209 = vmatpush1.bf16.msra.mxu0 %v3067
        %3210 = vmatprep.subr.bf16.mxu0 0
        %3211 = vmatpush1.bf16.msra.mxu0 %v3068
        %3212 = vmatprep.subr.bf16.mxu0 0
        %3213 = vmatpush1.bf16.msra.mxu0 %v3069
        %3214 = vmatprep.subr.bf16.mxu0 0
        %3215 = vmatpush1.bf16.msra.mxu0 %v3070
        %3216 = vmatprep.subr.bf16.mxu0 0
        %3217 = vmatpush1.bf16.msra.mxu0 %v3071
        %3218 = vmatprep.subr.bf16.mxu0 0
        %3219 = vmatpush1.bf16.msra.mxu0 %v3072
        %3220 = vmatprep.subr.bf16.mxu0 0
        %3221 = vmatpush1.bf16.msra.mxu0 %v3073
        %3222 = vmatprep.subr.bf16.mxu0 0
        %3223 = vmatpush1.bf16.msra.mxu0 %v3074
        %3224 = vmatprep.subr.bf16.mxu0 0
        %3225 = vmatpush1.bf16.msra.mxu0 %v3075
        %3226 = vmatprep.subr.bf16.mxu0 0
        %3227 = vmatpush1.bf16.msra.mxu0 %v3076
        %3228 = vmatprep.subr.bf16.mxu0 0
        %3229 = vmatpush1.bf16.msra.mxu0 %v3077
        %3230 = vmatprep.subr.bf16.mxu0 0
        %3231 = vmatpush1.bf16.msra.mxu0 %v3126
        %3232 = vmatprep.subr.bf16.mxu0 0
        %3233 = vmatpush1.bf16.msra.mxu0 0
        %3234 = vmatprep.subr.bf16.mxu0 0
        %3235 = vmatpush1.bf16.msra.mxu0 0
        %3236 = vmatprep.subr.bf16.mxu0 0
        %3237 = vmatpush1.bf16.msra.mxu0 0
        %3238 = vmatprep.subr.bf16.mxu0 0
        %3239 = vmatpush1.bf16.msra.mxu0 0
        %3240 = vmatprep.mubr.bf16.mxu0 %v3123
        %3241 = vmatmul.mubr.bf16.gmra.mrb[0].mxu0 %v2768
        %v3242 = vpop.f32.mrb[0].mxu0
        %v3243 = vadd.f32 %v3203, %v3242
        %v3244 = vpop.f32.mrb[0].mxu0
        %v3245 = vpop.f32.mrb[0].mxu0
        %v3246 = vpop.f32.mrb[0].mxu0
        %3247 = vdwg.mxu0
        %v3248 = vadd.f32 %v2528, %v3243
        %s3249 = sadd.s32 %s358, 4
        %s3250 = smul.u32 %s3249, 9
        %s3251 = sld [smem:[#allocation3 + %s3250]]
        %v3252 = vstv %s3251
        %v3253 = vmul.f32 %v356, %v3252
        %v3254 = vmul.f32 %v357, %v3252
        %s3255 = sadd.s32 %s3250, 1
        %s3256 = sld [smem:[#allocation3 + %s3255]]
        %v3257 = vstv %s3256
        %v3258 = vmul.f32 %v356, %v3257
        %v3259 = vmul.f32 %v357, %v3257
        %3262 = vrot.lane.b32.xlu0 %v3258, 127
        %v3263 = vpop.permute.xlu0 %3262
        %3264 = vrot.lane.b32.xlu0 %v3259, 127
        %v3265 = vpop.permute.xlu0 %3264
        %v3266 = vrot.slane %v3263, 2
        %v3267 = vrot.slane %v3265, 2
        %v3268 = vsel %vm377, %v3266, %v3267
        %v3269 = vsel %vm379, %v3263, %v3268
        %v3270 = vsel %vm379, %v3265, %v3267
        %v3273 = vadd.f32 %v3253, %v3269
        %v3274 = vadd.f32 %v3254, %v3270
        %s3275 = sadd.s32 %s3250, 2
        %s3276 = sld [smem:[#allocation3 + %s3275]]
        %v3277 = vstv %s3276
        %v3278 = vmul.f32 %v356, %v3277
        %v3279 = vmul.f32 %v357, %v3277
        %3282 = vrot.lane.b32.xlu0 %v3278, 126
        %v3283 = vpop.permute.xlu0 %3282
        %3284 = vrot.lane.b32.xlu0 %v3279, 126
        %v3285 = vpop.permute.xlu0 %3284
        %v3286 = vrot.slane %v3283, 2
        %v3287 = vrot.slane %v3285, 2
        %v3288 = vsel %vm377, %v3286, %v3287
        %v3289 = vsel %vm400, %v3283, %v3288
        %v3290 = vsel %vm400, %v3285, %v3287
        %v3293 = vadd.f32 %v3273, %v3289
        %v3294 = vadd.f32 %v3274, %v3290
        %s3295 = sadd.s32 %s3250, 3
        %s3296 = sld [smem:[#allocation3 + %s3295]]
        %v3297 = vstv %s3296
        %v3298 = vmul.f32 %v356, %v3297
        %v3299 = vmul.f32 %v357, %v3297
        %3302 = vrot.lane.b32.xlu0 %v3298, 100
        %v3303 = vpop.permute.xlu0 %3302
        %3304 = vrot.lane.b32.xlu0 %v3299, 100
        %v3305 = vpop.permute.xlu0 %3304
        %v3306 = vrot.slane %v3303, 2
        %v3307 = vrot.slane %v3305, 2
        %v3308 = vsel %vm377, %v3306, %v3307
        %v3309 = vsel %vm421, %v3303, %v3308
        %v3310 = vsel %vm421, %v3305, %v3307
        %v3313 = vadd.f32 %v3293, %v3309
        %v3314 = vadd.f32 %v3294, %v3310
        %s3315 = sadd.s32 %s3250, 4
        %s3316 = sld [smem:[#allocation3 + %s3315]]
        %v3317 = vstv %s3316
        %v3318 = vmul.f32 %v356, %v3317
        %v3319 = vmul.f32 %v357, %v3317
        %3322 = vrot.lane.b32.xlu0 %v3318, 99
        %v3323 = vpop.permute.xlu0 %3322
        %3324 = vrot.lane.b32.xlu0 %v3319, 99
        %v3325 = vpop.permute.xlu0 %3324
        %v3326 = vrot.slane %v3323, 2
        %v3327 = vrot.slane %v3325, 2
        %v3328 = vsel %vm377, %v3326, %v3327
        %v3329 = vsel %vm442, %v3323, %v3328
        %v3330 = vsel %vm442, %v3325, %v3327
        %v3333 = vadd.f32 %v3313, %v3329
        %v3334 = vadd.f32 %v3314, %v3330
        %s3335 = sadd.s32 %s3250, 5
        %s3336 = sld [smem:[#allocation3 + %s3335]]
        %v3337 = vstv %s3336
        %v3338 = vmul.f32 %v356, %v3337
        %v3339 = vmul.f32 %v357, %v3337
        %3342 = vrot.lane.b32.xlu0 %v3338, 98
        %v3343 = vpop.permute.xlu0 %3342
        %3344 = vrot.lane.b32.xlu0 %v3339, 98
        %v3345 = vpop.permute.xlu0 %3344
        %v3346 = vrot.slane %v3343, 2
        %v3347 = vrot.slane %v3345, 2
        %v3348 = vsel %vm377, %v3346, %v3347
        %v3349 = vsel %vm463, %v3343, %v3348
        %v3350 = vsel %vm463, %v3345, %v3347
        %v3353 = vadd.f32 %v3333, %v3349
        %v3354 = vadd.f32 %v3334, %v3350
        %s3355 = sadd.s32 %s3250, 6
        %s3356 = sld [smem:[#allocation3 + %s3355]]
        %v3357 = vstv %s3356
        %v3358 = vmul.f32 %v356, %v3357
        %v3359 = vmul.f32 %v357, %v3357
        %3362 = vrot.lane.b32.xlu0 %v3358, 72
        %v3363 = vpop.permute.xlu0 %3362
        %3364 = vrot.lane.b32.xlu0 %v3359, 72
        %v3365 = vpop.permute.xlu0 %3364
        %v3366 = vrot.slane %v3363, 2
        %v3367 = vrot.slane %v3365, 2
        %v3368 = vsel %vm377, %v3366, %v3367
        %v3369 = vsel %vm484, %v3363, %v3368
        %v3370 = vsel %vm484, %v3365, %v3367
        %v3373 = vadd.f32 %v3353, %v3369
        %v3374 = vadd.f32 %v3354, %v3370
        %s3375 = sadd.s32 %s3250, 7
        %s3376 = sld [smem:[#allocation3 + %s3375]]
        %v3377 = vstv %s3376
        %v3378 = vmul.f32 %v356, %v3377
        %v3379 = vmul.f32 %v357, %v3377
        %3382 = vrot.lane.b32.xlu0 %v3378, 71
        %v3383 = vpop.permute.xlu0 %3382
        %3384 = vrot.lane.b32.xlu0 %v3379, 71
        %v3385 = vpop.permute.xlu0 %3384
        %v3386 = vrot.slane %v3383, 2
        %v3387 = vrot.slane %v3385, 2
        %v3388 = vsel %vm377, %v3386, %v3387
        %v3389 = vsel %vm505, %v3383, %v3388
        %v3390 = vsel %vm505, %v3385, %v3387
        %v3393 = vadd.f32 %v3373, %v3389
        %v3394 = vadd.f32 %v3374, %v3390
        %s3395 = sadd.s32 %s3250, 8
        %s3396 = sld [smem:[#allocation3 + %s3395]]
        %v3397 = vstv %s3396
        %v3398 = vmul.f32 %v356, %v3397
        %v3399 = vmul.f32 %v357, %v3397
        %3402 = vrot.lane.b32.xlu0 %v3398, 70
        %v3403 = vpop.permute.xlu0 %3402
        %3404 = vrot.lane.b32.xlu0 %v3399, 70
        %v3405 = vpop.permute.xlu0 %3404
        %v3406 = vrot.slane %v3403, 2
        %v3407 = vrot.slane %v3405, 2
        %v3408 = vsel %vm377, %v3406, %v3407
        %v3409 = vsel %vm526, %v3403, %v3408
        %v3410 = vsel %vm526, %v3405, %v3407
        %v3413 = vadd.f32 %v3393, %v3409
        %v3414 = vadd.f32 %v3394, %v3410
        %s3415 = sld [smem:[#allocation7 + %s3249]]
        %v3416 = vstv %s3415
        %v3417 = vadd.f32 %v3413, %v3416
        %v3418 = vadd.f32 %v3414, %v3416
        %3421 = vrot.lane.b32.xlu0 %v3417, 127
        %v3422 = vpop.permute.xlu0 %3421
        %3423 = vrot.lane.b32.xlu0 %v3418, 127
        %v3424 = vpop.permute.xlu0 %3423
        %v3425 = vrot.slane %v3422, 2
        %v3426 = vrot.slane %v3424, 2
        %v3427 = vsel %vm377, %v3425, %v3426
        %v3428 = vsel %vm379, %v3422, %v3427
        %v3429 = vsel %vm379, %v3424, %v3426
        %v3432 = vmax.f32 %v3417, %v3428
        %v3433 = vmax.f32 %v3418, %v3429
        %3436 = vrot.lane.b32.xlu0 %v3432, 100
        %v3437 = vpop.permute.xlu0 %3436
        %3438 = vrot.lane.b32.xlu0 %v3433, 100
        %v3439 = vpop.permute.xlu0 %3438
        %v3440 = vrot.slane %v3437, 2
        %v3441 = vrot.slane %v3439, 2
        %v3442 = vsel %vm377, %v3440, %v3441
        %v3443 = vsel %vm421, %v3437, %v3442
        %v3444 = vsel %vm421, %v3439, %v3441
        %v3447 = vmax.f32 %v3432, %v3443
        %v3448 = vmax.f32 %v3433, %v3444
        %v3449 = vmax.f32 %v3447, 0.0
        %v3450 = vmax.f32 %v3448, 0.0
        %v3453 = vcombine.high %v3449, %v3449
        %v3455 = vunpack.c.l.s4 1983009808
        %v3456 = vunpack.c.0.s8 %v3455
        %v3457 = vlaneseq
        %v3458 = vshrl.u32 %v3457, 7
        %v3459 = vsub.s32 %v3456, %v3458
        %v3460 = vrot.slane %v3449, %v3459
        %v3462 = vunpack.c.l.s4 1983009808
        %v3463 = vunpack.c.0.s8 %v3462
        %v3464 = vlaneseq
        %v3465 = vshrl.u32 %v3464, 7
        %v3466 = vsub.s32 %v3463, %v3465
        %v3467 = vrot.slane %v3453, %v3466
        %v3468 = vcombine.high %v3460, %v3460
        %v3469 = vcombine.high %v3467, %v3467
        %v3471 = vunpack.c.l.s4 1983009808
        %v3472 = vunpack.c.0.s8 %v3471
        %v3473 = vlaneseq
        %v3474 = vshrl.u32 %v3473, 7
        %v3475 = vsub.s32 %v3472, %v3474
        %v3476 = vrot.slane %v3450, %v3475
        %v3477 = vcombine.high %v3476, %v3476
        %v3484 = vpack.c.bf16 %v3460, %v3460
        %v3485 = vpack.c.bf16 %v3468, %v3468
        %v3486 = vpack.c.bf16 %v3467, %v3467
        %v3487 = vpack.c.bf16 %v3469, %v3469
        %v3488 = vpack.c.bf16 %v3476, %v3476
        %v3489 = vpack.c.bf16 %v3477, %v3477
        %s3490 = scalar_lea.vmem %s310, 1408 [#allocation9]
        %v3491 = vld [vmem:[%s3490] sm:$0xf]
        %v3492 = vld [vmem:[%s3490 + $0x4] sm:$0xf]
        %v3493 = vld [vmem:[%s3490 + $0x8] sm:$0xf]
        %v3494 = vld [vmem:[%s3490 + $0xc] sm:$0xf]
        %v3495 = vld [vmem:[%s3490 + $0x10] sm:$0xf]
        %v3496 = vld [vmem:[%s3490 + $0x14] sm:$0xf]
        %v3497 = vld [vmem:[%s3490 + $0x18] sm:$0xf]
        %v3498 = vld [vmem:[%s3490 + $0x1c] sm:$0xf]
        %v3499 = vld [vmem:[%s3490 + $0x20] sm:$0xf]
        %v3500 = vld [vmem:[%s3490 + $0x24] sm:$0xf]
        %v3501 = vld [vmem:[%s3490 + $0x28] sm:$0xf]
        %v3502 = vld [vmem:[%s3490 + $0x2c] sm:$0xf]
        %v3503 = vld [vmem:[%s3490 + $0x30] sm:$0xf]
        %v3504 = vld [vmem:[%s3490 + $0x34] sm:$0xf]
        %v3505 = vld [vmem:[%s3490 + $0x38] sm:$0xf]
        %v3506 = vld [vmem:[%s3490 + $0x3c] sm:$0xf]
        %v3507 = vld [vmem:[%s3490 + $0x40] sm:$0xf]
        %v3508 = vld [vmem:[%s3490 + $0x44] sm:$0xf]
        %v3509 = vld [vmem:[%s3490 + $0x48] sm:$0xf]
        %v3510 = vld [vmem:[%s3490 + $0x4c] sm:$0xf]
        %v3511 = vld [vmem:[%s3490 + $0x50] sm:$0xf]
        %v3512 = vld [vmem:[%s3490 + $0x54] sm:$0xf]
        %v3513 = vld [vmem:[%s3490 + $0x58] sm:$0xf]
        %v3514 = vld [vmem:[%s3490 + $0x5c] sm:$0xf]
        %v3515 = vld [vmem:[%s3490 + $0x60] sm:$0xf]
        %v3516 = vld [vmem:[%s3490 + $0x64] sm:$0xf]
        %v3517 = vld [vmem:[%s3490 + $0x68] sm:$0xf]
        %v3518 = vld [vmem:[%s3490 + $0x6c] sm:$0xf]
        %v3519 = vld [vmem:[%s3490 + $0x70] sm:$0xf]
        %v3520 = vld [vmem:[%s3490 + $0x74] sm:$0xf]
        %v3521 = vld [vmem:[%s3490 + $0x78] sm:$0xf]
        %v3522 = vld [vmem:[%s3490 + $0x7c] sm:$0xf]
        %v3523 = vld [vmem:[%s3490 + $0x80] sm:$0xf]
        %v3524 = vld [vmem:[%s3490 + $0x84] sm:$0xf]
        %v3525 = vld [vmem:[%s3490 + $0x88] sm:$0xf]
        %v3526 = vld [vmem:[%s3490 + $0x8c] sm:$0xf]
        %v3527 = vld [vmem:[%s3490 + $0x90] sm:$0xf]
        %v3528 = vld [vmem:[%s3490 + $0x94] sm:$0xf]
        %v3529 = vld [vmem:[%s3490 + $0x98] sm:$0xf]
        %v3530 = vld [vmem:[%s3490 + $0x9c] sm:$0xf]
        %v3531 = vld [vmem:[%s3490 + $0xa0] sm:$0xf]
        %v3532 = vld [vmem:[%s3490 + $0xa4] sm:$0xf]
        %v3533 = vld [vmem:[%s3490 + $0xa8] sm:$0xf]
        %v3534 = vld [vmem:[%s3490 + $0xac] sm:$0xf]
        %v3535 = vld [vmem:[%s3490 + $0xb0] sm:$0xf]
        %v3536 = vld [vmem:[%s3490 + $0xb4] sm:$0xf]
        %v3537 = vld [vmem:[%s3490 + $0xb8] sm:$0xf]
        %v3538 = vld [vmem:[%s3490 + $0xbc] sm:$0xf]
        %v3539 = vld [vmem:[%s3490 + $0xc0] sm:$0xf]
        %v3540 = vld [vmem:[%s3490 + $0xc4] sm:$0xf]
        %v3541 = vld [vmem:[%s3490 + $0xc8] sm:$0xf]
        %v3542 = vld [vmem:[%s3490 + $0xcc] sm:$0xf]
        %v3543 = vld [vmem:[%s3490 + $0xd0] sm:$0xf]
        %v3544 = vld [vmem:[%s3490 + $0xd4] sm:$0xf]
        %v3545 = vld [vmem:[%s3490 + $0xd8] sm:$0xf]
        %v3546 = vld [vmem:[%s3490 + $0xdc] sm:$0xf]
        %v3547 = vld [vmem:[%s3490 + $0xe0] sm:$0xf]
        %v3548 = vld [vmem:[%s3490 + $0xe4] sm:$0xf]
        %v3549 = vld [vmem:[%s3490 + $0xe8] sm:$0xf]
        %v3550 = vld [vmem:[%s3490 + $0xec] sm:$0xf]
        %v3551 = vld [vmem:[%s3490 + $0xf0] sm:$0xf]
        %v3552 = vld [vmem:[%s3490 + $0xf4] sm:$0xf]
        %v3553 = vld [vmem:[%s3490 + $0xf8] sm:$0xf]
        %v3554 = vld [vmem:[%s3490 + $0xfc] sm:$0xf]
        %v3555 = vld [vmem:[%s3490 + $0x100] sm:$0xf]
        %v3556 = vld [vmem:[%s3490 + $0x104] sm:$0xf]
        %v3557 = vld [vmem:[%s3490 + $0x108] sm:$0xf]
        %v3558 = vld [vmem:[%s3490 + $0x10c] sm:$0xf]
        %v3559 = vld [vmem:[%s3490 + $0x110] sm:$0xf]
        %v3560 = vld [vmem:[%s3490 + $0x114] sm:$0xf]
        %v3561 = vld [vmem:[%s3490 + $0x118] sm:$0xf]
        %v3562 = vld [vmem:[%s3490 + $0x11c] sm:$0xf]
        %v3563 = vld [vmem:[%s3490 + $0x120] sm:$0xf]
        %v3564 = vld [vmem:[%s3490 + $0x124] sm:$0xf]
        %v3565 = vld [vmem:[%s3490 + $0x128] sm:$0xf]
        %v3566 = vld [vmem:[%s3490 + $0x12c] sm:$0xf]
        %v3567 = vld [vmem:[%s3490 + $0x130] sm:$0xf]
        %v3568 = vld [vmem:[%s3490 + $0x134] sm:$0xf]
        %v3569 = vld [vmem:[%s3490 + $0x138] sm:$0xf]
        %v3570 = vld [vmem:[%s3490 + $0x13c] sm:$0xf]
        %v3571 = vld [vmem:[%s3490 + $0x140] sm:$0xf]
        %v3572 = vld [vmem:[%s3490 + $0x144] sm:$0xf]
        %v3573 = vld [vmem:[%s3490 + $0x148] sm:$0xf]
        %v3574 = vld [vmem:[%s3490 + $0x14c] sm:$0xf]
        %v3575 = vld [vmem:[%s3490 + $0x150] sm:$0xf]
        %v3576 = vld [vmem:[%s3490 + $0x154] sm:$0xf]
        %v3577 = vld [vmem:[%s3490 + $0x158] sm:$0xf]
        %v3578 = vld [vmem:[%s3490 + $0x15c] sm:$0x1]
        %v3667 = vunpack.c.l.b16 %v3491
        %v3668 = vunpack.c.l.b16 %v3492
        %v3669 = vunpack.c.l.b16 %v3493
        %v3670 = vunpack.c.l.b16 %v3494
        %v3671 = vunpack.c.l.b16 %v3495
        %v3672 = vunpack.c.l.b16 %v3496
        %v3673 = vunpack.c.l.b16 %v3497
        %v3674 = vunpack.c.l.b16 %v3498
        %v3675 = vunpack.c.l.b16 %v3499
        %v3676 = vunpack.c.l.b16 %v3500
        %v3677 = vunpack.c.l.b16 %v3501
        %v3678 = vunpack.c.l.b16 %v3502
        %v3679 = vunpack.c.l.b16 %v3503
        %v3680 = vunpack.c.l.b16 %v3504
        %v3681 = vunpack.c.l.b16 %v3505
        %v3682 = vunpack.c.l.b16 %v3506
        %v3683 = vunpack.c.l.b16 %v3507
        %v3684 = vunpack.c.l.b16 %v3508
        %v3685 = vunpack.c.l.b16 %v3509
        %v3686 = vunpack.c.l.b16 %v3510
        %v3687 = vunpack.c.l.b16 %v3511
        %v3688 = vunpack.c.l.b16 %v3512
        %v3689 = vunpack.c.l.b16 %v3513
        %v3690 = vunpack.c.l.b16 %v3514
        %v3691 = vunpack.c.l.b16 %v3515
        %v3692 = vunpack.c.l.b16 %v3516
        %v3693 = vunpack.c.l.b16 %v3517
        %v3694 = vunpack.c.l.b16 %v3518
        %v3695 = vunpack.c.l.b16 %v3519
        %v3696 = vunpack.c.l.b16 %v3520
        %v3697 = vunpack.c.l.b16 %v3521
        %v3698 = vunpack.c.l.b16 %v3522
        %v3699 = vunpack.c.l.b16 %v3523
        %v3700 = vunpack.c.l.b16 %v3524
        %v3701 = vunpack.c.l.b16 %v3525
        %v3702 = vunpack.c.l.b16 %v3526
        %v3703 = vunpack.c.l.b16 %v3527
        %v3704 = vunpack.c.l.b16 %v3528
        %v3705 = vunpack.c.l.b16 %v3529
        %v3706 = vunpack.c.l.b16 %v3530
        %v3707 = vunpack.c.l.b16 %v3531
        %v3708 = vunpack.c.l.b16 %v3532
        %v3709 = vunpack.c.l.b16 %v3533
        %v3710 = vunpack.c.l.b16 %v3534
        %v3711 = vunpack.c.l.b16 %v3535
        %v3712 = vunpack.c.l.b16 %v3536
        %v3713 = vunpack.c.l.b16 %v3537
        %v3714 = vunpack.c.l.b16 %v3538
        %v3715 = vunpack.c.l.b16 %v3539
        %v3716 = vunpack.c.l.b16 %v3540
        %v3717 = vunpack.c.l.b16 %v3541
        %v3718 = vunpack.c.l.b16 %v3542
        %v3719 = vunpack.c.l.b16 %v3543
        %v3720 = vunpack.c.l.b16 %v3544
        %v3721 = vunpack.c.l.b16 %v3545
        %v3722 = vunpack.c.l.b16 %v3546
        %v3723 = vunpack.c.l.b16 %v3547
        %v3724 = vunpack.c.l.b16 %v3548
        %v3725 = vunpack.c.l.b16 %v3549
        %v3726 = vunpack.c.l.b16 %v3550
        %v3727 = vunpack.c.l.b16 %v3551
        %v3728 = vunpack.c.l.b16 %v3552
        %v3729 = vunpack.c.l.b16 %v3553
        %v3730 = vunpack.c.l.b16 %v3554
        %v3731 = vunpack.c.l.b16 %v3555
        %v3732 = vunpack.c.l.b16 %v3556
        %v3733 = vunpack.c.l.b16 %v3557
        %v3734 = vunpack.c.l.b16 %v3558
        %v3735 = vunpack.c.l.b16 %v3559
        %v3736 = vunpack.c.l.b16 %v3560
        %v3737 = vunpack.c.l.b16 %v3561
        %v3738 = vunpack.c.l.b16 %v3562
        %v3739 = vunpack.c.l.b16 %v3563
        %v3740 = vunpack.c.l.b16 %v3564
        %v3741 = vunpack.c.l.b16 %v3565
        %v3742 = vunpack.c.l.b16 %v3566
        %v3743 = vunpack.c.l.b16 %v3567
        %v3744 = vunpack.c.l.b16 %v3568
        %v3745 = vunpack.c.l.b16 %v3569
        %v3746 = vunpack.c.l.b16 %v3570
        %v3747 = vunpack.c.l.b16 %v3571
        %v3748 = vunpack.c.l.b16 %v3572
        %v3749 = vunpack.c.l.b16 %v3573
        %v3750 = vunpack.c.l.b16 %v3574
        %v3751 = vunpack.c.l.b16 %v3575
        %v3752 = vunpack.c.l.b16 %v3576
        %v3753 = vunpack.c.l.b16 %v3577
        %v3754 = vunpack.c.l.b16 %v3578
        %v3755 = vpack.c.b16 %v3668, %v3667
        %v3756 = vpack.c.b16 %v3670, %v3669
        %v3757 = vpack.c.b16 %v3672, %v3671
        %v3758 = vpack.c.b16 %v3674, %v3673
        %v3759 = vpack.c.b16 %v3676, %v3675
        %v3760 = vpack.c.b16 %v3678, %v3677
        %v3761 = vpack.c.b16 %v3680, %v3679
        %v3762 = vpack.c.b16 %v3682, %v3681
        %v3763 = vpack.c.b16 %v3684, %v3683
        %v3764 = vpack.c.b16 %v3686, %v3685
        %v3765 = vpack.c.b16 %v3688, %v3687
        %v3766 = vpack.c.b16 %v3690, %v3689
        %v3767 = vpack.c.b16 %v3692, %v3691
        %v3768 = vpack.c.b16 %v3694, %v3693
        %v3769 = vpack.c.b16 %v3696, %v3695
        %v3770 = vpack.c.b16 %v3698, %v3697
        %v3771 = vpack.c.b16 %v3700, %v3699
        %v3772 = vpack.c.b16 %v3702, %v3701
        %v3773 = vpack.c.b16 %v3704, %v3703
        %v3774 = vpack.c.b16 %v3706, %v3705
        %v3775 = vpack.c.b16 %v3708, %v3707
        %v3776 = vpack.c.b16 %v3710, %v3709
        %v3777 = vpack.c.b16 %v3712, %v3711
        %v3778 = vpack.c.b16 %v3714, %v3713
        %v3779 = vpack.c.b16 %v3716, %v3715
        %v3780 = vpack.c.b16 %v3718, %v3717
        %v3781 = vpack.c.b16 %v3720, %v3719
        %v3782 = vpack.c.b16 %v3722, %v3721
        %v3783 = vpack.c.b16 %v3724, %v3723
        %v3784 = vpack.c.b16 %v3726, %v3725
        %v3785 = vpack.c.b16 %v3728, %v3727
        %v3786 = vpack.c.b16 %v3730, %v3729
        %v3787 = vpack.c.b16 %v3732, %v3731
        %v3788 = vpack.c.b16 %v3734, %v3733
        %v3789 = vpack.c.b16 %v3736, %v3735
        %v3790 = vpack.c.b16 %v3738, %v3737
        %v3791 = vpack.c.b16 %v3740, %v3739
        %v3792 = vpack.c.b16 %v3742, %v3741
        %v3793 = vpack.c.b16 %v3744, %v3743
        %v3794 = vpack.c.b16 %v3746, %v3745
        %v3795 = vpack.c.b16 %v3748, %v3747
        %v3796 = vpack.c.b16 %v3750, %v3749
        %v3797 = vpack.c.b16 %v3752, %v3751
        %v3798 = vpack.c.b16 %v3754, %v3753
        %v3843 = vsel %vm1289, %v3489, 0
        %v3846 = vand.u32 %v3798, %v1296
        %3848 = vmatprep.subr.bf16.mxu0 0
        %3849 = vmatpush1.bf16.msra.mxu0 %v3755
        %3850 = vmatprep.subr.bf16.mxu0 0
        %3851 = vmatpush1.bf16.msra.mxu0 %v3756
        %3852 = vmatprep.subr.bf16.mxu0 0
        %3853 = vmatpush1.bf16.msra.mxu0 %v3757
        %3854 = vmatprep.subr.bf16.mxu0 0
        %3855 = vmatpush1.bf16.msra.mxu0 %v3758
        %3856 = vmatprep.subr.bf16.mxu0 0
        %3857 = vmatpush1.bf16.msra.mxu0 %v3759
        %3858 = vmatprep.subr.bf16.mxu0 0
        %3859 = vmatpush1.bf16.msra.mxu0 %v3760
        %3860 = vmatprep.subr.bf16.mxu0 0
        %3861 = vmatpush1.bf16.msra.mxu0 %v3761
        %3862 = vmatprep.subr.bf16.mxu0 0
        %3863 = vmatpush1.bf16.msra.mxu0 %v3762
        %3864 = vmatprep.subr.bf16.mxu0 0
        %3865 = vmatpush1.bf16.msra.mxu0 %v3763
        %3866 = vmatprep.subr.bf16.mxu0 0
        %3867 = vmatpush1.bf16.msra.mxu0 %v3764
        %3868 = vmatprep.subr.bf16.mxu0 0
        %3869 = vmatpush1.bf16.msra.mxu0 %v3765
        %3870 = vmatprep.subr.bf16.mxu0 0
        %3871 = vmatpush1.bf16.msra.mxu0 %v3766
        %3872 = vmatprep.subr.bf16.mxu0 0
        %3873 = vmatpush1.bf16.msra.mxu0 %v3767
        %3874 = vmatprep.subr.bf16.mxu0 0
        %3875 = vmatpush1.bf16.msra.mxu0 %v3768
        %3876 = vmatprep.subr.bf16.mxu0 0
        %3877 = vmatpush1.bf16.msra.mxu0 %v3769
        %3878 = vmatprep.subr.bf16.mxu0 0
        %3879 = vmatpush1.bf16.msra.mxu0 %v3770
        %3880 = vmatprep.mubr.bf16.mxu0 %v3485
        %3881 = vmatmul.mubr.bf16.gmra.mrb[0].mxu0 %v3484
        %v3882 = vpop.f32.mrb[0].mxu0
        %v3883 = vadd.f32 0.0, %v3882
        %v3884 = vpop.f32.mrb[0].mxu0
        %v3885 = vpop.f32.mrb[0].mxu0
        %v3886 = vpop.f32.mrb[0].mxu0
        %3887 = vdwg.mxu0
        %3888 = vmatprep.subr.bf16.mxu0 0
        %3889 = vmatpush1.bf16.msra.mxu0 %v3771
        %3890 = vmatprep.subr.bf16.mxu0 0
        %3891 = vmatpush1.bf16.msra.mxu0 %v3772
        %3892 = vmatprep.subr.bf16.mxu0 0
        %3893 = vmatpush1.bf16.msra.mxu0 %v3773
        %3894 = vmatprep.subr.bf16.mxu0 0
        %3895 = vmatpush1.bf16.msra.mxu0 %v3774
        %3896 = vmatprep.subr.bf16.mxu0 0
        %3897 = vmatpush1.bf16.msra.mxu0 %v3775
        %3898 = vmatprep.subr.bf16.mxu0 0
        %3899 = vmatpush1.bf16.msra.mxu0 %v3776
        %3900 = vmatprep.subr.bf16.mxu0 0
        %3901 = vmatpush1.bf16.msra.mxu0 %v3777
        %3902 = vmatprep.subr.bf16.mxu0 0
        %3903 = vmatpush1.bf16.msra.mxu0 %v3778
        %3904 = vmatprep.subr.bf16.mxu0 0
        %3905 = vmatpush1.bf16.msra.mxu0 %v3779
        %3906 = vmatprep.subr.bf16.mxu0 0
        %3907 = vmatpush1.bf16.msra.mxu0 %v3780
        %3908 = vmatprep.subr.bf16.mxu0 0
        %3909 = vmatpush1.bf16.msra.mxu0 %v3781
        %3910 = vmatprep.subr.bf16.mxu0 0
        %3911 = vmatpush1.bf16.msra.mxu0 %v3782
        %3912 = vmatprep.subr.bf16.mxu0 0
        %3913 = vmatpush1.bf16.msra.mxu0 %v3783
        %3914 = vmatprep.subr.bf16.mxu0 0
        %3915 = vmatpush1.bf16.msra.mxu0 %v3784
        %3916 = vmatprep.subr.bf16.mxu0 0
        %3917 = vmatpush1.bf16.msra.mxu0 %v3785
        %3918 = vmatprep.subr.bf16.mxu0 0
        %3919 = vmatpush1.bf16.msra.mxu0 %v3786
        %3920 = vmatprep.mubr.bf16.mxu0 %v3487
        %3921 = vmatmul.mubr.bf16.gmra.mrb[0].mxu0 %v3486
        %v3922 = vpop.f32.mrb[0].mxu0
        %v3923 = vadd.f32 %v3883, %v3922
        %v3924 = vpop.f32.mrb[0].mxu0
        %v3925 = vpop.f32.mrb[0].mxu0
        %v3926 = vpop.f32.mrb[0].mxu0
        %3927 = vdwg.mxu0
        %3928 = vmatprep.subr.bf16.mxu0 0
        %3929 = vmatpush1.bf16.msra.mxu0 %v3787
        %3930 = vmatprep.subr.bf16.mxu0 0
        %3931 = vmatpush1.bf16.msra.mxu0 %v3788
        %3932 = vmatprep.subr.bf16.mxu0 0
        %3933 = vmatpush1.bf16.msra.mxu0 %v3789
        %3934 = vmatprep.subr.bf16.mxu0 0
        %3935 = vmatpush1.bf16.msra.mxu0 %v3790
        %3936 = vmatprep.subr.bf16.mxu0 0
        %3937 = vmatpush1.bf16.msra.mxu0 %v3791
        %3938 = vmatprep.subr.bf16.mxu0 0
        %3939 = vmatpush1.bf16.msra.mxu0 %v3792
        %3940 = vmatprep.subr.bf16.mxu0 0
        %3941 = vmatpush1.bf16.msra.mxu0 %v3793
        %3942 = vmatprep.subr.bf16.mxu0 0
        %3943 = vmatpush1.bf16.msra.mxu0 %v3794
        %3944 = vmatprep.subr.bf16.mxu0 0
        %3945 = vmatpush1.bf16.msra.mxu0 %v3795
        %3946 = vmatprep.subr.bf16.mxu0 0
        %3947 = vmatpush1.bf16.msra.mxu0 %v3796
        %3948 = vmatprep.subr.bf16.mxu0 0
        %3949 = vmatpush1.bf16.msra.mxu0 %v3797
        %3950 = vmatprep.subr.bf16.mxu0 0
        %3951 = vmatpush1.bf16.msra.mxu0 %v3846
        %3952 = vmatprep.subr.bf16.mxu0 0
        %3953 = vmatpush1.bf16.msra.mxu0 0
        %3954 = vmatprep.subr.bf16.mxu0 0
        %3955 = vmatpush1.bf16.msra.mxu0 0
        %3956 = vmatprep.subr.bf16.mxu0 0
        %3957 = vmatpush1.bf16.msra.mxu0 0
        %3958 = vmatprep.subr.bf16.mxu0 0
        %3959 = vmatpush1.bf16.msra.mxu0 0
        %3960 = vmatprep.mubr.bf16.mxu0 %v3843
        %3961 = vmatmul.mubr.bf16.gmra.mrb[0].mxu0 %v3488
        %v3962 = vpop.f32.mrb[0].mxu0
        %v3963 = vadd.f32 %v3923, %v3962
        %v3964 = vpop.f32.mrb[0].mxu0
        %v3965 = vpop.f32.mrb[0].mxu0
        %v3966 = vpop.f32.mrb[0].mxu0
        %3967 = vdwg.mxu0
        %v3968 = vadd.f32 %v3248, %v3963
        %v3969 = vld [vmem:[#allocation2] sm:$0x3]
        %v3970 = vadd.f32 %v3969, %v3968
        %3971 = vst [vmem:[#allocation2] sm:$0x3] %v3970
        %p3972 = scmp.eq.s32.totalorder %s26, 3
        // Predicated region
        $region77: #{cnn_forward.1} parent=47 // pred_check
          %p3973 = pneg %p3972
        $region78: #{cnn_forward.1} parent=47 // pred_check_branch
          %3975 = sbr.rel (%p3973) target = $region80
        $region79: #{cnn_forward.1} parent=47 // pred_region
          %v3976 = vld [vmem:[#allocation2] sm:$0x3]
          %v3977 = vld [vmem:[#allocation10] sm:$0x1]
          %v3979 = vlaneseq
          %v3980 = vshrl.u32 %v3979, 7
          %v3981 = vsub.s32 0, %v3980
          %v3982 = vrot.slane %v3977, %v3981
          %v3984 = vadd.f32 %v3976, %v3982
          %v3985 = vmax.f32 %v3984, 0.0
          %v3986 = vld [vmem:[#allocation12] sm:$0xff]
          %v3987 = vld [vmem:[#allocation12 + $0x8] sm:$0xff]
          %v3988 = vld [vmem:[#allocation12 + $0x10] sm:$0xff]
          %v3989 = vld [vmem:[#allocation12 + $0x18] sm:$0xff]
          %v3990 = vld [vmem:[#allocation12 + $0x20] sm:$0xff]
          %v3991 = vld [vmem:[#allocation12 + $0x28] sm:$0xff]
          %v3992 = vld [vmem:[#allocation12 + $0x30] sm:$0xff]
          %v3993 = vld [vmem:[#allocation12 + $0x38] sm:$0xff]
          %v3994 = vld [vmem:[#allocation12 + $0x40] sm:$0xff]
          %v3995 = vld [vmem:[#allocation12 + $0x48] sm:$0xff]
          %v3996 = vld [vmem:[#allocation12 + $0x50] sm:$0xff]
          %v3997 = vld [vmem:[#allocation12 + $0x58] sm:$0xff]
          %v3998 = vld [vmem:[#allocation12 + $0x60] sm:$0xff]
          %v3999 = vld [vmem:[#allocation12 + $0x68] sm:$0xff]
          %v4000 = vld [vmem:[#allocation12 + $0x70] sm:$0xff]
          %v4001 = vld [vmem:[#allocation12 + $0x78] sm:$0xff]
          %v4002 = vld [vmem:[#allocation13] sm:$0x1]
          %v4004 = vlaneseq
          %v4005 = vshrl.u32 %v4004, 7
          %v4006 = vsub.s32 0, %v4005
          %v4007 = vrot.slane %v4002, %v4006
          %4009 = vmatprep.subr.mxu0 0.0
          %4010 = vmatpush1.msra.mxu0 %v3986
          %4011 = vmatprep.subr.mxu0 0.0
          %4012 = vmatpush1.msra.mxu0 %v3987
          %4013 = vmatprep.subr.mxu0 0.0
          %4014 = vmatpush1.msra.mxu0 %v3988
          %4015 = vmatprep.subr.mxu0 0.0
          %4016 = vmatpush1.msra.mxu0 %v3989
          %4017 = vmatprep.subr.mxu0 0.0
          %4018 = vmatpush1.msra.mxu0 %v3990
          %4019 = vmatprep.subr.mxu0 0.0
          %4020 = vmatpush1.msra.mxu0 %v3991
          %4021 = vmatprep.subr.mxu0 0.0
          %4022 = vmatpush1.msra.mxu0 %v3992
          %4023 = vmatprep.subr.mxu0 0.0
          %4024 = vmatpush1.msra.mxu0 %v3993
          %4025 = vmatprep.subr.mxu0 0.0
          %4026 = vmatpush1.msra.mxu0 %v3994
          %4027 = vmatprep.subr.mxu0 0.0
          %4028 = vmatpush1.msra.mxu0 %v3995
          %4029 = vmatprep.subr.mxu0 0.0
          %4030 = vmatpush1.msra.mxu0 %v3996
          %4031 = vmatprep.subr.mxu0 0.0
          %4032 = vmatpush1.msra.mxu0 %v3997
          %4033 = vmatprep.subr.mxu0 0.0
          %4034 = vmatpush1.msra.mxu0 %v3998
          %4035 = vmatprep.subr.mxu0 0.0
          %4036 = vmatpush1.msra.mxu0 %v3999
          %4037 = vmatprep.subr.mxu0 0.0
          %4038 = vmatpush1.msra.mxu0 %v4000
          %4039 = vmatprep.subr.mxu0 0.0
          %4040 = vmatpush1.msra.mxu0 %v4001
          %4041 = vmatprep.subr.mxu0 0.0
          %4042 = vmatpush1.msra.mxu0 0.0
          %4043 = vmatprep.subr.mxu0 0.0
          %4044 = vmatpush1.msra.mxu0 0.0
          %4045 = vmatprep.subr.mxu0 0.0
          %4046 = vmatpush1.msra.mxu0 0.0
          %4047 = vmatprep.subr.mxu0 0.0
          %4048 = vmatpush1.msra.mxu0 0.0
          %4049 = vmatprep.subr.mxu0 0.0
          %4050 = vmatpush1.msra.mxu0 0.0
          %4051 = vmatprep.subr.mxu0 0.0
          %4052 = vmatpush1.msra.mxu0 0.0
          %4053 = vmatprep.subr.mxu0 0.0
          %4054 = vmatpush1.msra.mxu0 0.0
          %4055 = vmatprep.subr.mxu0 0.0
          %4056 = vmatpush1.msra.mxu0 0.0
          %4057 = vmatprep.subr.mxu0 0.0
          %4058 = vmatpush1.msra.mxu0 0.0
          %4059 = vmatprep.subr.mxu0 0.0
          %4060 = vmatpush1.msra.mxu0 0.0
          %4061 = vmatprep.subr.mxu0 0.0
          %4062 = vmatpush1.msra.mxu0 0.0
          %4063 = vmatprep.subr.mxu0 0.0
          %4064 = vmatpush1.msra.mxu0 0.0
          %4065 = vmatprep.subr.mxu0 0.0
          %4066 = vmatpush1.msra.mxu0 0.0
          %4067 = vmatprep.subr.mxu0 0.0
          %4068 = vmatpush1.msra.mxu0 0.0
          %4069 = vmatprep.subr.mxu0 0.0
          %4070 = vmatpush1.msra.mxu0 0.0
          %4071 = vmatprep.subr.mxu0 0.0
          %4072 = vmatpush1.msra.mxu0 0.0
          %4073 = vmatprep.mubr.f32.mxu0 0.0
          %4074 = vmatmul.mubr.f32.gmra.mrb[0].mxu0 %v3985
          %v4075 = vpop.f32.mrb[0].mxu0
          %v4076 = vadd.f32 %v4007, %v4075
          %v4077 = vpop.f32.mrb[0].mxu0
          %4078 = vdwg.mxu0
          %vm4079 = vcmask 1041408
          %v4080 = vsel %vm4079, %v4076, -inf
          %4081 = vmax.xlane.f32.xlu0 %v4080
          %v4082 = vpop.xlane.xlu0 %4081
          %v4083 = vsub.f32 %v4076, %v4082
          %v4084 = vmul.f32 %v4083, 1.442695
          %v4085 = vpow.pop %v4084
          %v4086 = vsel %vm4079, %v4085, 0.0
          %4087 = vadd.xlane.f32.xlu0 %v4086
          %v4088 = vpop.xlane.xlu0 %4087
          %v4089 = vlog2.pop %v4088
          %v4090 = vmul.f32 %v4089, 0.6931472
          %v4091 = vsub.f32 %v4083, %v4090
          %4092 = vst [vmem:[#allocation15] sm:$0x3] %v4091
        $region80: #{cnn_forward.1} parent=47 // pred_fallthru
          _
        // Predicated region
        $region81: #{cnn_forward.1} parent=47 // pred_check
          %p4093 = pneg %p191
        $region82: #{cnn_forward.1} parent=47 // pred_check_branch
          %4095 = sbr.rel (%p4093) target = $region84
        $region83: #{cnn_forward.1} parent=47 // pred_region
          %s4097 = ssub.s32 32, 32
          %4098 = vsyncadd [#allocation5], %s4097
          %s4100 = sshll.u32 [#allocation15], 4
          %s4101 = int_to_ptr.vmem [resolvable:$true] %s4100
          %4103 = dma.vmem_to_hbm [thread:$0]  %s4101, 32, %s7, [#allocation5]
        $region84: #{cnn_forward.1} parent=47 // pred_fallthru
          _
        // Predicated region
        $region85: #{cnn_forward.1} parent=47 // pred_check
          %p4104 = pneg %p191
        $region86: #{cnn_forward.1} parent=47 // pred_check_branch
          %4106 = sbr.rel (%p4104) target = $region88
        $region87: #{cnn_forward.1} parent=47 // pred_region
          %4107 = dma.done [#allocation5], 32
        $region88: #{cnn_forward.1} parent=47 // pred_fallthru
          _
      $region48: #{cnn_forward.1} parent=5 // pred_fallthru
        _
      %p4108 = scmp.le.s32.totalorder 2, %s21
      // Predicated region
      $region89: #{cnn_forward.1} parent=5 // pred_check
        %p4109 = pneg %p4108
      $region90: #{cnn_forward.1} parent=5 // pred_check_branch
        %4111 = sbr.rel (%p4109) target = $region92
      $region91: #{cnn_forward.1} parent=5 // pred_region
        %s4112 = ssub.s32 %s21, 2
      $region92: #{cnn_forward.1} parent=5 // pred_fallthru
        _
    $region6: #{cnn_forward.1} parent=1 // loop_footer
      %s25 = sadd.s32 1, %s21
    $region7: #{cnn_forward.1} parent=1 // loop_footer_branch
      %20 = sbr.rel target = $region3
    $region8: #{cnn_forward.1} parent=1 // loop_exit
      _
    %4113 = vsyncpa [#allocation4], 1
    %s4114 = scalar_lea.sflag [#allocation4], 1
    %4115 = vsyncpa %s4114, 1
    %4116 = vsyncpa [#allocation11], 1
    %4117 = vsyncpa [#allocation14], 1
    %4118 = vsyncpa [#allocation5], 1
    %s4119 = scalar_lea.sflag [#allocation5], 1
    %4120 = vsyncpa %s4119, 1
    %4121 = vsyncpa [#allocation6], 1
    %s4122 = scalar_lea.sflag [#allocation6], 1
    %4123 = vsyncpa %s4122, 1
    %4124 = vsyncpa [#allocation8], 1

</llo_original>
